<compile_context>
chip_gen: v5e
topology: v5e:2x2
jax: 0.10.0
libtpu: 0.0.40
codegen_flags: <defaults>
</compile_context>

<pallas_src>
import functools
import math

import jax
import jax.numpy as jnp
from jax.experimental import pallas as pl
from jax.experimental.pallas import tpu as pltpu


def _round_up(x, m):
    return (x + m - 1) // m * m


# ---------------------------------------------------------------------------
# Pallas kernels
# ---------------------------------------------------------------------------
def _fused_encoder_kernel(x_ref, wc_ref, bc_ref, wfc_ref, bfc_ref,
                          w1_ref, b1_ref, w2_ref, b2_ref,
                          f_ref, fn_ref):
    """backbone(1x1 conv+ReLU) -> (fc + MLP) -> (pre-norm feats, l2norm feats)."""
    # backbone 1x1 conv as a small-K MXU matmul (x channels padded lane-dense,
    # bf16 operands, f32 accumulation), then ReLU.
    acc = jnp.dot(x_ref[...], wc_ref[...], preferred_element_type=jnp.float32)
    base = jnp.maximum(acc + bc_ref[...], 0.0)                    # (tm, IMG_P) f32
    base_b = base.astype(jnp.bfloat16)

    # EncoderImageAggr: features = fc(base) + MLP(base)
    fc = jnp.dot(base_b, wfc_ref[...],
                 preferred_element_type=jnp.float32) + bfc_ref[...]
    h = jnp.dot(base_b, w1_ref[...],
                preferred_element_type=jnp.float32) + b1_ref[...]
    h = jnp.maximum(h, 0.0).astype(jnp.bfloat16)                  # BN folded into w1/b1
    feats = fc + jnp.dot(h, w2_ref[...],
                         preferred_element_type=jnp.float32) + b2_ref[...]

    f_ref[...] = feats                                            # pre-norm (for GPO)

    # l2norm(features, dim=-1): X * 1/(sqrt(sum(X^2)) + 1e-8)
    # reciprocal of the (tm,1) column goes to the EUP slot, not the VALU.
    norm = jnp.sqrt(jnp.sum(feats * feats, axis=-1, keepdims=True)) + 1e-8
    fn_ref[...] = feats * pl.reciprocal(norm, approx=True)


def _weighted_pool_kernel(w_ref, f_ref, o_ref):
    # pooled[b, :] = sum_n sorted_feats[b, n, :] * w[n]   (weights batch-shared)
    o_ref[...] = jnp.sum(f_ref[...] * w_ref[...], axis=1)


# ---------------------------------------------------------------------------
# Pallas wrappers
# ---------------------------------------------------------------------------
def encoder_fused(x_rows, wc, bc, wfc, bfc, w1f, b1f, w2, b2):
    rows, cin_p = x_rows.shape
    img_p = wc.shape[1]
    hid_p = w1f.shape[1]
    emb_p = wfc.shape[1]

    # Row tile: big tiles for long MXU runs, but keep the "parallel" row grid at
    # >= 2 steps so both v7x TensorCores get work.  Rows are padded to a tile
    # multiple and sliced back (no dropped tail rows).
    if rows >= 512:
        tm = 256
    else:
        tm = max(16, _round_up((rows + 1) // 2, 16))
    rows_p = _round_up(rows, tm)
    if rows_p != rows:
        x_rows = jnp.pad(x_rows, ((0, rows_p - rows), (0, 0)))

    def resident(shape):
        # Constant block index -> weight stays resident; single pipeline buffer
        # (the second buffer of the default double-buffering is pure VMEM waste).
        nd = len(shape)
        return pl.BlockSpec(shape, lambda i, _nd=nd: (0,) * _nd,
                            pipeline_mode=pl.Buffered(1))

    flops = 2 * rows_p * (cin_p * img_p + img_p * emb_p
                          + img_p * hid_p + hid_p * emb_p)
    bytes_accessed = (
        rows_p * cin_p * 2
        + sum(int(a.size) * a.dtype.itemsize
              for a in (wc, bc, wfc, bfc, w1f, b1f, w2, b2))
        + 2 * rows_p * emb_p * 4)
    cost = pl.CostEstimate(flops=flops, transcendentals=2 * rows_p,
                           bytes_accessed=bytes_accessed)

    feats, featsn = pl.pallas_call(
        _fused_encoder_kernel,
        out_shape=(jax.ShapeDtypeStruct((rows_p, emb_p), jnp.float32),
                   jax.ShapeDtypeStruct((rows_p, emb_p), jnp.float32)),
        grid=(rows_p // tm,),
        in_specs=[
            pl.BlockSpec((tm, cin_p), lambda i: (i, 0)),      # x rows (bf16)
            resident((cin_p, img_p)), resident((1, img_p)),   # backbone conv
            resident((img_p, emb_p)), resident((1, emb_p)),   # fc
            resident((img_p, hid_p)), resident((1, hid_p)),   # MLP linear1 (BN folded)
            resident((hid_p, emb_p)), resident((1, emb_p)),   # MLP linear2
        ],
        out_specs=(pl.BlockSpec((tm, emb_p), lambda i: (i, 0)),
                   pl.BlockSpec((tm, emb_p), lambda i: (i, 0))),
        compiler_params=pltpu.CompilerParams(
            dimension_semantics=("parallel",),
            # explicit scoped-VMEM limit: above v5e's 16 MiB / v7x's 32 MiB
            # defaults, below v7x's 64 MiB physical.
            vmem_limit_bytes=48 * 1024 * 1024),
        cost_estimate=cost,
    )(x_rows, wc, bc, wfc, bfc, w1f, b1f, w2, b2)

    return feats[:rows], featsn[:rows]


def weighted_pool(sorted_feats, pool_w):
    """pooled[b] = sum_n sorted_feats[b, n, :] * pool_w[n]  (eval: shared weights)."""
    b, n, e = sorted_feats.shape
    # One grid step: the whole (B, N, E) block is tiny for eval batches, the
    # (N, 1) weight is loaded once (constant index, no batch broadcast), and we
    # avoid paying per-step pipeline overhead B times.
    return pl.pallas_call(
        _weighted_pool_kernel,
        out_shape=jax.ShapeDtypeStruct((b, e), jnp.float32),
        grid=(1,),
        in_specs=[pl.BlockSpec((n, 1), lambda i: (0, 0)),
                  pl.BlockSpec((b, n, e), lambda i: (0, 0, 0))],
        out_specs=pl.BlockSpec((b, e), lambda i: (0, 0)),
    )(pool_w, sorted_feats)


# ---------------------------------------------------------------------------
# GPO pieces kept in plain JAX (tiny sequential recurrence / glue)
# ---------------------------------------------------------------------------
def positional_encoding_1d(d_model, length):
    position = jnp.arange(length, dtype=jnp.float32)[:, None]
    div_term = jnp.exp(jnp.arange(0, d_model, 2, dtype=jnp.float32)
                       * -(math.log(10000.0) / d_model))
    pe = jnp.zeros((length, d_model), jnp.float32)
    pe = pe.at[:, 0::2].set(jnp.sin(position * div_term))
    pe = pe.at[:, 1::2].set(jnp.cos(position * div_term))
    return pe


def _gru_direction(xs, p, d_hid, reverse=False):
    def cell(h, x):
        gi = x @ p["w_ih"].T + p["b_ih"]
        gh = h @ p["w_hh"].T + p["b_hh"]
        i_r, i_z, i_n = jnp.split(gi, 3)
        h_r, h_z, h_n = jnp.split(gh, 3)
        r = jax.nn.sigmoid(i_r + h_r)
        z = jax.nn.sigmoid(i_z + h_z)
        n = jnp.tanh(i_n + r * h_n)
        h_new = (1.0 - z) * n + z * h
        return h_new, h_new

    h0 = jnp.zeros((d_hid,), jnp.float32)
    xs_in = xs[::-1] if reverse else xs
    _, hs = jax.lax.scan(cell, h0, xs_in)
    return hs[::-1] if reverse else hs


def gpo_pool_weights(n, d_pe, d_hid, gru_params, w_score):
    # eval mode: all lengths == n, so the mask is all-ones and the pooling
    # weights are shared across the batch (batch-independent; could be cached
    # per N outside the per-call path).
    pe = positional_encoding_1d(d_pe, n)                        # (N, d_pe)
    fwd = _gru_direction(pe, gru_params["fwd"], d_hid, reverse=False)
    bwd = _gru_direction(pe, gru_params["bwd"], d_hid, reverse=True)
    out_emb = (fwd + bwd) / 2.0                                 # (N, d_hid)
    scores = out_emb @ w_score.T                                # (N, 1)
    return jax.nn.softmax(scores / 0.1, axis=0)                 # softmax over regions


# ---------------------------------------------------------------------------
# Full eval-mode forward of EncoderImageFull
# ---------------------------------------------------------------------------
def encoder_image_full_forward(images, params, *, embed, d_pe, d_hid):
    B, C_in, H, W = images.shape
    N = H * W
    cin_p = params["w_conv"].shape[0]

    # NCHW -> (B*N, C_in) rows for the 1x1-conv backbone; channels zero-padded
    # lane-dense and cast to bf16 so the conv runs as a small-K MXU matmul.
    x_rows = jnp.transpose(images, (0, 2, 3, 1)).reshape(B * N, C_in)
    x_rows = jnp.pad(x_rows, ((0, 0), (0, cin_p - C_in))).astype(jnp.bfloat16)

    # eval branch of EncoderImageFull: feat_lengths[:] = N (all-ones GPO mask).
    feats_rows, featsn_rows = encoder_fused(
        x_rows, params["w_conv"], params["b_conv"],
        params["w_fc"], params["b_fc"],
        params["w1f"], params["b1f"],
        params["w2"], params["b2"])
    emb_p = feats_rows.shape[1]
    features_p = feats_rows.reshape(B, N, emb_p)                # pre-l2norm

    # GPO pooling on pre-l2norm features (matches reference ordering).
    pool_w = gpo_pool_weights(N, d_pe, d_hid,
                              params["gru"], params["w_score"])  # (N, 1)
    sorted_feats = -jnp.sort(-features_p, axis=1)                # descending, per dim
    pooled_p = weighted_pool(sorted_feats, pool_w)               # (B, EMB_P)

    # Reference forward: pooled is returned un-normalized; per-region features
    # are l2-normalized (done inside the fused kernel).
    pooled = pooled_p[:, :embed]
    features = featsn_rows.reshape(B, N, emb_p)[..., :embed]
    return pooled, features


# ---------------------------------------------------------------------------
# Deterministic parameter construction (lane-dense padded, bf16 MXU weights)
# ---------------------------------------------------------------------------
def make_params(key, C_in, img_dim, embed, d_pe=32, d_hid=32):
    hid = embed // 2
    CIN_P = _round_up(C_in, 128)
    IMG_P = _round_up(img_dim, 128)
    HID_P = _round_up(hid, 128)
    EMB_P = _round_up(embed, 128)
    keys = iter(jax.random.split(key, 24))

    def pad2(a, r, c):
        return jnp.pad(a, ((0, r - a.shape[0]), (0, c - a.shape[1])))

    # backbone 1x1 conv (synthetic stand-in for the external backbone_cnn)
    w_conv = jax.random.normal(next(keys), (C_in, img_dim), jnp.float32) * 0.1
    b_conv = jnp.zeros((1, img_dim), jnp.float32)

    # fc: Xavier uniform as in EncoderImageAggr.init_weights, bias = 0
    r = math.sqrt(6.0) / math.sqrt(img_dim + embed)
    w_fc = jax.random.uniform(next(keys), (img_dim, embed), jnp.float32, -r, r)
    b_fc = jnp.zeros((1, embed), jnp.float32)

    # MLP(img_dim, embed//2, embed, 2): Linear -> BN(eval) -> ReLU -> Linear
    lim1 = 1.0 / math.sqrt(img_dim)
    w1 = jax.random.uniform(next(keys), (img_dim, hid), jnp.float32, -lim1, lim1)
    b1 = jax.random.uniform(next(keys), (1, hid), jnp.float32, -lim1, lim1)
    bn_eps = 1e-5
    bn_scale = jnp.ones((1, hid), jnp.float32) / jnp.sqrt(1.0 + bn_eps)  # gamma/sqrt(var+eps)
    bn_shift = jnp.zeros((1, hid), jnp.float32)                          # beta - mean*scale
    # fold eval-mode BN into linear1: relu((xW1+b1)*s + t) == relu(x(W1*s) + (b1*s+t))
    w1f = w1 * bn_scale
    b1f = b1 * bn_scale + bn_shift
    lim2 = 1.0 / math.sqrt(hid)
    w2 = jax.random.uniform(next(keys), (hid, embed), jnp.float32, -lim2, lim2)
    b2 = jax.random.uniform(next(keys), (1, embed), jnp.float32, -lim2, lim2)

    # GPO(32, 32): bidirectional single-layer GRU + bias-free scorer (plain JAX)
    glim = 1.0 / math.sqrt(d_hid)
    gru = {}
    for d in ("fwd", "bwd"):
        gru[d] = dict(
            w_ih=jax.random.uniform(next(keys), (3 * d_hid, d_pe), jnp.float32, -glim, glim),
            w_hh=jax.random.uniform(next(keys), (3 * d_hid, d_hid), jnp.float32, -glim, glim),
            b_ih=jax.random.uniform(next(keys), (3 * d_hid,), jnp.float32, -glim, glim),
            b_hh=jax.random.uniform(next(keys), (3 * d_hid,), jnp.float32, -glim, glim),
        )
    w_score = jax.random.uniform(next(keys), (1, d_hid), jnp.float32, -glim, glim)

    # zero-pad every matmul dim to a multiple of 128 (lane-dense); padded
    # rows/cols stay exactly zero end-to-end and are sliced off at the end.
    # MXU weights are stored in bf16 (f32 accumulation in-kernel); biases f32.
    bf16 = jnp.bfloat16
    return dict(
        w_conv=pad2(w_conv, CIN_P, IMG_P).astype(bf16), b_conv=pad2(b_conv, 1, IMG_P),
        w_fc=pad2(w_fc, IMG_P, EMB_P).astype(bf16),     b_fc=pad2(b_fc, 1, EMB_P),
        w1f=pad2(w1f, IMG_P, HID_P).astype(bf16),       b1f=pad2(b1f, 1, HID_P),
        w2=pad2(w2, HID_P, EMB_P).astype(bf16),         b2=pad2(b2, 1, EMB_P),
        gru=gru, w_score=w_score,
    )


if __name__ == "__main__":
    key = jax.random.PRNGKey(0)
    k_img, k_par = jax.random.split(key)

    B, C_in, H, W = 2, 4, 16, 16        # images: NCHW
    img_dim, embed = 32, 32
    d_pe = d_hid = 32

    images = jax.random.normal(k_img, (B, C_in, H, W), jnp.float32)
    params = make_params(k_par, C_in, img_dim, embed, d_pe=d_pe, d_hid=d_hid)

    fwd = jax.jit(functools.partial(encoder_image_full_forward,
                                    embed=embed, d_pe=d_pe, d_hid=d_hid))
    pooled, features = fwd(images, params)
    jax.block_until_ready(pooled)
    jax.block_until_ready(features)

    assert pooled.shape == (B, embed)
    assert features.shape == (B, H * W, embed)
    assert bool(jnp.all(jnp.isfinite(pooled)))
    assert bool(jnp.all(jnp.isfinite(features)))
    print("KERNEL_OK")
</pallas_src>

<mosaic_0001>
module attributes {stable_mosaic.version = 11 : i64} {
  func.func @_fused_encoder_kernel(%arg0: i32, %arg1: memref<256x128xbf16, #tpu.memory_space<vmem>>, %arg2: memref<128x128xbf16, #tpu.memory_space<vmem>>, %arg3: memref<1x128xf32, #tpu.memory_space<vmem>>, %arg4: memref<128x128xbf16, #tpu.memory_space<vmem>>, %arg5: memref<1x128xf32, #tpu.memory_space<vmem>>, %arg6: memref<128x128xbf16, #tpu.memory_space<vmem>>, %arg7: memref<1x128xf32, #tpu.memory_space<vmem>>, %arg8: memref<128x128xbf16, #tpu.memory_space<vmem>>, %arg9: memref<1x128xf32, #tpu.memory_space<vmem>>, %arg10: memref<256x128xf32, #tpu.memory_space<vmem>>, %arg11: memref<256x128xf32, #tpu.memory_space<vmem>>) attributes {dimension_semantics = [#tpu.dimension_semantics<parallel>], iteration_bounds = array<i64: 2>, scalar_prefetch = 0 : i64, scratch_operands = 0 : i64, tpu.core_type = #tpu.core_type<tc>, window_params = [{transform_indices = @transform_0, window_bounds = array<i64: 256, 128>}, {pipeline_mode = #tpu.pipeline_mode<synchronous>, transform_indices = @transform_1, window_bounds = array<i64: 128, 128>}, {pipeline_mode = #tpu.pipeline_mode<synchronous>, transform_indices = @transform_2, window_bounds = array<i64: 1, 128>}, {pipeline_mode = #tpu.pipeline_mode<synchronous>, transform_indices = @transform_3, window_bounds = array<i64: 128, 128>}, {pipeline_mode = #tpu.pipeline_mode<synchronous>, transform_indices = @transform_4, window_bounds = array<i64: 1, 128>}, {pipeline_mode = #tpu.pipeline_mode<synchronous>, transform_indices = @transform_5, window_bounds = array<i64: 128, 128>}, {pipeline_mode = #tpu.pipeline_mode<synchronous>, transform_indices = @transform_6, window_bounds = array<i64: 1, 128>}, {pipeline_mode = #tpu.pipeline_mode<synchronous>, transform_indices = @transform_7, window_bounds = array<i64: 128, 128>}, {pipeline_mode = #tpu.pipeline_mode<synchronous>, transform_indices = @transform_8, window_bounds = array<i64: 1, 128>}, {transform_indices = @transform_9, window_bounds = array<i64: 256, 128>}, {transform_indices = @transform_10, window_bounds = array<i64: 256, 128>}]} {
    %c0 = arith.constant 0 : index
    %c0_0 = arith.constant 0 : index
    %0 = vector.load %arg1[%c0, %c0_0] : memref<256x128xbf16, #tpu.memory_space<vmem>>, vector<256x128xbf16>
    %c0_1 = arith.constant 0 : index
    %c0_2 = arith.constant 0 : index
    %1 = vector.load %arg2[%c0_1, %c0_2] : memref<128x128xbf16, #tpu.memory_space<vmem>>, vector<128x128xbf16>
    %cst = arith.constant dense<0.000000e+00> : vector<256x128xf32>
    %2 = tpu.matmul %0, %1, %cst {dimension_numbers = #tpu.dot_dimension_numbers<[1], [0], [0], [1], [0, 0, 1, 1], [], []>} : vector<256x128xbf16>, vector<128x128xbf16>, vector<256x128xf32> -> vector<256x128xf32>
    %c0_3 = arith.constant 0 : index
    %c0_4 = arith.constant 0 : index
    %3 = vector.load %arg3[%c0_3, %c0_4] : memref<1x128xf32, #tpu.memory_space<vmem>>, vector<1x128xf32>
    %4 = vector.broadcast %3 : vector<1x128xf32> to vector<256x128xf32>
    %5 = arith.addf %2, %4 : vector<256x128xf32>
    %cst_5 = arith.constant 0.000000e+00 : f32
    %6 = vector.broadcast %cst_5 : f32 to vector<256x128xf32>
    %7 = arith.maximumf %5, %6 : vector<256x128xf32>
    %8 = arith.truncf %7 : vector<256x128xf32> to vector<256x128xbf16>
    %c0_6 = arith.constant 0 : index
    %c0_7 = arith.constant 0 : index
    %9 = vector.load %arg4[%c0_6, %c0_7] : memref<128x128xbf16, #tpu.memory_space<vmem>>, vector<128x128xbf16>
    %cst_8 = arith.constant dense<0.000000e+00> : vector<256x128xf32>
    %10 = tpu.matmul %8, %9, %cst_8 {dimension_numbers = #tpu.dot_dimension_numbers<[1], [0], [0], [1], [0, 0, 1, 1], [], []>} : vector<256x128xbf16>, vector<128x128xbf16>, vector<256x128xf32> -> vector<256x128xf32>
    %c0_9 = arith.constant 0 : index
    %c0_10 = arith.constant 0 : index
    %11 = vector.load %arg5[%c0_9, %c0_10] : memref<1x128xf32, #tpu.memory_space<vmem>>, vector<1x128xf32>
    %12 = vector.broadcast %11 : vector<1x128xf32> to vector<256x128xf32>
    %13 = arith.addf %10, %12 : vector<256x128xf32>
    %c0_11 = arith.constant 0 : index
    %c0_12 = arith.constant 0 : index
    %14 = vector.load %arg6[%c0_11, %c0_12] : memref<128x128xbf16, #tpu.memory_space<vmem>>, vector<128x128xbf16>
    %cst_13 = arith.constant dense<0.000000e+00> : vector<256x128xf32>
    %15 = tpu.matmul %8, %14, %cst_13 {dimension_numbers = #tpu.dot_dimension_numbers<[1], [0], [0], [1], [0, 0, 1, 1], [], []>} : vector<256x128xbf16>, vector<128x128xbf16>, vector<256x128xf32> -> vector<256x128xf32>
    %c0_14 = arith.constant 0 : index
    %c0_15 = arith.constant 0 : index
    %16 = vector.load %arg7[%c0_14, %c0_15] : memref<1x128xf32, #tpu.memory_space<vmem>>, vector<1x128xf32>
    %17 = vector.broadcast %16 : vector<1x128xf32> to vector<256x128xf32>
    %18 = arith.addf %15, %17 : vector<256x128xf32>
    %cst_16 = arith.constant 0.000000e+00 : f32
    %19 = vector.broadcast %cst_16 : f32 to vector<256x128xf32>
    %20 = arith.maximumf %18, %19 : vector<256x128xf32>
    %21 = arith.truncf %20 : vector<256x128xf32> to vector<256x128xbf16>
    %c0_17 = arith.constant 0 : index
    %c0_18 = arith.constant 0 : index
    %22 = vector.load %arg8[%c0_17, %c0_18] : memref<128x128xbf16, #tpu.memory_space<vmem>>, vector<128x128xbf16>
    %cst_19 = arith.constant dense<0.000000e+00> : vector<256x128xf32>
    %23 = tpu.matmul %21, %22, %cst_19 {dimension_numbers = #tpu.dot_dimension_numbers<[1], [0], [0], [1], [0, 0, 1, 1], [], []>} : vector<256x128xbf16>, vector<128x128xbf16>, vector<256x128xf32> -> vector<256x128xf32>
    %24 = arith.addf %13, %23 : vector<256x128xf32>
    %c0_20 = arith.constant 0 : index
    %c0_21 = arith.constant 0 : index
    %25 = vector.load %arg9[%c0_20, %c0_21] : memref<1x128xf32, #tpu.memory_space<vmem>>, vector<1x128xf32>
    %26 = vector.broadcast %25 : vector<1x128xf32> to vector<256x128xf32>
    %27 = arith.addf %24, %26 : vector<256x128xf32>
    %c0_22 = arith.constant 0 : index
    %c0_23 = arith.constant 0 : index
    %28 = vector.load %arg10[%c0_22, %c0_23] : memref<256x128xf32, #tpu.memory_space<vmem>>, vector<256x128xf32>
    tpu.vector_store %arg10[%c0_22, %c0_23], %27 {strides = array<i32>} : memref<256x128xf32, #tpu.memory_space<vmem>>, vector<256x128xf32>,
    %29 = arith.mulf %27, %27 : vector<256x128xf32>
    %cst_24 = arith.constant dense<0.000000e+00> : vector<256xf32>
    %30 = vector.multi_reduction <add>, %29, %cst_24 [1] : vector<256x128xf32> to vector<256xf32>
    %31 = vector.shape_cast %30 : vector<256xf32> to vector<256x1xf32>
    %32 = math.sqrt %31 : vector<256x1xf32>
    %cst_25 = arith.constant 9.99999993E-9 : f32
    %33 = vector.broadcast %cst_25 : f32 to vector<256x1xf32>
    %34 = arith.addf %32, %33 : vector<256x1xf32>
    %35 = tpu.reciprocal %34 {approx = true} : vector<256x1xf32> -> vector<256x1xf32>
    %36 = vector.broadcast %35 : vector<256x1xf32> to vector<256x128xf32>
    %37 = arith.mulf %27, %36 : vector<256x128xf32>
    %c0_26 = arith.constant 0 : index
    %c0_27 = arith.constant 0 : index
    %38 = vector.load %arg11[%c0_26, %c0_27] : memref<256x128xf32, #tpu.memory_space<vmem>>, vector<256x128xf32>
    tpu.vector_store %arg11[%c0_26, %c0_27], %37 {strides = array<i32>} : memref<256x128xf32, #tpu.memory_space<vmem>>, vector<256x128xf32>,
    return
  }
  func.func @transform_0(%arg0: i32) -> (i32, i32) {
    %c0_i32 = arith.constant 0 : i32
    %c0_i32_0 = arith.constant 0 : i32
    return %arg0, %c0_i32 : i32, i32
  }
  func.func @transform_1(%arg0: i32) -> (i32, i32) {
    %c0_i32 = arith.constant 0 : i32
    %c0_i32_0 = arith.constant 0 : i32
    %c0_i32_1 = arith.constant 0 : i32
    return %c0_i32, %c0_i32_0 : i32, i32
  }
  func.func @transform_2(%arg0: i32) -> (i32, i32) {
    %c0_i32 = arith.constant 0 : i32
    %c0_i32_0 = arith.constant 0 : i32
    %c0_i32_1 = arith.constant 0 : i32
    return %c0_i32, %c0_i32_0 : i32, i32
  }
  func.func @transform_3(%arg0: i32) -> (i32, i32) {
    %c0_i32 = arith.constant 0 : i32
    %c0_i32_0 = arith.constant 0 : i32
    %c0_i32_1 = arith.constant 0 : i32
    return %c0_i32, %c0_i32_0 : i32, i32
  }
  func.func @transform_4(%arg0: i32) -> (i32, i32) {
    %c0_i32 = arith.constant 0 : i32
    %c0_i32_0 = arith.constant 0 : i32
    %c0_i32_1 = arith.constant 0 : i32
    return %c0_i32, %c0_i32_0 : i32, i32
  }
  func.func @transform_5(%arg0: i32) -> (i32, i32) {
    %c0_i32 = arith.constant 0 : i32
    %c0_i32_0 = arith.constant 0 : i32
    %c0_i32_1 = arith.constant 0 : i32
    return %c0_i32, %c0_i32_0 : i32, i32
  }
  func.func @transform_6(%arg0: i32) -> (i32, i32) {
    %c0_i32 = arith.constant 0 : i32
    %c0_i32_0 = arith.constant 0 : i32
    %c0_i32_1 = arith.constant 0 : i32
    return %c0_i32, %c0_i32_0 : i32, i32
  }
  func.func @transform_7(%arg0: i32) -> (i32, i32) {
    %c0_i32 = arith.constant 0 : i32
    %c0_i32_0 = arith.constant 0 : i32
    %c0_i32_1 = arith.constant 0 : i32
    return %c0_i32, %c0_i32_0 : i32, i32
  }
  func.func @transform_8(%arg0: i32) -> (i32, i32) {
    %c0_i32 = arith.constant 0 : i32
    %c0_i32_0 = arith.constant 0 : i32
    %c0_i32_1 = arith.constant 0 : i32
    return %c0_i32, %c0_i32_0 : i32, i32
  }
  func.func @transform_9(%arg0: i32) -> (i32, i32) {
    %c0_i32 = arith.constant 0 : i32
    %c0_i32_0 = arith.constant 0 : i32
    return %arg0, %c0_i32 : i32, i32
  }
  func.func @transform_10(%arg0: i32) -> (i32, i32) {
    %c0_i32 = arith.constant 0 : i32
    %c0_i32_0 = arith.constant 0 : i32
    return %arg0, %c0_i32 : i32, i32
  }
}

module attributes {stable_mosaic.version = 11 : i64} {
  func.func @_weighted_pool_kernel(%arg0: i32, %arg1: memref<256x1xf32, #tpu.memory_space<vmem>>, %arg2: memref<2x256x128xf32, #tpu.memory_space<vmem>>, %arg3: memref<2x128xf32, #tpu.memory_space<vmem>>) attributes {dimension_semantics = [#tpu.dimension_semantics<arbitrary>], iteration_bounds = array<i64: 1>, scalar_prefetch = 0 : i64, scratch_operands = 0 : i64, tpu.core_type = #tpu.core_type<tc>, window_params = [{pipeline_mode = #tpu.pipeline_mode<synchronous>, transform_indices = @transform_0, window_bounds = array<i64: 256, 1>}, {pipeline_mode = #tpu.pipeline_mode<synchronous>, transform_indices = @transform_1, window_bounds = array<i64: 2, 256, 128>}, {pipeline_mode = #tpu.pipeline_mode<synchronous>, transform_indices = @transform_2, window_bounds = array<i64: 2, 128>}]} {
    %c0 = arith.constant 0 : index
    %c0_0 = arith.constant 0 : index
    %c0_1 = arith.constant 0 : index
    %0 = vector.load %arg2[%c0, %c0_0, %c0_1] : memref<2x256x128xf32, #tpu.memory_space<vmem>>, vector<2x256x128xf32>
    %c0_2 = arith.constant 0 : index
    %c0_3 = arith.constant 0 : index
    %1 = vector.load %arg1[%c0_2, %c0_3] : memref<256x1xf32, #tpu.memory_space<vmem>>, vector<256x1xf32>
    %2 = vector.shape_cast %1 : vector<256x1xf32> to vector<1x256x1xf32>
    %3 = vector.broadcast %2 : vector<1x256x1xf32> to vector<2x256x128xf32>
    %4 = arith.mulf %0, %3 : vector<2x256x128xf32>
    %cst = arith.constant dense<0.000000e+00> : vector<2x128xf32>
    %5 = vector.multi_reduction <add>, %4, %cst [1] : vector<2x256x128xf32> to vector<2x128xf32>
    %c0_4 = arith.constant 0 : index
    %c0_5 = arith.constant 0 : index
    %6 = vector.load %arg3[%c0_4, %c0_5] : memref<2x128xf32, #tpu.memory_space<vmem>>, vector<2x128xf32>
    tpu.vector_store %arg3[%c0_4, %c0_5], %5 {strides = array<i32>} : memref<2x128xf32, #tpu.memory_space<vmem>>, vector<2x128xf32>,
    return
  }
  func.func @transform_0(%arg0: i32) -> (i32, i32) {
    %c0_i32 = arith.constant 0 : i32
    %c0_i32_0 = arith.constant 0 : i32
    %c0_i32_1 = arith.constant 0 : i32
    return %c0_i32, %c0_i32_0 : i32, i32
  }
  func.func @transform_1(%arg0: i32) -> (i32, i32, i32) {
    %c0_i32 = arith.constant 0 : i32
    %c0_i32_0 = arith.constant 0 : i32
    %c0_i32_1 = arith.constant 0 : i32
    %c0_i32_2 = arith.constant 0 : i32
    return %c0_i32, %c0_i32_0, %c0_i32_1 : i32, i32, i32
  }
  func.func @transform_2(%arg0: i32) -> (i32, i32) {
    %c0_i32 = arith.constant 0 : i32
    %c0_i32_0 = arith.constant 0 : i32
    %c0_i32_1 = arith.constant 0 : i32
    return %c0_i32, %c0_i32_0 : i32, i32
  }
}

</mosaic_0001>

<llo_original>
// kernel: custom-call.1
$region0: #{custom-call.1}
  %s0 = inlined_call_operand.vmem [shape: f32[32], index: 0, kind: output, shape index: {}]

// kernel: neg.8
$region0: #{neg.8}
  #allocation0 [shape = 's32[1]{0}', space=sflag, size = 0x4, scoped, tag = 'scoped memory for neg.8']
  %s0 = inlined_call_operand.vmem [shape: f32[512,128], index: 0, kind: input, shape index: {}]
  %s1 = inlined_call_operand.vmem [shape: f32[512,128], index: 1, kind: output, shape index: {}]
  %v2 = vld [vmem:[%s0] sm:$0xff]
  %3 = xla_tuple %v2
  %4 = xla_tuple %3
  %v5 = vxor.u32 %v2, 2147483648
  %6 = xla_tuple %v5
  %7 = vst [vmem:[%s1] sm:$0xff] %v5
  %s8 = scalar_lea.vmem %s0, 8
  %v9 = vld [vmem:[%s8] sm:$0xff]
  %10 = xla_tuple %v9
  %11 = xla_tuple %10
  %v12 = vxor.u32 %v9, 2147483648
  %13 = xla_tuple %v12
  %s14 = scalar_lea.vmem %s1, 8
  %15 = vst [vmem:[%s14] sm:$0xff] %v12
  %s16 = scalar_lea.vmem %s0, 16
  %v17 = vld [vmem:[%s16] sm:$0xff]
  %18 = xla_tuple %v17
  %19 = xla_tuple %18
  %v20 = vxor.u32 %v17, 2147483648
  %21 = xla_tuple %v20
  %s22 = scalar_lea.vmem %s1, 16
  %23 = vst [vmem:[%s22] sm:$0xff] %v20
  %s24 = scalar_lea.vmem %s0, 24
  %v25 = vld [vmem:[%s24] sm:$0xff]
  %26 = xla_tuple %v25
  %27 = xla_tuple %26
  %v28 = vxor.u32 %v25, 2147483648
  %29 = xla_tuple %v28
  %s30 = scalar_lea.vmem %s1, 24
  %31 = vst [vmem:[%s30] sm:$0xff] %v28
  %s32 = scalar_lea.vmem %s0, 32
  %v33 = vld [vmem:[%s32] sm:$0xff]
  %34 = xla_tuple %v33
  %35 = xla_tuple %34
  %v36 = vxor.u32 %v33, 2147483648
  %37 = xla_tuple %v36
  %s38 = scalar_lea.vmem %s1, 32
  %39 = vst [vmem:[%s38] sm:$0xff] %v36
  %s40 = scalar_lea.vmem %s0, 40
  %v41 = vld [vmem:[%s40] sm:$0xff]
  %42 = xla_tuple %v41
  %43 = xla_tuple %42
  %v44 = vxor.u32 %v41, 2147483648
  %45 = xla_tuple %v44
  %s46 = scalar_lea.vmem %s1, 40
  %47 = vst [vmem:[%s46] sm:$0xff] %v44
  %s48 = scalar_lea.vmem %s0, 48
  %v49 = vld [vmem:[%s48] sm:$0xff]
  %50 = xla_tuple %v49
  %51 = xla_tuple %50
  %v52 = vxor.u32 %v49, 2147483648
  %53 = xla_tuple %v52
  %s54 = scalar_lea.vmem %s1, 48
  %55 = vst [vmem:[%s54] sm:$0xff] %v52
  %s56 = scalar_lea.vmem %s0, 56
  %v57 = vld [vmem:[%s56] sm:$0xff]
  %58 = xla_tuple %v57
  %59 = xla_tuple %58
  %v60 = vxor.u32 %v57, 2147483648
  %61 = xla_tuple %v60
  %s62 = scalar_lea.vmem %s1, 56
  %63 = vst [vmem:[%s62] sm:$0xff] %v60
  %s64 = scalar_lea.vmem %s0, 64
  %v65 = vld [vmem:[%s64] sm:$0xff]
  %66 = xla_tuple %v65
  %67 = xla_tuple %66
  %v68 = vxor.u32 %v65, 2147483648
  %69 = xla_tuple %v68
  %s70 = scalar_lea.vmem %s1, 64
  %71 = vst [vmem:[%s70] sm:$0xff] %v68
  %s72 = scalar_lea.vmem %s0, 72
  %v73 = vld [vmem:[%s72] sm:$0xff]
  %74 = xla_tuple %v73
  %75 = xla_tuple %74
  %v76 = vxor.u32 %v73, 2147483648
  %77 = xla_tuple %v76
  %s78 = scalar_lea.vmem %s1, 72
  %79 = vst [vmem:[%s78] sm:$0xff] %v76
  %s80 = scalar_lea.vmem %s0, 80
  %v81 = vld [vmem:[%s80] sm:$0xff]
  %82 = xla_tuple %v81
  %83 = xla_tuple %82
  %v84 = vxor.u32 %v81, 2147483648
  %85 = xla_tuple %v84
  %s86 = scalar_lea.vmem %s1, 80
  %87 = vst [vmem:[%s86] sm:$0xff] %v84
  %s88 = scalar_lea.vmem %s0, 88
  %v89 = vld [vmem:[%s88] sm:$0xff]
  %90 = xla_tuple %v89
  %91 = xla_tuple %90
  %v92 = vxor.u32 %v89, 2147483648
  %93 = xla_tuple %v92
  %s94 = scalar_lea.vmem %s1, 88
  %95 = vst [vmem:[%s94] sm:$0xff] %v92
  %s96 = scalar_lea.vmem %s0, 96
  %v97 = vld [vmem:[%s96] sm:$0xff]
  %98 = xla_tuple %v97
  %99 = xla_tuple %98
  %v100 = vxor.u32 %v97, 2147483648
  %101 = xla_tuple %v100
  %s102 = scalar_lea.vmem %s1, 96
  %103 = vst [vmem:[%s102] sm:$0xff] %v100
  %s104 = scalar_lea.vmem %s0, 104
  %v105 = vld [vmem:[%s104] sm:$0xff]
  %106 = xla_tuple %v105
  %107 = xla_tuple %106
  %v108 = vxor.u32 %v105, 2147483648
  %109 = xla_tuple %v108
  %s110 = scalar_lea.vmem %s1, 104
  %111 = vst [vmem:[%s110] sm:$0xff] %v108
  %s112 = scalar_lea.vmem %s0, 112
  %v113 = vld [vmem:[%s112] sm:$0xff]
  %114 = xla_tuple %v113
  %115 = xla_tuple %114
  %v116 = vxor.u32 %v113, 2147483648
  %117 = xla_tuple %v116
  %s118 = scalar_lea.vmem %s1, 112
  %119 = vst [vmem:[%s118] sm:$0xff] %v116
  %s120 = scalar_lea.vmem %s0, 120
  %v121 = vld [vmem:[%s120] sm:$0xff]
  %122 = xla_tuple %v121
  %123 = xla_tuple %122
  %v124 = vxor.u32 %v121, 2147483648
  %125 = xla_tuple %v124
  %s126 = scalar_lea.vmem %s1, 120
  %127 = vst [vmem:[%s126] sm:$0xff] %v124
  %s128 = scalar_lea.vmem %s0, 128
  %v129 = vld [vmem:[%s128] sm:$0xff]
  %130 = xla_tuple %v129
  %131 = xla_tuple %130
  %v132 = vxor.u32 %v129, 2147483648
  %133 = xla_tuple %v132
  %s134 = scalar_lea.vmem %s1, 128
  %135 = vst [vmem:[%s134] sm:$0xff] %v132
  %s136 = scalar_lea.vmem %s0, 136
  %v137 = vld [vmem:[%s136] sm:$0xff]
  %138 = xla_tuple %v137
  %139 = xla_tuple %138
  %v140 = vxor.u32 %v137, 2147483648
  %141 = xla_tuple %v140
  %s142 = scalar_lea.vmem %s1, 136
  %143 = vst [vmem:[%s142] sm:$0xff] %v140
  %s144 = scalar_lea.vmem %s0, 144
  %v145 = vld [vmem:[%s144] sm:$0xff]
  %146 = xla_tuple %v145
  %147 = xla_tuple %146
  %v148 = vxor.u32 %v145, 2147483648
  %149 = xla_tuple %v148
  %s150 = scalar_lea.vmem %s1, 144
  %151 = vst [vmem:[%s150] sm:$0xff] %v148
  %s152 = scalar_lea.vmem %s0, 152
  %v153 = vld [vmem:[%s152] sm:$0xff]
  %154 = xla_tuple %v153
  %155 = xla_tuple %154
  %v156 = vxor.u32 %v153, 2147483648
  %157 = xla_tuple %v156
  %s158 = scalar_lea.vmem %s1, 152
  %159 = vst [vmem:[%s158] sm:$0xff] %v156
  %s160 = scalar_lea.vmem %s0, 160
  %v161 = vld [vmem:[%s160] sm:$0xff]
  %162 = xla_tuple %v161
  %163 = xla_tuple %162
  %v164 = vxor.u32 %v161, 2147483648
  %165 = xla_tuple %v164
  %s166 = scalar_lea.vmem %s1, 160
  %167 = vst [vmem:[%s166] sm:$0xff] %v164
  %s168 = scalar_lea.vmem %s0, 168
  %v169 = vld [vmem:[%s168] sm:$0xff]
  %170 = xla_tuple %v169
  %171 = xla_tuple %170
  %v172 = vxor.u32 %v169, 2147483648
  %173 = xla_tuple %v172
  %s174 = scalar_lea.vmem %s1, 168
  %175 = vst [vmem:[%s174] sm:$0xff] %v172
  %s176 = scalar_lea.vmem %s0, 176
  %v177 = vld [vmem:[%s176] sm:$0xff]
  %178 = xla_tuple %v177
  %179 = xla_tuple %178
  %v180 = vxor.u32 %v177, 2147483648
  %181 = xla_tuple %v180
  %s182 = scalar_lea.vmem %s1, 176
  %183 = vst [vmem:[%s182] sm:$0xff] %v180
  %s184 = scalar_lea.vmem %s0, 184
  %v185 = vld [vmem:[%s184] sm:$0xff]
  %186 = xla_tuple %v185
  %187 = xla_tuple %186
  %v188 = vxor.u32 %v185, 2147483648
  %189 = xla_tuple %v188
  %s190 = scalar_lea.vmem %s1, 184
  %191 = vst [vmem:[%s190] sm:$0xff] %v188
  %s192 = scalar_lea.vmem %s0, 192
  %v193 = vld [vmem:[%s192] sm:$0xff]
  %194 = xla_tuple %v193
  %195 = xla_tuple %194
  %v196 = vxor.u32 %v193, 2147483648
  %197 = xla_tuple %v196
  %s198 = scalar_lea.vmem %s1, 192
  %199 = vst [vmem:[%s198] sm:$0xff] %v196
  %s200 = scalar_lea.vmem %s0, 200
  %v201 = vld [vmem:[%s200] sm:$0xff]
  %202 = xla_tuple %v201
  %203 = xla_tuple %202
  %v204 = vxor.u32 %v201, 2147483648
  %205 = xla_tuple %v204
  %s206 = scalar_lea.vmem %s1, 200
  %207 = vst [vmem:[%s206] sm:$0xff] %v204
  %s208 = scalar_lea.vmem %s0, 208
  %v209 = vld [vmem:[%s208] sm:$0xff]
  %210 = xla_tuple %v209
  %211 = xla_tuple %210
  %v212 = vxor.u32 %v209, 2147483648
  %213 = xla_tuple %v212
  %s214 = scalar_lea.vmem %s1, 208
  %215 = vst [vmem:[%s214] sm:$0xff] %v212
  %s216 = scalar_lea.vmem %s0, 216
  %v217 = vld [vmem:[%s216] sm:$0xff]
  %218 = xla_tuple %v217
  %219 = xla_tuple %218
  %v220 = vxor.u32 %v217, 2147483648
  %221 = xla_tuple %v220
  %s222 = scalar_lea.vmem %s1, 216
  %223 = vst [vmem:[%s222] sm:$0xff] %v220
  %s224 = scalar_lea.vmem %s0, 224
  %v225 = vld [vmem:[%s224] sm:$0xff]
  %226 = xla_tuple %v225
  %227 = xla_tuple %226
  %v228 = vxor.u32 %v225, 2147483648
  %229 = xla_tuple %v228
  %s230 = scalar_lea.vmem %s1, 224
  %231 = vst [vmem:[%s230] sm:$0xff] %v228
  %s232 = scalar_lea.vmem %s0, 232
  %v233 = vld [vmem:[%s232] sm:$0xff]
  %234 = xla_tuple %v233
  %235 = xla_tuple %234
  %v236 = vxor.u32 %v233, 2147483648
  %237 = xla_tuple %v236
  %s238 = scalar_lea.vmem %s1, 232
  %239 = vst [vmem:[%s238] sm:$0xff] %v236
  %s240 = scalar_lea.vmem %s0, 240
  %v241 = vld [vmem:[%s240] sm:$0xff]
  %242 = xla_tuple %v241
  %243 = xla_tuple %242
  %v244 = vxor.u32 %v241, 2147483648
  %245 = xla_tuple %v244
  %s246 = scalar_lea.vmem %s1, 240
  %247 = vst [vmem:[%s246] sm:$0xff] %v244
  %s248 = scalar_lea.vmem %s0, 248
  %v249 = vld [vmem:[%s248] sm:$0xff]
  %250 = xla_tuple %v249
  %251 = xla_tuple %250
  %v252 = vxor.u32 %v249, 2147483648
  %253 = xla_tuple %v252
  %s254 = scalar_lea.vmem %s1, 248
  %255 = vst [vmem:[%s254] sm:$0xff] %v252
  %s256 = scalar_lea.vmem %s0, 256
  %v257 = vld [vmem:[%s256] sm:$0xff]
  %258 = xla_tuple %v257
  %259 = xla_tuple %258
  %v260 = vxor.u32 %v257, 2147483648
  %261 = xla_tuple %v260
  %s262 = scalar_lea.vmem %s1, 256
  %263 = vst [vmem:[%s262] sm:$0xff] %v260
  %s264 = scalar_lea.vmem %s0, 264
  %v265 = vld [vmem:[%s264] sm:$0xff]
  %266 = xla_tuple %v265
  %267 = xla_tuple %266
  %v268 = vxor.u32 %v265, 2147483648
  %269 = xla_tuple %v268
  %s270 = scalar_lea.vmem %s1, 264
  %271 = vst [vmem:[%s270] sm:$0xff] %v268
  %s272 = scalar_lea.vmem %s0, 272
  %v273 = vld [vmem:[%s272] sm:$0xff]
  %274 = xla_tuple %v273
  %275 = xla_tuple %274
  %v276 = vxor.u32 %v273, 2147483648
  %277 = xla_tuple %v276
  %s278 = scalar_lea.vmem %s1, 272
  %279 = vst [vmem:[%s278] sm:$0xff] %v276
  %s280 = scalar_lea.vmem %s0, 280
  %v281 = vld [vmem:[%s280] sm:$0xff]
  %282 = xla_tuple %v281
  %283 = xla_tuple %282
  %v284 = vxor.u32 %v281, 2147483648
  %285 = xla_tuple %v284
  %s286 = scalar_lea.vmem %s1, 280
  %287 = vst [vmem:[%s286] sm:$0xff] %v284
  %s288 = scalar_lea.vmem %s0, 288
  %v289 = vld [vmem:[%s288] sm:$0xff]
  %290 = xla_tuple %v289
  %291 = xla_tuple %290
  %v292 = vxor.u32 %v289, 2147483648
  %293 = xla_tuple %v292
  %s294 = scalar_lea.vmem %s1, 288
  %295 = vst [vmem:[%s294] sm:$0xff] %v292
  %s296 = scalar_lea.vmem %s0, 296
  %v297 = vld [vmem:[%s296] sm:$0xff]
  %298 = xla_tuple %v297
  %299 = xla_tuple %298
  %v300 = vxor.u32 %v297, 2147483648
  %301 = xla_tuple %v300
  %s302 = scalar_lea.vmem %s1, 296
  %303 = vst [vmem:[%s302] sm:$0xff] %v300
  %s304 = scalar_lea.vmem %s0, 304
  %v305 = vld [vmem:[%s304] sm:$0xff]
  %306 = xla_tuple %v305
  %307 = xla_tuple %306
  %v308 = vxor.u32 %v305, 2147483648
  %309 = xla_tuple %v308
  %s310 = scalar_lea.vmem %s1, 304
  %311 = vst [vmem:[%s310] sm:$0xff] %v308
  %s312 = scalar_lea.vmem %s0, 312
  %v313 = vld [vmem:[%s312] sm:$0xff]
  %314 = xla_tuple %v313
  %315 = xla_tuple %314
  %v316 = vxor.u32 %v313, 2147483648
  %317 = xla_tuple %v316
  %s318 = scalar_lea.vmem %s1, 312
  %319 = vst [vmem:[%s318] sm:$0xff] %v316
  %s320 = scalar_lea.vmem %s0, 320
  %v321 = vld [vmem:[%s320] sm:$0xff]
  %322 = xla_tuple %v321
  %323 = xla_tuple %322
  %v324 = vxor.u32 %v321, 2147483648
  %325 = xla_tuple %v324
  %s326 = scalar_lea.vmem %s1, 320
  %327 = vst [vmem:[%s326] sm:$0xff] %v324
  %s328 = scalar_lea.vmem %s0, 328
  %v329 = vld [vmem:[%s328] sm:$0xff]
  %330 = xla_tuple %v329
  %331 = xla_tuple %330
  %v332 = vxor.u32 %v329, 2147483648
  %333 = xla_tuple %v332
  %s334 = scalar_lea.vmem %s1, 328
  %335 = vst [vmem:[%s334] sm:$0xff] %v332
  %s336 = scalar_lea.vmem %s0, 336
  %v337 = vld [vmem:[%s336] sm:$0xff]
  %338 = xla_tuple %v337
  %339 = xla_tuple %338
  %v340 = vxor.u32 %v337, 2147483648
  %341 = xla_tuple %v340
  %s342 = scalar_lea.vmem %s1, 336
  %343 = vst [vmem:[%s342] sm:$0xff] %v340
  %s344 = scalar_lea.vmem %s0, 344
  %v345 = vld [vmem:[%s344] sm:$0xff]
  %346 = xla_tuple %v345
  %347 = xla_tuple %346
  %v348 = vxor.u32 %v345, 2147483648
  %349 = xla_tuple %v348
  %s350 = scalar_lea.vmem %s1, 344
  %351 = vst [vmem:[%s350] sm:$0xff] %v348
  %s352 = scalar_lea.vmem %s0, 352
  %v353 = vld [vmem:[%s352] sm:$0xff]
  %354 = xla_tuple %v353
  %355 = xla_tuple %354
  %v356 = vxor.u32 %v353, 2147483648
  %357 = xla_tuple %v356
  %s358 = scalar_lea.vmem %s1, 352
  %359 = vst [vmem:[%s358] sm:$0xff] %v356
  %s360 = scalar_lea.vmem %s0, 360
  %v361 = vld [vmem:[%s360] sm:$0xff]
  %362 = xla_tuple %v361
  %363 = xla_tuple %362
  %v364 = vxor.u32 %v361, 2147483648
  %365 = xla_tuple %v364
  %s366 = scalar_lea.vmem %s1, 360
  %367 = vst [vmem:[%s366] sm:$0xff] %v364
  %s368 = scalar_lea.vmem %s0, 368
  %v369 = vld [vmem:[%s368] sm:$0xff]
  %370 = xla_tuple %v369
  %371 = xla_tuple %370
  %v372 = vxor.u32 %v369, 2147483648
  %373 = xla_tuple %v372
  %s374 = scalar_lea.vmem %s1, 368
  %375 = vst [vmem:[%s374] sm:$0xff] %v372
  %s376 = scalar_lea.vmem %s0, 376
  %v377 = vld [vmem:[%s376] sm:$0xff]
  %378 = xla_tuple %v377
  %379 = xla_tuple %378
  %v380 = vxor.u32 %v377, 2147483648
  %381 = xla_tuple %v380
  %s382 = scalar_lea.vmem %s1, 376
  %383 = vst [vmem:[%s382] sm:$0xff] %v380
  %s384 = scalar_lea.vmem %s0, 384
  %v385 = vld [vmem:[%s384] sm:$0xff]
  %386 = xla_tuple %v385
  %387 = xla_tuple %386
  %v388 = vxor.u32 %v385, 2147483648
  %389 = xla_tuple %v388
  %s390 = scalar_lea.vmem %s1, 384
  %391 = vst [vmem:[%s390] sm:$0xff] %v388
  %s392 = scalar_lea.vmem %s0, 392
  %v393 = vld [vmem:[%s392] sm:$0xff]
  %394 = xla_tuple %v393
  %395 = xla_tuple %394
  %v396 = vxor.u32 %v393, 2147483648
  %397 = xla_tuple %v396
  %s398 = scalar_lea.vmem %s1, 392
  %399 = vst [vmem:[%s398] sm:$0xff] %v396
  %s400 = scalar_lea.vmem %s0, 400
  %v401 = vld [vmem:[%s400] sm:$0xff]
  %402 = xla_tuple %v401
  %403 = xla_tuple %402
  %v404 = vxor.u32 %v401, 2147483648
  %405 = xla_tuple %v404
  %s406 = scalar_lea.vmem %s1, 400
  %407 = vst [vmem:[%s406] sm:$0xff] %v404
  %s408 = scalar_lea.vmem %s0, 408
  %v409 = vld [vmem:[%s408] sm:$0xff]
  %410 = xla_tuple %v409
  %411 = xla_tuple %410
  %v412 = vxor.u32 %v409, 2147483648
  %413 = xla_tuple %v412
  %s414 = scalar_lea.vmem %s1, 408
  %415 = vst [vmem:[%s414] sm:$0xff] %v412
  %s416 = scalar_lea.vmem %s0, 416
  %v417 = vld [vmem:[%s416] sm:$0xff]
  %418 = xla_tuple %v417
  %419 = xla_tuple %418
  %v420 = vxor.u32 %v417, 2147483648
  %421 = xla_tuple %v420
  %s422 = scalar_lea.vmem %s1, 416
  %423 = vst [vmem:[%s422] sm:$0xff] %v420
  %s424 = scalar_lea.vmem %s0, 424
  %v425 = vld [vmem:[%s424] sm:$0xff]
  %426 = xla_tuple %v425
  %427 = xla_tuple %426
  %v428 = vxor.u32 %v425, 2147483648
  %429 = xla_tuple %v428
  %s430 = scalar_lea.vmem %s1, 424
  %431 = vst [vmem:[%s430] sm:$0xff] %v428
  %s432 = scalar_lea.vmem %s0, 432
  %v433 = vld [vmem:[%s432] sm:$0xff]
  %434 = xla_tuple %v433
  %435 = xla_tuple %434
  %v436 = vxor.u32 %v433, 2147483648
  %437 = xla_tuple %v436
  %s438 = scalar_lea.vmem %s1, 432
  %439 = vst [vmem:[%s438] sm:$0xff] %v436
  %s440 = scalar_lea.vmem %s0, 440
  %v441 = vld [vmem:[%s440] sm:$0xff]
  %442 = xla_tuple %v441
  %443 = xla_tuple %442
  %v444 = vxor.u32 %v441, 2147483648
  %445 = xla_tuple %v444
  %s446 = scalar_lea.vmem %s1, 440
  %447 = vst [vmem:[%s446] sm:$0xff] %v444
  %s448 = scalar_lea.vmem %s0, 448
  %v449 = vld [vmem:[%s448] sm:$0xff]
  %450 = xla_tuple %v449
  %451 = xla_tuple %450
  %v452 = vxor.u32 %v449, 2147483648
  %453 = xla_tuple %v452
  %s454 = scalar_lea.vmem %s1, 448
  %455 = vst [vmem:[%s454] sm:$0xff] %v452
  %s456 = scalar_lea.vmem %s0, 456
  %v457 = vld [vmem:[%s456] sm:$0xff]
  %458 = xla_tuple %v457
  %459 = xla_tuple %458
  %v460 = vxor.u32 %v457, 2147483648
  %461 = xla_tuple %v460
  %s462 = scalar_lea.vmem %s1, 456
  %463 = vst [vmem:[%s462] sm:$0xff] %v460
  %s464 = scalar_lea.vmem %s0, 464
  %v465 = vld [vmem:[%s464] sm:$0xff]
  %466 = xla_tuple %v465
  %467 = xla_tuple %466
  %v468 = vxor.u32 %v465, 2147483648
  %469 = xla_tuple %v468
  %s470 = scalar_lea.vmem %s1, 464
  %471 = vst [vmem:[%s470] sm:$0xff] %v468
  %s472 = scalar_lea.vmem %s0, 472
  %v473 = vld [vmem:[%s472] sm:$0xff]
  %474 = xla_tuple %v473
  %475 = xla_tuple %474
  %v476 = vxor.u32 %v473, 2147483648
  %477 = xla_tuple %v476
  %s478 = scalar_lea.vmem %s1, 472
  %479 = vst [vmem:[%s478] sm:$0xff] %v476
  %s480 = scalar_lea.vmem %s0, 480
  %v481 = vld [vmem:[%s480] sm:$0xff]
  %482 = xla_tuple %v481
  %483 = xla_tuple %482
  %v484 = vxor.u32 %v481, 2147483648
  %485 = xla_tuple %v484
  %s486 = scalar_lea.vmem %s1, 480
  %487 = vst [vmem:[%s486] sm:$0xff] %v484
  %s488 = scalar_lea.vmem %s0, 488
  %v489 = vld [vmem:[%s488] sm:$0xff]
  %490 = xla_tuple %v489
  %491 = xla_tuple %490
  %v492 = vxor.u32 %v489, 2147483648
  %493 = xla_tuple %v492
  %s494 = scalar_lea.vmem %s1, 488
  %495 = vst [vmem:[%s494] sm:$0xff] %v492
  %s496 = scalar_lea.vmem %s0, 496
  %v497 = vld [vmem:[%s496] sm:$0xff]
  %498 = xla_tuple %v497
  %499 = xla_tuple %498
  %v500 = vxor.u32 %v497, 2147483648
  %501 = xla_tuple %v500
  %s502 = scalar_lea.vmem %s1, 496
  %503 = vst [vmem:[%s502] sm:$0xff] %v500
  %s504 = scalar_lea.vmem %s0, 504
  %v505 = vld [vmem:[%s504] sm:$0xff]
  %506 = xla_tuple %v505
  %507 = xla_tuple %506
  %v508 = vxor.u32 %v505, 2147483648
  %509 = xla_tuple %v508
  %s510 = scalar_lea.vmem %s1, 504
  %511 = vst [vmem:[%s510] sm:$0xff] %v508

// kernel: neg.11
$region0: #{neg.11}
  #allocation0 [shape = 's32[1]{0}', space=sflag, size = 0x4, scoped, tag = 'scoped memory for neg.11']
  %s0 = inlined_call_operand.vmem [shape: f32[2,256,128], index: 0, kind: input, shape index: {}]
  %s1 = inlined_call_operand.vmem [shape: f32[2,256,128], index: 1, kind: output, shape index: {}]
  %v2 = vld [vmem:[%s0] sm:$0xff]
  %3 = xla_tuple %v2
  %4 = xla_tuple %3
  %v5 = vxor.u32 %v2, 2147483648
  %6 = xla_tuple %v5
  %7 = vst [vmem:[%s1] sm:$0xff] %v5
  %s8 = scalar_lea.vmem %s0, 256
  %v9 = vld [vmem:[%s8] sm:$0xff]
  %10 = xla_tuple %v9
  %11 = xla_tuple %10
  %v12 = vxor.u32 %v9, 2147483648
  %13 = xla_tuple %v12
  %s14 = scalar_lea.vmem %s1, 256
  %15 = vst [vmem:[%s14] sm:$0xff] %v12
  %s16 = scalar_lea.vmem %s0, 8
  %v17 = vld [vmem:[%s16] sm:$0xff]
  %18 = xla_tuple %v17
  %19 = xla_tuple %18
  %v20 = vxor.u32 %v17, 2147483648
  %21 = xla_tuple %v20
  %s22 = scalar_lea.vmem %s1, 8
  %23 = vst [vmem:[%s22] sm:$0xff] %v20
  %s24 = scalar_lea.vmem %s0, 264
  %v25 = vld [vmem:[%s24] sm:$0xff]
  %26 = xla_tuple %v25
  %27 = xla_tuple %26
  %v28 = vxor.u32 %v25, 2147483648
  %29 = xla_tuple %v28
  %s30 = scalar_lea.vmem %s1, 264
  %31 = vst [vmem:[%s30] sm:$0xff] %v28
  %s32 = scalar_lea.vmem %s0, 16
  %v33 = vld [vmem:[%s32] sm:$0xff]
  %34 = xla_tuple %v33
  %35 = xla_tuple %34
  %v36 = vxor.u32 %v33, 2147483648
  %37 = xla_tuple %v36
  %s38 = scalar_lea.vmem %s1, 16
  %39 = vst [vmem:[%s38] sm:$0xff] %v36
  %s40 = scalar_lea.vmem %s0, 272
  %v41 = vld [vmem:[%s40] sm:$0xff]
  %42 = xla_tuple %v41
  %43 = xla_tuple %42
  %v44 = vxor.u32 %v41, 2147483648
  %45 = xla_tuple %v44
  %s46 = scalar_lea.vmem %s1, 272
  %47 = vst [vmem:[%s46] sm:$0xff] %v44
  %s48 = scalar_lea.vmem %s0, 24
  %v49 = vld [vmem:[%s48] sm:$0xff]
  %50 = xla_tuple %v49
  %51 = xla_tuple %50
  %v52 = vxor.u32 %v49, 2147483648
  %53 = xla_tuple %v52
  %s54 = scalar_lea.vmem %s1, 24
  %55 = vst [vmem:[%s54] sm:$0xff] %v52
  %s56 = scalar_lea.vmem %s0, 280
  %v57 = vld [vmem:[%s56] sm:$0xff]
  %58 = xla_tuple %v57
  %59 = xla_tuple %58
  %v60 = vxor.u32 %v57, 2147483648
  %61 = xla_tuple %v60
  %s62 = scalar_lea.vmem %s1, 280
  %63 = vst [vmem:[%s62] sm:$0xff] %v60
  %s64 = scalar_lea.vmem %s0, 32
  %v65 = vld [vmem:[%s64] sm:$0xff]
  %66 = xla_tuple %v65
  %67 = xla_tuple %66
  %v68 = vxor.u32 %v65, 2147483648
  %69 = xla_tuple %v68
  %s70 = scalar_lea.vmem %s1, 32
  %71 = vst [vmem:[%s70] sm:$0xff] %v68
  %s72 = scalar_lea.vmem %s0, 288
  %v73 = vld [vmem:[%s72] sm:$0xff]
  %74 = xla_tuple %v73
  %75 = xla_tuple %74
  %v76 = vxor.u32 %v73, 2147483648
  %77 = xla_tuple %v76
  %s78 = scalar_lea.vmem %s1, 288
  %79 = vst [vmem:[%s78] sm:$0xff] %v76
  %s80 = scalar_lea.vmem %s0, 40
  %v81 = vld [vmem:[%s80] sm:$0xff]
  %82 = xla_tuple %v81
  %83 = xla_tuple %82
  %v84 = vxor.u32 %v81, 2147483648
  %85 = xla_tuple %v84
  %s86 = scalar_lea.vmem %s1, 40
  %87 = vst [vmem:[%s86] sm:$0xff] %v84
  %s88 = scalar_lea.vmem %s0, 296
  %v89 = vld [vmem:[%s88] sm:$0xff]
  %90 = xla_tuple %v89
  %91 = xla_tuple %90
  %v92 = vxor.u32 %v89, 2147483648
  %93 = xla_tuple %v92
  %s94 = scalar_lea.vmem %s1, 296
  %95 = vst [vmem:[%s94] sm:$0xff] %v92
  %s96 = scalar_lea.vmem %s0, 48
  %v97 = vld [vmem:[%s96] sm:$0xff]
  %98 = xla_tuple %v97
  %99 = xla_tuple %98
  %v100 = vxor.u32 %v97, 2147483648
  %101 = xla_tuple %v100
  %s102 = scalar_lea.vmem %s1, 48
  %103 = vst [vmem:[%s102] sm:$0xff] %v100
  %s104 = scalar_lea.vmem %s0, 304
  %v105 = vld [vmem:[%s104] sm:$0xff]
  %106 = xla_tuple %v105
  %107 = xla_tuple %106
  %v108 = vxor.u32 %v105, 2147483648
  %109 = xla_tuple %v108
  %s110 = scalar_lea.vmem %s1, 304
  %111 = vst [vmem:[%s110] sm:$0xff] %v108
  %s112 = scalar_lea.vmem %s0, 56
  %v113 = vld [vmem:[%s112] sm:$0xff]
  %114 = xla_tuple %v113
  %115 = xla_tuple %114
  %v116 = vxor.u32 %v113, 2147483648
  %117 = xla_tuple %v116
  %s118 = scalar_lea.vmem %s1, 56
  %119 = vst [vmem:[%s118] sm:$0xff] %v116
  %s120 = scalar_lea.vmem %s0, 312
  %v121 = vld [vmem:[%s120] sm:$0xff]
  %122 = xla_tuple %v121
  %123 = xla_tuple %122
  %v124 = vxor.u32 %v121, 2147483648
  %125 = xla_tuple %v124
  %s126 = scalar_lea.vmem %s1, 312
  %127 = vst [vmem:[%s126] sm:$0xff] %v124
  %s128 = scalar_lea.vmem %s0, 64
  %v129 = vld [vmem:[%s128] sm:$0xff]
  %130 = xla_tuple %v129
  %131 = xla_tuple %130
  %v132 = vxor.u32 %v129, 2147483648
  %133 = xla_tuple %v132
  %s134 = scalar_lea.vmem %s1, 64
  %135 = vst [vmem:[%s134] sm:$0xff] %v132
  %s136 = scalar_lea.vmem %s0, 320
  %v137 = vld [vmem:[%s136] sm:$0xff]
  %138 = xla_tuple %v137
  %139 = xla_tuple %138
  %v140 = vxor.u32 %v137, 2147483648
  %141 = xla_tuple %v140
  %s142 = scalar_lea.vmem %s1, 320
  %143 = vst [vmem:[%s142] sm:$0xff] %v140
  %s144 = scalar_lea.vmem %s0, 72
  %v145 = vld [vmem:[%s144] sm:$0xff]
  %146 = xla_tuple %v145
  %147 = xla_tuple %146
  %v148 = vxor.u32 %v145, 2147483648
  %149 = xla_tuple %v148
  %s150 = scalar_lea.vmem %s1, 72
  %151 = vst [vmem:[%s150] sm:$0xff] %v148
  %s152 = scalar_lea.vmem %s0, 328
  %v153 = vld [vmem:[%s152] sm:$0xff]
  %154 = xla_tuple %v153
  %155 = xla_tuple %154
  %v156 = vxor.u32 %v153, 2147483648
  %157 = xla_tuple %v156
  %s158 = scalar_lea.vmem %s1, 328
  %159 = vst [vmem:[%s158] sm:$0xff] %v156
  %s160 = scalar_lea.vmem %s0, 80
  %v161 = vld [vmem:[%s160] sm:$0xff]
  %162 = xla_tuple %v161
  %163 = xla_tuple %162
  %v164 = vxor.u32 %v161, 2147483648
  %165 = xla_tuple %v164
  %s166 = scalar_lea.vmem %s1, 80
  %167 = vst [vmem:[%s166] sm:$0xff] %v164
  %s168 = scalar_lea.vmem %s0, 336
  %v169 = vld [vmem:[%s168] sm:$0xff]
  %170 = xla_tuple %v169
  %171 = xla_tuple %170
  %v172 = vxor.u32 %v169, 2147483648
  %173 = xla_tuple %v172
  %s174 = scalar_lea.vmem %s1, 336
  %175 = vst [vmem:[%s174] sm:$0xff] %v172
  %s176 = scalar_lea.vmem %s0, 88
  %v177 = vld [vmem:[%s176] sm:$0xff]
  %178 = xla_tuple %v177
  %179 = xla_tuple %178
  %v180 = vxor.u32 %v177, 2147483648
  %181 = xla_tuple %v180
  %s182 = scalar_lea.vmem %s1, 88
  %183 = vst [vmem:[%s182] sm:$0xff] %v180
  %s184 = scalar_lea.vmem %s0, 344
  %v185 = vld [vmem:[%s184] sm:$0xff]
  %186 = xla_tuple %v185
  %187 = xla_tuple %186
  %v188 = vxor.u32 %v185, 2147483648
  %189 = xla_tuple %v188
  %s190 = scalar_lea.vmem %s1, 344
  %191 = vst [vmem:[%s190] sm:$0xff] %v188
  %s192 = scalar_lea.vmem %s0, 96
  %v193 = vld [vmem:[%s192] sm:$0xff]
  %194 = xla_tuple %v193
  %195 = xla_tuple %194
  %v196 = vxor.u32 %v193, 2147483648
  %197 = xla_tuple %v196
  %s198 = scalar_lea.vmem %s1, 96
  %199 = vst [vmem:[%s198] sm:$0xff] %v196
  %s200 = scalar_lea.vmem %s0, 352
  %v201 = vld [vmem:[%s200] sm:$0xff]
  %202 = xla_tuple %v201
  %203 = xla_tuple %202
  %v204 = vxor.u32 %v201, 2147483648
  %205 = xla_tuple %v204
  %s206 = scalar_lea.vmem %s1, 352
  %207 = vst [vmem:[%s206] sm:$0xff] %v204
  %s208 = scalar_lea.vmem %s0, 104
  %v209 = vld [vmem:[%s208] sm:$0xff]
  %210 = xla_tuple %v209
  %211 = xla_tuple %210
  %v212 = vxor.u32 %v209, 2147483648
  %213 = xla_tuple %v212
  %s214 = scalar_lea.vmem %s1, 104
  %215 = vst [vmem:[%s214] sm:$0xff] %v212
  %s216 = scalar_lea.vmem %s0, 360
  %v217 = vld [vmem:[%s216] sm:$0xff]
  %218 = xla_tuple %v217
  %219 = xla_tuple %218
  %v220 = vxor.u32 %v217, 2147483648
  %221 = xla_tuple %v220
  %s222 = scalar_lea.vmem %s1, 360
  %223 = vst [vmem:[%s222] sm:$0xff] %v220
  %s224 = scalar_lea.vmem %s0, 112
  %v225 = vld [vmem:[%s224] sm:$0xff]
  %226 = xla_tuple %v225
  %227 = xla_tuple %226
  %v228 = vxor.u32 %v225, 2147483648
  %229 = xla_tuple %v228
  %s230 = scalar_lea.vmem %s1, 112
  %231 = vst [vmem:[%s230] sm:$0xff] %v228
  %s232 = scalar_lea.vmem %s0, 368
  %v233 = vld [vmem:[%s232] sm:$0xff]
  %234 = xla_tuple %v233
  %235 = xla_tuple %234
  %v236 = vxor.u32 %v233, 2147483648
  %237 = xla_tuple %v236
  %s238 = scalar_lea.vmem %s1, 368
  %239 = vst [vmem:[%s238] sm:$0xff] %v236
  %s240 = scalar_lea.vmem %s0, 120
  %v241 = vld [vmem:[%s240] sm:$0xff]
  %242 = xla_tuple %v241
  %243 = xla_tuple %242
  %v244 = vxor.u32 %v241, 2147483648
  %245 = xla_tuple %v244
  %s246 = scalar_lea.vmem %s1, 120
  %247 = vst [vmem:[%s246] sm:$0xff] %v244
  %s248 = scalar_lea.vmem %s0, 376
  %v249 = vld [vmem:[%s248] sm:$0xff]
  %250 = xla_tuple %v249
  %251 = xla_tuple %250
  %v252 = vxor.u32 %v249, 2147483648
  %253 = xla_tuple %v252
  %s254 = scalar_lea.vmem %s1, 376
  %255 = vst [vmem:[%s254] sm:$0xff] %v252
  %s256 = scalar_lea.vmem %s0, 128
  %v257 = vld [vmem:[%s256] sm:$0xff]
  %258 = xla_tuple %v257
  %259 = xla_tuple %258
  %v260 = vxor.u32 %v257, 2147483648
  %261 = xla_tuple %v260
  %s262 = scalar_lea.vmem %s1, 128
  %263 = vst [vmem:[%s262] sm:$0xff] %v260
  %s264 = scalar_lea.vmem %s0, 384
  %v265 = vld [vmem:[%s264] sm:$0xff]
  %266 = xla_tuple %v265
  %267 = xla_tuple %266
  %v268 = vxor.u32 %v265, 2147483648
  %269 = xla_tuple %v268
  %s270 = scalar_lea.vmem %s1, 384
  %271 = vst [vmem:[%s270] sm:$0xff] %v268
  %s272 = scalar_lea.vmem %s0, 136
  %v273 = vld [vmem:[%s272] sm:$0xff]
  %274 = xla_tuple %v273
  %275 = xla_tuple %274
  %v276 = vxor.u32 %v273, 2147483648
  %277 = xla_tuple %v276
  %s278 = scalar_lea.vmem %s1, 136
  %279 = vst [vmem:[%s278] sm:$0xff] %v276
  %s280 = scalar_lea.vmem %s0, 392
  %v281 = vld [vmem:[%s280] sm:$0xff]
  %282 = xla_tuple %v281
  %283 = xla_tuple %282
  %v284 = vxor.u32 %v281, 2147483648
  %285 = xla_tuple %v284
  %s286 = scalar_lea.vmem %s1, 392
  %287 = vst [vmem:[%s286] sm:$0xff] %v284
  %s288 = scalar_lea.vmem %s0, 144
  %v289 = vld [vmem:[%s288] sm:$0xff]
  %290 = xla_tuple %v289
  %291 = xla_tuple %290
  %v292 = vxor.u32 %v289, 2147483648
  %293 = xla_tuple %v292
  %s294 = scalar_lea.vmem %s1, 144
  %295 = vst [vmem:[%s294] sm:$0xff] %v292
  %s296 = scalar_lea.vmem %s0, 400
  %v297 = vld [vmem:[%s296] sm:$0xff]
  %298 = xla_tuple %v297
  %299 = xla_tuple %298
  %v300 = vxor.u32 %v297, 2147483648
  %301 = xla_tuple %v300
  %s302 = scalar_lea.vmem %s1, 400
  %303 = vst [vmem:[%s302] sm:$0xff] %v300
  %s304 = scalar_lea.vmem %s0, 152
  %v305 = vld [vmem:[%s304] sm:$0xff]
  %306 = xla_tuple %v305
  %307 = xla_tuple %306
  %v308 = vxor.u32 %v305, 2147483648
  %309 = xla_tuple %v308
  %s310 = scalar_lea.vmem %s1, 152
  %311 = vst [vmem:[%s310] sm:$0xff] %v308
  %s312 = scalar_lea.vmem %s0, 408
  %v313 = vld [vmem:[%s312] sm:$0xff]
  %314 = xla_tuple %v313
  %315 = xla_tuple %314
  %v316 = vxor.u32 %v313, 2147483648
  %317 = xla_tuple %v316
  %s318 = scalar_lea.vmem %s1, 408
  %319 = vst [vmem:[%s318] sm:$0xff] %v316
  %s320 = scalar_lea.vmem %s0, 160
  %v321 = vld [vmem:[%s320] sm:$0xff]
  %322 = xla_tuple %v321
  %323 = xla_tuple %322
  %v324 = vxor.u32 %v321, 2147483648
  %325 = xla_tuple %v324
  %s326 = scalar_lea.vmem %s1, 160
  %327 = vst [vmem:[%s326] sm:$0xff] %v324
  %s328 = scalar_lea.vmem %s0, 416
  %v329 = vld [vmem:[%s328] sm:$0xff]
  %330 = xla_tuple %v329
  %331 = xla_tuple %330
  %v332 = vxor.u32 %v329, 2147483648
  %333 = xla_tuple %v332
  %s334 = scalar_lea.vmem %s1, 416
  %335 = vst [vmem:[%s334] sm:$0xff] %v332
  %s336 = scalar_lea.vmem %s0, 168
  %v337 = vld [vmem:[%s336] sm:$0xff]
  %338 = xla_tuple %v337
  %339 = xla_tuple %338
  %v340 = vxor.u32 %v337, 2147483648
  %341 = xla_tuple %v340
  %s342 = scalar_lea.vmem %s1, 168
  %343 = vst [vmem:[%s342] sm:$0xff] %v340
  %s344 = scalar_lea.vmem %s0, 424
  %v345 = vld [vmem:[%s344] sm:$0xff]
  %346 = xla_tuple %v345
  %347 = xla_tuple %346
  %v348 = vxor.u32 %v345, 2147483648
  %349 = xla_tuple %v348
  %s350 = scalar_lea.vmem %s1, 424
  %351 = vst [vmem:[%s350] sm:$0xff] %v348
  %s352 = scalar_lea.vmem %s0, 176
  %v353 = vld [vmem:[%s352] sm:$0xff]
  %354 = xla_tuple %v353
  %355 = xla_tuple %354
  %v356 = vxor.u32 %v353, 2147483648
  %357 = xla_tuple %v356
  %s358 = scalar_lea.vmem %s1, 176
  %359 = vst [vmem:[%s358] sm:$0xff] %v356
  %s360 = scalar_lea.vmem %s0, 432
  %v361 = vld [vmem:[%s360] sm:$0xff]
  %362 = xla_tuple %v361
  %363 = xla_tuple %362
  %v364 = vxor.u32 %v361, 2147483648
  %365 = xla_tuple %v364
  %s366 = scalar_lea.vmem %s1, 432
  %367 = vst [vmem:[%s366] sm:$0xff] %v364
  %s368 = scalar_lea.vmem %s0, 184
  %v369 = vld [vmem:[%s368] sm:$0xff]
  %370 = xla_tuple %v369
  %371 = xla_tuple %370
  %v372 = vxor.u32 %v369, 2147483648
  %373 = xla_tuple %v372
  %s374 = scalar_lea.vmem %s1, 184
  %375 = vst [vmem:[%s374] sm:$0xff] %v372
  %s376 = scalar_lea.vmem %s0, 440
  %v377 = vld [vmem:[%s376] sm:$0xff]
  %378 = xla_tuple %v377
  %379 = xla_tuple %378
  %v380 = vxor.u32 %v377, 2147483648
  %381 = xla_tuple %v380
  %s382 = scalar_lea.vmem %s1, 440
  %383 = vst [vmem:[%s382] sm:$0xff] %v380
  %s384 = scalar_lea.vmem %s0, 192
  %v385 = vld [vmem:[%s384] sm:$0xff]
  %386 = xla_tuple %v385
  %387 = xla_tuple %386
  %v388 = vxor.u32 %v385, 2147483648
  %389 = xla_tuple %v388
  %s390 = scalar_lea.vmem %s1, 192
  %391 = vst [vmem:[%s390] sm:$0xff] %v388
  %s392 = scalar_lea.vmem %s0, 448
  %v393 = vld [vmem:[%s392] sm:$0xff]
  %394 = xla_tuple %v393
  %395 = xla_tuple %394
  %v396 = vxor.u32 %v393, 2147483648
  %397 = xla_tuple %v396
  %s398 = scalar_lea.vmem %s1, 448
  %399 = vst [vmem:[%s398] sm:$0xff] %v396
  %s400 = scalar_lea.vmem %s0, 200
  %v401 = vld [vmem:[%s400] sm:$0xff]
  %402 = xla_tuple %v401
  %403 = xla_tuple %402
  %v404 = vxor.u32 %v401, 2147483648
  %405 = xla_tuple %v404
  %s406 = scalar_lea.vmem %s1, 200
  %407 = vst [vmem:[%s406] sm:$0xff] %v404
  %s408 = scalar_lea.vmem %s0, 456
  %v409 = vld [vmem:[%s408] sm:$0xff]
  %410 = xla_tuple %v409
  %411 = xla_tuple %410
  %v412 = vxor.u32 %v409, 2147483648
  %413 = xla_tuple %v412
  %s414 = scalar_lea.vmem %s1, 456
  %415 = vst [vmem:[%s414] sm:$0xff] %v412
  %s416 = scalar_lea.vmem %s0, 208
  %v417 = vld [vmem:[%s416] sm:$0xff]
  %418 = xla_tuple %v417
  %419 = xla_tuple %418
  %v420 = vxor.u32 %v417, 2147483648
  %421 = xla_tuple %v420
  %s422 = scalar_lea.vmem %s1, 208
  %423 = vst [vmem:[%s422] sm:$0xff] %v420
  %s424 = scalar_lea.vmem %s0, 464
  %v425 = vld [vmem:[%s424] sm:$0xff]
  %426 = xla_tuple %v425
  %427 = xla_tuple %426
  %v428 = vxor.u32 %v425, 2147483648
  %429 = xla_tuple %v428
  %s430 = scalar_lea.vmem %s1, 464
  %431 = vst [vmem:[%s430] sm:$0xff] %v428
  %s432 = scalar_lea.vmem %s0, 216
  %v433 = vld [vmem:[%s432] sm:$0xff]
  %434 = xla_tuple %v433
  %435 = xla_tuple %434
  %v436 = vxor.u32 %v433, 2147483648
  %437 = xla_tuple %v436
  %s438 = scalar_lea.vmem %s1, 216
  %439 = vst [vmem:[%s438] sm:$0xff] %v436
  %s440 = scalar_lea.vmem %s0, 472
  %v441 = vld [vmem:[%s440] sm:$0xff]
  %442 = xla_tuple %v441
  %443 = xla_tuple %442
  %v444 = vxor.u32 %v441, 2147483648
  %445 = xla_tuple %v444
  %s446 = scalar_lea.vmem %s1, 472
  %447 = vst [vmem:[%s446] sm:$0xff] %v444
  %s448 = scalar_lea.vmem %s0, 224
  %v449 = vld [vmem:[%s448] sm:$0xff]
  %450 = xla_tuple %v449
  %451 = xla_tuple %450
  %v452 = vxor.u32 %v449, 2147483648
  %453 = xla_tuple %v452
  %s454 = scalar_lea.vmem %s1, 224
  %455 = vst [vmem:[%s454] sm:$0xff] %v452
  %s456 = scalar_lea.vmem %s0, 480
  %v457 = vld [vmem:[%s456] sm:$0xff]
  %458 = xla_tuple %v457
  %459 = xla_tuple %458
  %v460 = vxor.u32 %v457, 2147483648
  %461 = xla_tuple %v460
  %s462 = scalar_lea.vmem %s1, 480
  %463 = vst [vmem:[%s462] sm:$0xff] %v460
  %s464 = scalar_lea.vmem %s0, 232
  %v465 = vld [vmem:[%s464] sm:$0xff]
  %466 = xla_tuple %v465
  %467 = xla_tuple %466
  %v468 = vxor.u32 %v465, 2147483648
  %469 = xla_tuple %v468
  %s470 = scalar_lea.vmem %s1, 232
  %471 = vst [vmem:[%s470] sm:$0xff] %v468
  %s472 = scalar_lea.vmem %s0, 488
  %v473 = vld [vmem:[%s472] sm:$0xff]
  %474 = xla_tuple %v473
  %475 = xla_tuple %474
  %v476 = vxor.u32 %v473, 2147483648
  %477 = xla_tuple %v476
  %s478 = scalar_lea.vmem %s1, 488
  %479 = vst [vmem:[%s478] sm:$0xff] %v476
  %s480 = scalar_lea.vmem %s0, 240
  %v481 = vld [vmem:[%s480] sm:$0xff]
  %482 = xla_tuple %v481
  %483 = xla_tuple %482
  %v484 = vxor.u32 %v481, 2147483648
  %485 = xla_tuple %v484
  %s486 = scalar_lea.vmem %s1, 240
  %487 = vst [vmem:[%s486] sm:$0xff] %v484
  %s488 = scalar_lea.vmem %s0, 496
  %v489 = vld [vmem:[%s488] sm:$0xff]
  %490 = xla_tuple %v489
  %491 = xla_tuple %490
  %v492 = vxor.u32 %v489, 2147483648
  %493 = xla_tuple %v492
  %s494 = scalar_lea.vmem %s1, 496
  %495 = vst [vmem:[%s494] sm:$0xff] %v492
  %s496 = scalar_lea.vmem %s0, 248
  %v497 = vld [vmem:[%s496] sm:$0xff]
  %498 = xla_tuple %v497
  %499 = xla_tuple %498
  %v500 = vxor.u32 %v497, 2147483648
  %501 = xla_tuple %v500
  %s502 = scalar_lea.vmem %s1, 248
  %503 = vst [vmem:[%s502] sm:$0xff] %v500
  %s504 = scalar_lea.vmem %s0, 504
  %v505 = vld [vmem:[%s504] sm:$0xff]
  %506 = xla_tuple %v505
  %507 = xla_tuple %506
  %v508 = vxor.u32 %v505, 2147483648
  %509 = xla_tuple %v508
  %s510 = scalar_lea.vmem %s1, 504
  %511 = vst [vmem:[%s510] sm:$0xff] %v508

// kernel: encoder_image_full_forward.3
$region0: #{encoder_image_full_forward.3}
  #allocation0 [shape = 'u32[]', space=smem, size = 0x4, offset = 0x4, fixed_abs, tag = 'smem constant byte address 0x4 - core index']
  #allocation1 [shape = 'u32[72,128]{1,0:T(1,128)}', space=vmem, size = 0x9000, scoped, tag = 'internal scratch']
  %s0 = inlined_call_operand.vmem [shape: f32[256,1], index: 0, kind: input, shape index: {}]
  %s1 = inlined_call_operand.vmem [shape: f32[2,256,128], index: 1, kind: input, shape index: {}]
  %s2 = inlined_call_operand.hbm [shape: f32[2,128], index: 2, kind: output, shape index: {}]
  %s3 = sld [smem:[#allocation0]]
  $region18: #{encoder_image_full_forward.3} parent=0
    _
  %s5 = ssub.s32 1, %s3
  %s6 = scalar_select 0, %s5, %s3
  $region1: #{encoder_image_full_forward.3} parent=0
    #allocation2 [shape = 'u8[1024]{0}', space=vmem, size = 0x400, scoped, tag = 'output window, operand 0, single buffered']
    #allocation3 [shape = 's32[1]{0}', space=sflag, size = 0x4, scoped, tag = 'scoped memory for encoder_image_full_forward.3']
    %7 = vsyncpa [#allocation3], 0
    // Predicated region
    $region2: #{encoder_image_full_forward.3} parent=1 // pred_check
      _
    $region3: #{encoder_image_full_forward.3} parent=1 // pred_check_branch
      %9 = sbr.rel (0) target = $region5
    $region4: #{encoder_image_full_forward.3} parent=1 // pred_region
      _
    $region5: #{encoder_image_full_forward.3} parent=1 // pred_fallthru
      _
    // Predicated region
    $region6: #{encoder_image_full_forward.3} parent=1 // pred_check
      _
    $region7: #{encoder_image_full_forward.3} parent=1 // pred_check_branch
      %11 = sbr.rel (0) target = $region9
    $region8: #{encoder_image_full_forward.3} parent=1 // pred_region
      _
    $region9: #{encoder_image_full_forward.3} parent=1 // pred_fallthru
      _
    %v12 = vld [vmem:[%s1] sm:$0xff]
    %v13 = vld [vmem:[%s1 + $0x8] sm:$0xff]
    %v14 = vld [vmem:[%s1 + $0x10] sm:$0xff]
    %v15 = vld [vmem:[%s1 + $0x18] sm:$0xff]
    %v16 = vld [vmem:[%s1 + $0x20] sm:$0xff]
    %v17 = vld [vmem:[%s1 + $0x28] sm:$0xff]
    %v18 = vld [vmem:[%s1 + $0x30] sm:$0xff]
    %v19 = vld [vmem:[%s1 + $0x38] sm:$0xff]
    %v20 = vld [vmem:[%s1 + $0x40] sm:$0xff]
    %v21 = vld [vmem:[%s1 + $0x48] sm:$0xff]
    %v22 = vld [vmem:[%s1 + $0x50] sm:$0xff]
    %v23 = vld [vmem:[%s1 + $0x58] sm:$0xff]
    %v24 = vld [vmem:[%s1 + $0x60] sm:$0xff]
    %v25 = vld [vmem:[%s1 + $0x68] sm:$0xff]
    %v26 = vld [vmem:[%s1 + $0x70] sm:$0xff]
    %v27 = vld [vmem:[%s1 + $0x78] sm:$0xff]
    %v28 = vld [vmem:[%s1 + $0x80] sm:$0xff]
    %v29 = vld [vmem:[%s1 + $0x88] sm:$0xff]
    %v30 = vld [vmem:[%s1 + $0x90] sm:$0xff]
    %v31 = vld [vmem:[%s1 + $0x98] sm:$0xff]
    %v32 = vld [vmem:[%s1 + $0xa0] sm:$0xff]
    %v33 = vld [vmem:[%s1 + $0xa8] sm:$0xff]
    %v34 = vld [vmem:[%s1 + $0xb0] sm:$0xff]
    %v35 = vld [vmem:[%s1 + $0xb8] sm:$0xff]
    %v36 = vld [vmem:[%s1 + $0xc0] sm:$0xff]
    %v37 = vld [vmem:[%s1 + $0xc8] sm:$0xff]
    %v38 = vld [vmem:[%s1 + $0xd0] sm:$0xff]
    %v39 = vld [vmem:[%s1 + $0xd8] sm:$0xff]
    %v40 = vld [vmem:[%s1 + $0xe0] sm:$0xff]
    %v41 = vld [vmem:[%s1 + $0xe8] sm:$0xff]
    %v42 = vld [vmem:[%s1 + $0xf0] sm:$0xff]
    %v43 = vld [vmem:[%s1 + $0xf8] sm:$0xff]
    %v44 = vld [vmem:[%s1 + $0x100] sm:$0xff]
    %v45 = vld [vmem:[%s1 + $0x108] sm:$0xff]
    %v46 = vld [vmem:[%s1 + $0x110] sm:$0xff]
    %v47 = vld [vmem:[%s1 + $0x118] sm:$0xff]
    %v48 = vld [vmem:[%s1 + $0x120] sm:$0xff]
    %v49 = vld [vmem:[%s1 + $0x128] sm:$0xff]
    %v50 = vld [vmem:[%s1 + $0x130] sm:$0xff]
    %v51 = vld [vmem:[%s1 + $0x138] sm:$0xff]
    %v52 = vld [vmem:[%s1 + $0x140] sm:$0xff]
    %v53 = vld [vmem:[%s1 + $0x148] sm:$0xff]
    %v54 = vld [vmem:[%s1 + $0x150] sm:$0xff]
    %v55 = vld [vmem:[%s1 + $0x158] sm:$0xff]
    %v56 = vld [vmem:[%s1 + $0x160] sm:$0xff]
    %v57 = vld [vmem:[%s1 + $0x168] sm:$0xff]
    %v58 = vld [vmem:[%s1 + $0x170] sm:$0xff]
    %v59 = vld [vmem:[%s1 + $0x178] sm:$0xff]
    %v60 = vld [vmem:[%s1 + $0x180] sm:$0xff]
    %v61 = vld [vmem:[%s1 + $0x188] sm:$0xff]
    %v62 = vld [vmem:[%s1 + $0x190] sm:$0xff]
    %v63 = vld [vmem:[%s1 + $0x198] sm:$0xff]
    %v64 = vld [vmem:[%s1 + $0x1a0] sm:$0xff]
    %v65 = vld [vmem:[%s1 + $0x1a8] sm:$0xff]
    %v66 = vld [vmem:[%s1 + $0x1b0] sm:$0xff]
    %v67 = vld [vmem:[%s1 + $0x1b8] sm:$0xff]
    %v68 = vld [vmem:[%s1 + $0x1c0] sm:$0xff]
    %v69 = vld [vmem:[%s1 + $0x1c8] sm:$0xff]
    %v70 = vld [vmem:[%s1 + $0x1d0] sm:$0xff]
    %v71 = vld [vmem:[%s1 + $0x1d8] sm:$0xff]
    %v72 = vld [vmem:[%s1 + $0x1e0] sm:$0xff]
    %v73 = vld [vmem:[%s1 + $0x1e8] sm:$0xff]
    %v74 = vld [vmem:[%s1 + $0x1f0] sm:$0xff]
    %v75 = vld [vmem:[%s1 + $0x1f8] sm:$0xff]
    %v76 = vld [vmem:[%s0] sm:$0xff]
    %v77 = vld [vmem:[%s0 + $0x8] sm:$0xff]
    %v78 = vld [vmem:[%s0 + $0x10] sm:$0xff]
    %v79 = vld [vmem:[%s0 + $0x18] sm:$0xff]
    %v80 = vld [vmem:[%s0 + $0x20] sm:$0xff]
    %v81 = vld [vmem:[%s0 + $0x28] sm:$0xff]
    %v82 = vld [vmem:[%s0 + $0x30] sm:$0xff]
    %v83 = vld [vmem:[%s0 + $0x38] sm:$0xff]
    %v84 = vld [vmem:[%s0 + $0x40] sm:$0xff]
    %v85 = vld [vmem:[%s0 + $0x48] sm:$0xff]
    %v86 = vld [vmem:[%s0 + $0x50] sm:$0xff]
    %v87 = vld [vmem:[%s0 + $0x58] sm:$0xff]
    %v88 = vld [vmem:[%s0 + $0x60] sm:$0xff]
    %v89 = vld [vmem:[%s0 + $0x68] sm:$0xff]
    %v90 = vld [vmem:[%s0 + $0x70] sm:$0xff]
    %v91 = vld [vmem:[%s0 + $0x78] sm:$0xff]
    %v92 = vld [vmem:[%s0 + $0x80] sm:$0xff]
    %v93 = vld [vmem:[%s0 + $0x88] sm:$0xff]
    %v94 = vld [vmem:[%s0 + $0x90] sm:$0xff]
    %v95 = vld [vmem:[%s0 + $0x98] sm:$0xff]
    %v96 = vld [vmem:[%s0 + $0xa0] sm:$0xff]
    %v97 = vld [vmem:[%s0 + $0xa8] sm:$0xff]
    %v98 = vld [vmem:[%s0 + $0xb0] sm:$0xff]
    %v99 = vld [vmem:[%s0 + $0xb8] sm:$0xff]
    %v100 = vld [vmem:[%s0 + $0xc0] sm:$0xff]
    %v101 = vld [vmem:[%s0 + $0xc8] sm:$0xff]
    %v102 = vld [vmem:[%s0 + $0xd0] sm:$0xff]
    %v103 = vld [vmem:[%s0 + $0xd8] sm:$0xff]
    %v104 = vld [vmem:[%s0 + $0xe0] sm:$0xff]
    %v105 = vld [vmem:[%s0 + $0xe8] sm:$0xff]
    %v106 = vld [vmem:[%s0 + $0xf0] sm:$0xff]
    %v107 = vld [vmem:[%s0 + $0xf8] sm:$0xff]
    %109 = vset.pattern.permute.xlu0 0
    %110 = vperm.xlu0 %109, %v76
    %v111 = vpop.permute.xlu0 %110
    %114 = vset.pattern.permute.xlu0 0
    %115 = vperm.xlu0 %114, %v77
    %v116 = vpop.permute.xlu0 %115
    %119 = vset.pattern.permute.xlu0 0
    %120 = vperm.xlu0 %119, %v78
    %v121 = vpop.permute.xlu0 %120
    %124 = vset.pattern.permute.xlu0 0
    %125 = vperm.xlu0 %124, %v79
    %v126 = vpop.permute.xlu0 %125
    %129 = vset.pattern.permute.xlu0 0
    %130 = vperm.xlu0 %129, %v80
    %v131 = vpop.permute.xlu0 %130
    %134 = vset.pattern.permute.xlu0 0
    %135 = vperm.xlu0 %134, %v81
    %v136 = vpop.permute.xlu0 %135
    %139 = vset.pattern.permute.xlu0 0
    %140 = vperm.xlu0 %139, %v82
    %v141 = vpop.permute.xlu0 %140
    %144 = vset.pattern.permute.xlu0 0
    %145 = vperm.xlu0 %144, %v83
    %v146 = vpop.permute.xlu0 %145
    %149 = vset.pattern.permute.xlu0 0
    %150 = vperm.xlu0 %149, %v84
    %v151 = vpop.permute.xlu0 %150
    %154 = vset.pattern.permute.xlu0 0
    %155 = vperm.xlu0 %154, %v85
    %v156 = vpop.permute.xlu0 %155
    %159 = vset.pattern.permute.xlu0 0
    %160 = vperm.xlu0 %159, %v86
    %v161 = vpop.permute.xlu0 %160
    %164 = vset.pattern.permute.xlu0 0
    %165 = vperm.xlu0 %164, %v87
    %v166 = vpop.permute.xlu0 %165
    %169 = vset.pattern.permute.xlu0 0
    %170 = vperm.xlu0 %169, %v88
    %v171 = vpop.permute.xlu0 %170
    %174 = vset.pattern.permute.xlu0 0
    %175 = vperm.xlu0 %174, %v89
    %v176 = vpop.permute.xlu0 %175
    %179 = vset.pattern.permute.xlu0 0
    %180 = vperm.xlu0 %179, %v90
    %v181 = vpop.permute.xlu0 %180
    %184 = vset.pattern.permute.xlu0 0
    %185 = vperm.xlu0 %184, %v91
    %v186 = vpop.permute.xlu0 %185
    %189 = vset.pattern.permute.xlu0 0
    %190 = vperm.xlu0 %189, %v92
    %v191 = vpop.permute.xlu0 %190
    %194 = vset.pattern.permute.xlu0 0
    %195 = vperm.xlu0 %194, %v93
    %v196 = vpop.permute.xlu0 %195
    %199 = vset.pattern.permute.xlu0 0
    %200 = vperm.xlu0 %199, %v94
    %v201 = vpop.permute.xlu0 %200
    %204 = vset.pattern.permute.xlu0 0
    %205 = vperm.xlu0 %204, %v95
    %v206 = vpop.permute.xlu0 %205
    %209 = vset.pattern.permute.xlu0 0
    %210 = vperm.xlu0 %209, %v96
    %v211 = vpop.permute.xlu0 %210
    %214 = vset.pattern.permute.xlu0 0
    %215 = vperm.xlu0 %214, %v97
    %v216 = vpop.permute.xlu0 %215
    %219 = vset.pattern.permute.xlu0 0
    %220 = vperm.xlu0 %219, %v98
    %v221 = vpop.permute.xlu0 %220
    %224 = vset.pattern.permute.xlu0 0
    %225 = vperm.xlu0 %224, %v99
    %v226 = vpop.permute.xlu0 %225
    %229 = vset.pattern.permute.xlu0 0
    %230 = vperm.xlu0 %229, %v100
    %v231 = vpop.permute.xlu0 %230
    %234 = vset.pattern.permute.xlu0 0
    %235 = vperm.xlu0 %234, %v101
    %v236 = vpop.permute.xlu0 %235
    %239 = vset.pattern.permute.xlu0 0
    %240 = vperm.xlu0 %239, %v102
    %v241 = vpop.permute.xlu0 %240
    %244 = vset.pattern.permute.xlu0 0
    %245 = vperm.xlu0 %244, %v103
    %v246 = vpop.permute.xlu0 %245
    %249 = vset.pattern.permute.xlu0 0
    %250 = vperm.xlu0 %249, %v104
    %v251 = vpop.permute.xlu0 %250
    %254 = vset.pattern.permute.xlu0 0
    %255 = vperm.xlu0 %254, %v105
    %v256 = vpop.permute.xlu0 %255
    %259 = vset.pattern.permute.xlu0 0
    %260 = vperm.xlu0 %259, %v106
    %v261 = vpop.permute.xlu0 %260
    %264 = vset.pattern.permute.xlu0 0
    %265 = vperm.xlu0 %264, %v107
    %v266 = vpop.permute.xlu0 %265
    %v268 = vmul.f32 %v12, %v111
    %v269 = vmul.f32 %v13, %v116
    %v270 = vmul.f32 %v14, %v121
    %v271 = vmul.f32 %v15, %v126
    %v272 = vmul.f32 %v16, %v131
    %v273 = vmul.f32 %v17, %v136
    %v274 = vmul.f32 %v18, %v141
    %v275 = vmul.f32 %v19, %v146
    %v276 = vmul.f32 %v20, %v151
    %v277 = vmul.f32 %v21, %v156
    %v278 = vmul.f32 %v22, %v161
    %v279 = vmul.f32 %v23, %v166
    %v280 = vmul.f32 %v24, %v171
    %v281 = vmul.f32 %v25, %v176
    %v282 = vmul.f32 %v26, %v181
    %v283 = vmul.f32 %v27, %v186
    %v284 = vmul.f32 %v28, %v191
    %v285 = vmul.f32 %v29, %v196
    %v286 = vmul.f32 %v30, %v201
    %v287 = vmul.f32 %v31, %v206
    %v288 = vmul.f32 %v32, %v211
    %v289 = vmul.f32 %v33, %v216
    %v290 = vmul.f32 %v34, %v221
    %v291 = vmul.f32 %v35, %v226
    %v292 = vmul.f32 %v36, %v231
    %v293 = vmul.f32 %v37, %v236
    %v294 = vmul.f32 %v38, %v241
    %v295 = vmul.f32 %v39, %v246
    %v296 = vmul.f32 %v40, %v251
    %v297 = vmul.f32 %v41, %v256
    %v298 = vmul.f32 %v42, %v261
    %v299 = vmul.f32 %v43, %v266
    %v300 = vmul.f32 %v44, %v111
    %v301 = vmul.f32 %v45, %v116
    %v302 = vmul.f32 %v46, %v121
    %v303 = vmul.f32 %v47, %v126
    %v304 = vmul.f32 %v48, %v131
    %v305 = vmul.f32 %v49, %v136
    %v306 = vmul.f32 %v50, %v141
    %v307 = vmul.f32 %v51, %v146
    %v308 = vmul.f32 %v52, %v151
    %v309 = vmul.f32 %v53, %v156
    %v310 = vmul.f32 %v54, %v161
    %v311 = vmul.f32 %v55, %v166
    %v312 = vmul.f32 %v56, %v171
    %v313 = vmul.f32 %v57, %v176
    %v314 = vmul.f32 %v58, %v181
    %v315 = vmul.f32 %v59, %v186
    %v316 = vmul.f32 %v60, %v191
    %v317 = vmul.f32 %v61, %v196
    %v318 = vmul.f32 %v62, %v201
    %v319 = vmul.f32 %v63, %v206
    %v320 = vmul.f32 %v64, %v211
    %v321 = vmul.f32 %v65, %v216
    %v322 = vmul.f32 %v66, %v221
    %v323 = vmul.f32 %v67, %v226
    %v324 = vmul.f32 %v68, %v231
    %v325 = vmul.f32 %v69, %v236
    %v326 = vmul.f32 %v70, %v241
    %v327 = vmul.f32 %v71, %v246
    %v328 = vmul.f32 %v72, %v251
    %v329 = vmul.f32 %v73, %v256
    %v330 = vmul.f32 %v74, %v261
    %v331 = vmul.f32 %v75, %v266
    %v332 = vadd.f32 %v268, %v269
    %v333 = vadd.f32 %v332, %v270
    %v334 = vadd.f32 %v333, %v271
    %v335 = vadd.f32 %v334, %v272
    %v336 = vadd.f32 %v335, %v273
    %v337 = vadd.f32 %v336, %v274
    %v338 = vadd.f32 %v337, %v275
    %v339 = vadd.f32 %v338, %v276
    %v340 = vadd.f32 %v339, %v277
    %v341 = vadd.f32 %v340, %v278
    %v342 = vadd.f32 %v341, %v279
    %v343 = vadd.f32 %v342, %v280
    %v344 = vadd.f32 %v343, %v281
    %v345 = vadd.f32 %v344, %v282
    %v346 = vadd.f32 %v345, %v283
    %v347 = vadd.f32 %v346, %v284
    %v348 = vadd.f32 %v347, %v285
    %v349 = vadd.f32 %v348, %v286
    %v350 = vadd.f32 %v349, %v287
    %v351 = vadd.f32 %v350, %v288
    %v352 = vadd.f32 %v351, %v289
    %v353 = vadd.f32 %v352, %v290
    %v354 = vadd.f32 %v353, %v291
    %v355 = vadd.f32 %v354, %v292
    %v356 = vadd.f32 %v355, %v293
    %v357 = vadd.f32 %v356, %v294
    %v358 = vadd.f32 %v357, %v295
    %v359 = vadd.f32 %v358, %v296
    %v360 = vadd.f32 %v359, %v297
    %v361 = vadd.f32 %v360, %v298
    %v362 = vadd.f32 %v361, %v299
    %v363 = vrot.slane %v362, 4
    %v364 = vadd.f32 %v362, %v363
    %v365 = vrot.slane %v364, 2
    %v366 = vadd.f32 %v364, %v365
    %v367 = vrot.slane %v366, 1
    %v368 = vadd.f32 %v366, %v367
    %v369 = vadd.f32 %v300, %v301
    %v370 = vadd.f32 %v369, %v302
    %v371 = vadd.f32 %v370, %v303
    %v372 = vadd.f32 %v371, %v304
    %v373 = vadd.f32 %v372, %v305
    %v374 = vadd.f32 %v373, %v306
    %v375 = vadd.f32 %v374, %v307
    %v376 = vadd.f32 %v375, %v308
    %v377 = vadd.f32 %v376, %v309
    %v378 = vadd.f32 %v377, %v310
    %v379 = vadd.f32 %v378, %v311
    %v380 = vadd.f32 %v379, %v312
    %v381 = vadd.f32 %v380, %v313
    %v382 = vadd.f32 %v381, %v314
    %v383 = vadd.f32 %v382, %v315
    %v384 = vadd.f32 %v383, %v316
    %v385 = vadd.f32 %v384, %v317
    %v386 = vadd.f32 %v385, %v318
    %v387 = vadd.f32 %v386, %v319
    %v388 = vadd.f32 %v387, %v320
    %v389 = vadd.f32 %v388, %v321
    %v390 = vadd.f32 %v389, %v322
    %v391 = vadd.f32 %v390, %v323
    %v392 = vadd.f32 %v391, %v324
    %v393 = vadd.f32 %v392, %v325
    %v394 = vadd.f32 %v393, %v326
    %v395 = vadd.f32 %v394, %v327
    %v396 = vadd.f32 %v395, %v328
    %v397 = vadd.f32 %v396, %v329
    %v398 = vadd.f32 %v397, %v330
    %v399 = vadd.f32 %v398, %v331
    %v400 = vrot.slane %v399, 4
    %v401 = vadd.f32 %v399, %v400
    %v402 = vrot.slane %v401, 2
    %v403 = vadd.f32 %v401, %v402
    %v404 = vrot.slane %v403, 1
    %v405 = vadd.f32 %v403, %v404
    %vm408 = vcmask 1041409
    %v409 = vsel %vm408, %v405, %v368
    %411 = vst [vmem:[#allocation2] sm:$0x3] %v409
    // Predicated region
    $region10: #{encoder_image_full_forward.3} parent=1 // pred_check
      _
    $region11: #{encoder_image_full_forward.3} parent=1 // pred_check_branch
      %413 = sbr.rel (0) target = $region13
    $region12: #{encoder_image_full_forward.3} parent=1 // pred_region
      %415 = vsyncadd [#allocation3], 0
      %s417 = sshll.u32 [#allocation2], 4
      %s418 = int_to_ptr.vmem [resolvable:$true] %s417
      %s419 = sshll.u32 %s2, 4
      %s420 = int_to_ptr.hbm [resolvable:$true] %s419
      %422 = dma.vmem_to_hbm [thread:$0]  %s418, 32, %s420, [#allocation3]
    $region13: #{encoder_image_full_forward.3} parent=1 // pred_fallthru
      _
    // Predicated region
    $region14: #{encoder_image_full_forward.3} parent=1 // pred_check
      _
    $region15: #{encoder_image_full_forward.3} parent=1 // pred_check_branch
      %424 = sbr.rel (0) target = $region17
    $region16: #{encoder_image_full_forward.3} parent=1 // pred_region
      %426 = dma.done [#allocation3], 32
    $region17: #{encoder_image_full_forward.3} parent=1 // pred_fallthru
      _
    %427 = vsyncpa [#allocation3], 1

// kernel: encoder_image_full_forward.2
$region0: #{encoder_image_full_forward.2}
  #allocation0 [shape = 'u32[]', space=smem, size = 0x4, offset = 0x4, fixed_abs, tag = 'smem constant byte address 0x4 - core index']
  #allocation1 [shape = 'u32[72,128]{1,0:T(1,128)}', space=vmem, size = 0x9000, scoped, tag = 'internal scratch']
  %s0 = inlined_call_operand.vmem [shape: bf16[512,128], index: 0, kind: input, shape index: {}]
  %s1 = inlined_call_operand.vmem [shape: bf16[128,128], index: 1, kind: input, shape index: {}]
  %s2 = inlined_call_operand.vmem [shape: f32[1,128], index: 2, kind: input, shape index: {}]
  %s3 = inlined_call_operand.vmem [shape: bf16[128,128], index: 3, kind: input, shape index: {}]
  %s4 = inlined_call_operand.vmem [shape: f32[1,128], index: 4, kind: input, shape index: {}]
  %s5 = inlined_call_operand.vmem [shape: bf16[128,128], index: 5, kind: input, shape index: {}]
  %s6 = inlined_call_operand.vmem [shape: f32[1,128], index: 6, kind: input, shape index: {}]
  %s7 = inlined_call_operand.vmem [shape: bf16[128,128], index: 7, kind: input, shape index: {}]
  %s8 = inlined_call_operand.vmem [shape: f32[1,128], index: 8, kind: input, shape index: {}]
  %s9 = inlined_call_operand.vmem [shape: f32[512,128], index: 9, kind: output, shape index: {0}]
  %s10 = inlined_call_operand.vmem [shape: f32[512,128], index: 10, kind: output, shape index: {1}]
  %11 = xla_tuple %s9, %s10
  %s12 = sld [smem:[#allocation0]]
  $region77: #{encoder_image_full_forward.2} parent=0
    _
  %s14 = ssub.s32 1, %s12
  %s15 = scalar_select 0, %s14, %s12
  loop: start=0, step=1, limit=4
  $region2: #{encoder_image_full_forward.2} parent=0 // loop_pre_header
    _
  $region3: #{encoder_image_full_forward.2} parent=0 // loop_header
    %s17 = sphi 0, %s21
    %p18 = scmp.ge.s32.totalorder %s17, 4
    %s27 = sphi 0, %s29
    %s30 = sphi 0, %s27
    %s31 = sphi 0, %s30
    %s47 = sphi 0, %s31
    %s51 = sphi 0, %s51
    %s53 = sphi 0, %s51
    %s54 = sphi 0, %s53
    %s68 = sphi 0, %s54
    %s72 = sphi 0, %s72
    %s74 = sphi 0, %s72
    %s75 = sphi 0, %s74
    %s89 = sphi 0, %s75
    %s93 = sphi 0, %s93
    %s95 = sphi 0, %s93
    %s96 = sphi 0, %s95
    %s110 = sphi 0, %s96
    %s114 = sphi 0, %s114
    %s116 = sphi 0, %s114
    %s117 = sphi 0, %s116
    %s131 = sphi 0, %s117
    %s135 = sphi 0, %s135
    %s137 = sphi 0, %s135
    %s138 = sphi 0, %s137
    %s152 = sphi 0, %s138
    %s156 = sphi 0, %s156
    %s158 = sphi 0, %s156
    %s159 = sphi 0, %s158
    %s173 = sphi 0, %s159
    %s177 = sphi 0, %s177
    %s179 = sphi 0, %s177
    %s180 = sphi 0, %s179
    %s194 = sphi 0, %s180
    %s198 = sphi 0, %s198
    %s200 = sphi 0, %s198
    %s201 = sphi 0, %s200
    %s215 = sphi 0, %s201
    %s221 = sphi 0, %s223
    %s224 = sphi 0, %s221
    %s225 = sphi 0, %s224
    %s241 = sphi 0, %s225
    %s247 = sphi 0, %s249
    %s250 = sphi 0, %s247
    %s251 = sphi 0, %s250
    %s267 = sphi 0, %s251
  $region4: #{encoder_image_full_forward.2} parent=0 // loop_header_branch
    %20 = sbr.rel (%p18) target = $region8
  $region5: #{encoder_image_full_forward.2} parent=0 // loop_body
    %s22 = ssub.s32 %s17, 1
    %s23 = ssub.s32 %s17, 2
    %s24 = sadd.s32 %s17, 1
    %s25 = ssub.s32 %s17, %s24
    %p26 = scmp.eq.s32.totalorder %s25, 0
    %s28 = sadd.s32 %s27, 1
    %s29 = scalar_select %p26, %s27, %s28
    %p32 = pneg %p26
    %p33 = scmp.eq.s32.totalorder %s17, 1
    %p34 = por %p32, %p33
    %p35 = scmp.ne.s32.totalorder %s27, %s30
    %p36 = scmp.eq.s32.totalorder %s17, 0
    %p37 = por %p35, %p36
    %p38 = scmp.ne.s32.totalorder %s27, %s30
    %p39 = scmp.eq.s32.totalorder %s22, 1
    %p40 = por %p38, %p39
    %p41 = scmp.ne.s32.totalorder %s30, %s31
    %p42 = scmp.eq.s32.totalorder %s22, 0
    %p43 = por %p41, %p42
    %p44 = scmp.ne.s32.totalorder %s30, %s31
    %p45 = scmp.eq.s32.totalorder %s23, 1
    %p46 = por %p44, %p45
    %p48 = scmp.ne.s32.totalorder %s31, %s47
    %p49 = scmp.eq.s32.totalorder %s23, 0
    %p50 = por %p48, %p49
    %s52 = sadd.s32 %s51, 1
    %p55 = scmp.eq.s32.totalorder %s17, 1
    %p56 = scmp.ne.s32.totalorder %s51, %s53
    %p57 = scmp.eq.s32.totalorder %s17, 0
    %p58 = por %p56, %p57
    %p59 = scmp.ne.s32.totalorder %s51, %s53
    %p60 = scmp.eq.s32.totalorder %s22, 1
    %p61 = por %p59, %p60
    %p62 = scmp.ne.s32.totalorder %s53, %s54
    %p63 = scmp.eq.s32.totalorder %s22, 0
    %p64 = por %p62, %p63
    %p65 = scmp.ne.s32.totalorder %s53, %s54
    %p66 = scmp.eq.s32.totalorder %s23, 1
    %p67 = por %p65, %p66
    %p69 = scmp.ne.s32.totalorder %s54, %s68
    %p70 = scmp.eq.s32.totalorder %s23, 0
    %p71 = por %p69, %p70
    %s73 = sadd.s32 %s72, 1
    %p76 = scmp.eq.s32.totalorder %s17, 1
    %p77 = scmp.ne.s32.totalorder %s72, %s74
    %p78 = scmp.eq.s32.totalorder %s17, 0
    %p79 = por %p77, %p78
    %p80 = scmp.ne.s32.totalorder %s72, %s74
    %p81 = scmp.eq.s32.totalorder %s22, 1
    %p82 = por %p80, %p81
    %p83 = scmp.ne.s32.totalorder %s74, %s75
    %p84 = scmp.eq.s32.totalorder %s22, 0
    %p85 = por %p83, %p84
    %p86 = scmp.ne.s32.totalorder %s74, %s75
    %p87 = scmp.eq.s32.totalorder %s23, 1
    %p88 = por %p86, %p87
    %p90 = scmp.ne.s32.totalorder %s75, %s89
    %p91 = scmp.eq.s32.totalorder %s23, 0
    %p92 = por %p90, %p91
    %s94 = sadd.s32 %s93, 1
    %p97 = scmp.eq.s32.totalorder %s17, 1
    %p98 = scmp.ne.s32.totalorder %s93, %s95
    %p99 = scmp.eq.s32.totalorder %s17, 0
    %p100 = por %p98, %p99
    %p101 = scmp.ne.s32.totalorder %s93, %s95
    %p102 = scmp.eq.s32.totalorder %s22, 1
    %p103 = por %p101, %p102
    %p104 = scmp.ne.s32.totalorder %s95, %s96
    %p105 = scmp.eq.s32.totalorder %s22, 0
    %p106 = por %p104, %p105
    %p107 = scmp.ne.s32.totalorder %s95, %s96
    %p108 = scmp.eq.s32.totalorder %s23, 1
    %p109 = por %p107, %p108
    %p111 = scmp.ne.s32.totalorder %s96, %s110
    %p112 = scmp.eq.s32.totalorder %s23, 0
    %p113 = por %p111, %p112
    %s115 = sadd.s32 %s114, 1
    %p118 = scmp.eq.s32.totalorder %s17, 1
    %p119 = scmp.ne.s32.totalorder %s114, %s116
    %p120 = scmp.eq.s32.totalorder %s17, 0
    %p121 = por %p119, %p120
    %p122 = scmp.ne.s32.totalorder %s114, %s116
    %p123 = scmp.eq.s32.totalorder %s22, 1
    %p124 = por %p122, %p123
    %p125 = scmp.ne.s32.totalorder %s116, %s117
    %p126 = scmp.eq.s32.totalorder %s22, 0
    %p127 = por %p125, %p126
    %p128 = scmp.ne.s32.totalorder %s116, %s117
    %p129 = scmp.eq.s32.totalorder %s23, 1
    %p130 = por %p128, %p129
    %p132 = scmp.ne.s32.totalorder %s117, %s131
    %p133 = scmp.eq.s32.totalorder %s23, 0
    %p134 = por %p132, %p133
    %s136 = sadd.s32 %s135, 1
    %p139 = scmp.eq.s32.totalorder %s17, 1
    %p140 = scmp.ne.s32.totalorder %s135, %s137
    %p141 = scmp.eq.s32.totalorder %s17, 0
    %p142 = por %p140, %p141
    %p143 = scmp.ne.s32.totalorder %s135, %s137
    %p144 = scmp.eq.s32.totalorder %s22, 1
    %p145 = por %p143, %p144
    %p146 = scmp.ne.s32.totalorder %s137, %s138
    %p147 = scmp.eq.s32.totalorder %s22, 0
    %p148 = por %p146, %p147
    %p149 = scmp.ne.s32.totalorder %s137, %s138
    %p150 = scmp.eq.s32.totalorder %s23, 1
    %p151 = por %p149, %p150
    %p153 = scmp.ne.s32.totalorder %s138, %s152
    %p154 = scmp.eq.s32.totalorder %s23, 0
    %p155 = por %p153, %p154
    %s157 = sadd.s32 %s156, 1
    %p160 = scmp.eq.s32.totalorder %s17, 1
    %p161 = scmp.ne.s32.totalorder %s156, %s158
    %p162 = scmp.eq.s32.totalorder %s17, 0
    %p163 = por %p161, %p162
    %p164 = scmp.ne.s32.totalorder %s156, %s158
    %p165 = scmp.eq.s32.totalorder %s22, 1
    %p166 = por %p164, %p165
    %p167 = scmp.ne.s32.totalorder %s158, %s159
    %p168 = scmp.eq.s32.totalorder %s22, 0
    %p169 = por %p167, %p168
    %p170 = scmp.ne.s32.totalorder %s158, %s159
    %p171 = scmp.eq.s32.totalorder %s23, 1
    %p172 = por %p170, %p171
    %p174 = scmp.ne.s32.totalorder %s159, %s173
    %p175 = scmp.eq.s32.totalorder %s23, 0
    %p176 = por %p174, %p175
    %s178 = sadd.s32 %s177, 1
    %p181 = scmp.eq.s32.totalorder %s17, 1
    %p182 = scmp.ne.s32.totalorder %s177, %s179
    %p183 = scmp.eq.s32.totalorder %s17, 0
    %p184 = por %p182, %p183
    %p185 = scmp.ne.s32.totalorder %s177, %s179
    %p186 = scmp.eq.s32.totalorder %s22, 1
    %p187 = por %p185, %p186
    %p188 = scmp.ne.s32.totalorder %s179, %s180
    %p189 = scmp.eq.s32.totalorder %s22, 0
    %p190 = por %p188, %p189
    %p191 = scmp.ne.s32.totalorder %s179, %s180
    %p192 = scmp.eq.s32.totalorder %s23, 1
    %p193 = por %p191, %p192
    %p195 = scmp.ne.s32.totalorder %s180, %s194
    %p196 = scmp.eq.s32.totalorder %s23, 0
    %p197 = por %p195, %p196
    %s199 = sadd.s32 %s198, 1
    %p202 = scmp.eq.s32.totalorder %s17, 1
    %p203 = scmp.ne.s32.totalorder %s198, %s200
    %p204 = scmp.eq.s32.totalorder %s17, 0
    %p205 = por %p203, %p204
    %p206 = scmp.ne.s32.totalorder %s198, %s200
    %p207 = scmp.eq.s32.totalorder %s22, 1
    %p208 = por %p206, %p207
    %p209 = scmp.ne.s32.totalorder %s200, %s201
    %p210 = scmp.eq.s32.totalorder %s22, 0
    %p211 = por %p209, %p210
    %p212 = scmp.ne.s32.totalorder %s200, %s201
    %p213 = scmp.eq.s32.totalorder %s23, 1
    %p214 = por %p212, %p213
    %p216 = scmp.ne.s32.totalorder %s201, %s215
    %p217 = scmp.eq.s32.totalorder %s23, 0
    %p218 = por %p216, %p217
    %s219 = ssub.s32 %s17, %s24
    %p220 = scmp.eq.s32.totalorder %s219, 0
    %s222 = sadd.s32 %s221, 1
    %s223 = scalar_select %p220, %s221, %s222
    %p226 = pneg %p220
    %p227 = scmp.eq.s32.totalorder %s17, 1
    %p228 = por %p226, %p227
    %p229 = scmp.ne.s32.totalorder %s221, %s224
    %p230 = scmp.eq.s32.totalorder %s17, 0
    %p231 = por %p229, %p230
    %p232 = scmp.ne.s32.totalorder %s221, %s224
    %p233 = scmp.eq.s32.totalorder %s22, 1
    %p234 = por %p232, %p233
    %p235 = scmp.ne.s32.totalorder %s224, %s225
    %p236 = scmp.eq.s32.totalorder %s22, 0
    %p237 = por %p235, %p236
    %p238 = scmp.ne.s32.totalorder %s224, %s225
    %p239 = scmp.eq.s32.totalorder %s23, 1
    %p240 = por %p238, %p239
    %p242 = scmp.ne.s32.totalorder %s225, %s241
    %p243 = scmp.eq.s32.totalorder %s23, 0
    %p244 = por %p242, %p243
    %s245 = ssub.s32 %s17, %s24
    %p246 = scmp.eq.s32.totalorder %s245, 0
    %s248 = sadd.s32 %s247, 1
    %s249 = scalar_select %p246, %s247, %s248
    %p252 = pneg %p246
    %p253 = scmp.eq.s32.totalorder %s17, 1
    %p254 = por %p252, %p253
    %p255 = scmp.ne.s32.totalorder %s247, %s250
    %p256 = scmp.eq.s32.totalorder %s17, 0
    %p257 = por %p255, %p256
    %p258 = scmp.ne.s32.totalorder %s247, %s250
    %p259 = scmp.eq.s32.totalorder %s22, 1
    %p260 = por %p258, %p259
    %p261 = scmp.ne.s32.totalorder %s250, %s251
    %p262 = scmp.eq.s32.totalorder %s22, 0
    %p263 = por %p261, %p262
    %p264 = scmp.ne.s32.totalorder %s250, %s251
    %p265 = scmp.eq.s32.totalorder %s23, 1
    %p266 = por %p264, %p265
    %p268 = scmp.ne.s32.totalorder %s251, %s267
    %p269 = scmp.eq.s32.totalorder %s23, 0
    %p270 = por %p268, %p269
    %p271 = scmp.le.s32.totalorder 1, %s17
    %p272 = scmp.lt.s32.totalorder %s17, 3
    %p273 = pnand %p271, %p272
    %p274 = pneg %p273
    // Predicated region
    $region9: #{encoder_image_full_forward.2} parent=5 // pred_check
      _
    $region10: #{encoder_image_full_forward.2} parent=5 // pred_check_branch
      %276 = sbr.rel (%p273) target = $region12
    $region11: #{encoder_image_full_forward.2} parent=5 // pred_region
      %s277 = ssub.s32 %s17, 1
      // Predicated region
      $region13: #{encoder_image_full_forward.2} parent=11 // pred_check
        %p278 = pneg %p64
      $region14: #{encoder_image_full_forward.2} parent=11 // pred_check_branch
        %280 = sbr.rel (%p278) target = $region16
      $region15: #{encoder_image_full_forward.2} parent=11 // pred_region
        _
      $region16: #{encoder_image_full_forward.2} parent=11 // pred_fallthru
        _
      // Predicated region
      $region17: #{encoder_image_full_forward.2} parent=11 // pred_check
        %p281 = pneg %p85
      $region18: #{encoder_image_full_forward.2} parent=11 // pred_check_branch
        %283 = sbr.rel (%p281) target = $region20
      $region19: #{encoder_image_full_forward.2} parent=11 // pred_region
        _
      $region20: #{encoder_image_full_forward.2} parent=11 // pred_fallthru
        _
      // Predicated region
      $region21: #{encoder_image_full_forward.2} parent=11 // pred_check
        %p284 = pneg %p106
      $region22: #{encoder_image_full_forward.2} parent=11 // pred_check_branch
        %286 = sbr.rel (%p284) target = $region24
      $region23: #{encoder_image_full_forward.2} parent=11 // pred_region
        _
      $region24: #{encoder_image_full_forward.2} parent=11 // pred_fallthru
        _
      // Predicated region
      $region25: #{encoder_image_full_forward.2} parent=11 // pred_check
        %p287 = pneg %p127
      $region26: #{encoder_image_full_forward.2} parent=11 // pred_check_branch
        %289 = sbr.rel (%p287) target = $region28
      $region27: #{encoder_image_full_forward.2} parent=11 // pred_region
        _
      $region28: #{encoder_image_full_forward.2} parent=11 // pred_fallthru
        _
      // Predicated region
      $region29: #{encoder_image_full_forward.2} parent=11 // pred_check
        %p290 = pneg %p148
      $region30: #{encoder_image_full_forward.2} parent=11 // pred_check_branch
        %292 = sbr.rel (%p290) target = $region32
      $region31: #{encoder_image_full_forward.2} parent=11 // pred_region
        _
      $region32: #{encoder_image_full_forward.2} parent=11 // pred_fallthru
        _
      // Predicated region
      $region33: #{encoder_image_full_forward.2} parent=11 // pred_check
        %p293 = pneg %p169
      $region34: #{encoder_image_full_forward.2} parent=11 // pred_check_branch
        %295 = sbr.rel (%p293) target = $region36
      $region35: #{encoder_image_full_forward.2} parent=11 // pred_region
        _
      $region36: #{encoder_image_full_forward.2} parent=11 // pred_fallthru
        _
      // Predicated region
      $region37: #{encoder_image_full_forward.2} parent=11 // pred_check
        %p296 = pneg %p190
      $region38: #{encoder_image_full_forward.2} parent=11 // pred_check_branch
        %298 = sbr.rel (%p296) target = $region40
      $region39: #{encoder_image_full_forward.2} parent=11 // pred_region
        _
      $region40: #{encoder_image_full_forward.2} parent=11 // pred_fallthru
        _
      // Predicated region
      $region41: #{encoder_image_full_forward.2} parent=11 // pred_check
        %p299 = pneg %p211
      $region42: #{encoder_image_full_forward.2} parent=11 // pred_check_branch
        %301 = sbr.rel (%p299) target = $region44
      $region43: #{encoder_image_full_forward.2} parent=11 // pred_region
        _
      $region44: #{encoder_image_full_forward.2} parent=11 // pred_fallthru
        _
    $region12: #{encoder_image_full_forward.2} parent=5 // pred_fallthru
      _
    %p302 = scmp.lt.s32.totalorder %s17, 2
    // Predicated region
    $region45: #{encoder_image_full_forward.2} parent=5 // pred_check
      %p303 = pneg %p302
    $region46: #{encoder_image_full_forward.2} parent=5 // pred_check_branch
      %305 = sbr.rel (%p303) target = $region48
    $region47: #{encoder_image_full_forward.2} parent=5 // pred_region
      // Predicated region
      $region49: #{encoder_image_full_forward.2} parent=47 // pred_check
        %p306 = pneg %p37
      $region50: #{encoder_image_full_forward.2} parent=47 // pred_check_branch
        %308 = sbr.rel (%p306) target = $region52
      $region51: #{encoder_image_full_forward.2} parent=47 // pred_region
        %s309 = smul.u32 32, %s17
        %p310 = scmp.lt.s32.totalorder %s309, 63
        %s311 = scalar_select %p310, %s309, 63
        %s312 = smul.addr %s311, 4
        %s313 = scalar_lea.vmem %s0, %s312
        %s314 = smul.u32 32, %s17
      $region52: #{encoder_image_full_forward.2} parent=47 // pred_fallthru
        _
    $region48: #{encoder_image_full_forward.2} parent=5 // pred_fallthru
      _
    %p315 = scmp.le.s32.totalorder 1, %s17
    %p316 = scmp.lt.s32.totalorder %s17, 3
    %p317 = pnand %p315, %p316
    %p318 = pneg %p317
    // Predicated region
    $region53: #{encoder_image_full_forward.2} parent=5 // pred_check
      _
    $region54: #{encoder_image_full_forward.2} parent=5 // pred_check_branch
      %320 = sbr.rel (%p317) target = $region56
    $region55: #{encoder_image_full_forward.2} parent=5 // pred_region
      %s321 = ssub.s32 %s17, 1
      %s322 = smul.u32 32, %s22
      %p323 = scmp.lt.s32.totalorder %s322, 63
      %s324 = scalar_select %p323, %s322, 63
      %s325 = smul.addr %s324, 4
      %s326 = scalar_lea.vmem %s0, %s325
      %p327 = pneg %p43
      %p328 = pneg %p40
      %p329 = pneg %p64
      %p330 = pneg %p61
      %p331 = pneg %p85
      %p332 = pneg %p82
      %p333 = pneg %p106
      %p334 = pneg %p103
      %p335 = pneg %p127
      %p336 = pneg %p124
      %p337 = pneg %p148
      %p338 = pneg %p145
      %p339 = pneg %p169
      %p340 = pneg %p166
      %p341 = pneg %p190
      %p342 = pneg %p187
      %p343 = pneg %p211
      %p344 = pneg %p208
      %p345 = pneg %p237
      %p346 = pneg %p234
      %s347 = smul.u32 32, %s22
      %p348 = scmp.lt.s32.totalorder %s347, 63
      %s349 = scalar_select %p348, %s347, 63
      %s350 = smul.addr %s349, 8
      %s351 = scalar_lea.vmem %s9, %s350
      %p352 = pneg %p263
      %p353 = pneg %p260
      %s354 = smul.u32 32, %s22
      %p355 = scmp.lt.s32.totalorder %s354, 63
      %s356 = scalar_select %p355, %s354, 63
      %s357 = smul.addr %s356, 8
      %s358 = scalar_lea.vmem %s10, %s357
      %s359 = smul.u32 32, %s22
      %p360 = scmp.lt.s32.totalorder %s359, 63
      %s361 = scalar_select %p360, %s359, 63
      %s362 = smul.addr %s361, 4
      %s363 = scalar_lea.vmem %s0, %s362
      %s364 = smul.u32 32, %s22
      %s365 = smul.u32 32, %s22
      %p366 = scmp.lt.s32.totalorder %s365, 63
      %s367 = scalar_select %p366, %s365, 63
      %s368 = smul.addr %s367, 8
      %s369 = scalar_lea.vmem %s9, %s368
      %s370 = smul.u32 32, %s22
      %s371 = smul.u32 32, %s22
      %p372 = scmp.lt.s32.totalorder %s371, 63
      %s373 = scalar_select %p372, %s371, 63
      %s374 = smul.addr %s373, 8
      %s375 = scalar_lea.vmem %s10, %s374
      %s376 = smul.u32 32, %s22
      %v377 = vld [vmem:[%s363] sm:$0xf]
      %v378 = vld [vmem:[%s363 + $0x4] sm:$0xf]
      %v379 = vld [vmem:[%s363 + $0x8] sm:$0xf]
      %v380 = vld [vmem:[%s363 + $0xc] sm:$0xf]
      %v381 = vld [vmem:[%s363 + $0x10] sm:$0xf]
      %v382 = vld [vmem:[%s363 + $0x14] sm:$0xf]
      %v383 = vld [vmem:[%s363 + $0x18] sm:$0xf]
      %v384 = vld [vmem:[%s363 + $0x1c] sm:$0xf]
      %v385 = vld [vmem:[%s363 + $0x20] sm:$0xf]
      %v386 = vld [vmem:[%s363 + $0x24] sm:$0xf]
      %v387 = vld [vmem:[%s363 + $0x28] sm:$0xf]
      %v388 = vld [vmem:[%s363 + $0x2c] sm:$0xf]
      %v389 = vld [vmem:[%s363 + $0x30] sm:$0xf]
      %v390 = vld [vmem:[%s363 + $0x34] sm:$0xf]
      %v391 = vld [vmem:[%s363 + $0x38] sm:$0xf]
      %v392 = vld [vmem:[%s363 + $0x3c] sm:$0xf]
      %v393 = vld [vmem:[%s363 + $0x40] sm:$0xf]
      %v394 = vld [vmem:[%s363 + $0x44] sm:$0xf]
      %v395 = vld [vmem:[%s363 + $0x48] sm:$0xf]
      %v396 = vld [vmem:[%s363 + $0x4c] sm:$0xf]
      %v397 = vld [vmem:[%s363 + $0x50] sm:$0xf]
      %v398 = vld [vmem:[%s363 + $0x54] sm:$0xf]
      %v399 = vld [vmem:[%s363 + $0x58] sm:$0xf]
      %v400 = vld [vmem:[%s363 + $0x5c] sm:$0xf]
      %v401 = vld [vmem:[%s363 + $0x60] sm:$0xf]
      %v402 = vld [vmem:[%s363 + $0x64] sm:$0xf]
      %v403 = vld [vmem:[%s363 + $0x68] sm:$0xf]
      %v404 = vld [vmem:[%s363 + $0x6c] sm:$0xf]
      %v405 = vld [vmem:[%s363 + $0x70] sm:$0xf]
      %v406 = vld [vmem:[%s363 + $0x74] sm:$0xf]
      %v407 = vld [vmem:[%s363 + $0x78] sm:$0xf]
      %v408 = vld [vmem:[%s363 + $0x7c] sm:$0xf]
      %v409 = vld [vmem:[%s1] sm:$0xf]
      %v410 = vld [vmem:[%s1 + $0x4] sm:$0xf]
      %v411 = vld [vmem:[%s1 + $0x8] sm:$0xf]
      %v412 = vld [vmem:[%s1 + $0xc] sm:$0xf]
      %v413 = vld [vmem:[%s1 + $0x10] sm:$0xf]
      %v414 = vld [vmem:[%s1 + $0x14] sm:$0xf]
      %v415 = vld [vmem:[%s1 + $0x18] sm:$0xf]
      %v416 = vld [vmem:[%s1 + $0x1c] sm:$0xf]
      %v417 = vld [vmem:[%s1 + $0x20] sm:$0xf]
      %v418 = vld [vmem:[%s1 + $0x24] sm:$0xf]
      %v419 = vld [vmem:[%s1 + $0x28] sm:$0xf]
      %v420 = vld [vmem:[%s1 + $0x2c] sm:$0xf]
      %v421 = vld [vmem:[%s1 + $0x30] sm:$0xf]
      %v422 = vld [vmem:[%s1 + $0x34] sm:$0xf]
      %v423 = vld [vmem:[%s1 + $0x38] sm:$0xf]
      %v424 = vld [vmem:[%s1 + $0x3c] sm:$0xf]
      %v425 = vld [vmem:[%s2] sm:$0x1]
      %v427 = vperm.slane %v425, 0
      %v461 = vunpack.c.l.b16 %v377
      %v462 = vunpack.c.l.b16 %v378
      %v463 = vunpack.c.l.b16 %v379
      %v464 = vunpack.c.l.b16 %v380
      %v465 = vunpack.c.l.b16 %v381
      %v466 = vunpack.c.l.b16 %v382
      %v467 = vunpack.c.l.b16 %v383
      %v468 = vunpack.c.l.b16 %v384
      %v469 = vunpack.c.l.b16 %v385
      %v470 = vunpack.c.l.b16 %v386
      %v471 = vunpack.c.l.b16 %v387
      %v472 = vunpack.c.l.b16 %v388
      %v473 = vunpack.c.l.b16 %v389
      %v474 = vunpack.c.l.b16 %v390
      %v475 = vunpack.c.l.b16 %v391
      %v476 = vunpack.c.l.b16 %v392
      %v477 = vunpack.c.l.b16 %v393
      %v478 = vunpack.c.l.b16 %v394
      %v479 = vunpack.c.l.b16 %v395
      %v480 = vunpack.c.l.b16 %v396
      %v481 = vunpack.c.l.b16 %v397
      %v482 = vunpack.c.l.b16 %v398
      %v483 = vunpack.c.l.b16 %v399
      %v484 = vunpack.c.l.b16 %v400
      %v485 = vunpack.c.l.b16 %v401
      %v486 = vunpack.c.l.b16 %v402
      %v487 = vunpack.c.l.b16 %v403
      %v488 = vunpack.c.l.b16 %v404
      %v489 = vunpack.c.l.b16 %v405
      %v490 = vunpack.c.l.b16 %v406
      %v491 = vunpack.c.l.b16 %v407
      %v492 = vunpack.c.l.b16 %v408
      %v493 = vpack.c.b16 %v462, %v461
      %v494 = vpack.c.b16 %v464, %v463
      %v495 = vpack.c.b16 %v466, %v465
      %v496 = vpack.c.b16 %v468, %v467
      %v497 = vpack.c.b16 %v470, %v469
      %v498 = vpack.c.b16 %v472, %v471
      %v499 = vpack.c.b16 %v474, %v473
      %v500 = vpack.c.b16 %v476, %v475
      %v501 = vpack.c.b16 %v478, %v477
      %v502 = vpack.c.b16 %v480, %v479
      %v503 = vpack.c.b16 %v482, %v481
      %v504 = vpack.c.b16 %v484, %v483
      %v505 = vpack.c.b16 %v486, %v485
      %v506 = vpack.c.b16 %v488, %v487
      %v507 = vpack.c.b16 %v490, %v489
      %v508 = vpack.c.b16 %v492, %v491
      %v541 = vunpack.c.l.b16 %v409
      %v542 = vunpack.c.l.b16 %v410
      %v543 = vunpack.c.l.b16 %v411
      %v544 = vunpack.c.l.b16 %v412
      %v545 = vunpack.c.l.b16 %v413
      %v546 = vunpack.c.l.b16 %v414
      %v547 = vunpack.c.l.b16 %v415
      %v548 = vunpack.c.l.b16 %v416
      %v549 = vunpack.c.l.b16 %v417
      %v550 = vunpack.c.l.b16 %v418
      %v551 = vunpack.c.l.b16 %v419
      %v552 = vunpack.c.l.b16 %v420
      %v553 = vunpack.c.l.b16 %v421
      %v554 = vunpack.c.l.b16 %v422
      %v555 = vunpack.c.l.b16 %v423
      %v556 = vunpack.c.l.b16 %v424
      %v557 = vpack.c.b16 %v542, %v541
      %v558 = vpack.c.b16 %v544, %v543
      %v559 = vpack.c.b16 %v546, %v545
      %v560 = vpack.c.b16 %v548, %v547
      %v561 = vpack.c.b16 %v550, %v549
      %v562 = vpack.c.b16 %v552, %v551
      %v563 = vpack.c.b16 %v554, %v553
      %v564 = vpack.c.b16 %v556, %v555
      %573 = vmatpush.bf16.msra.mxu0 %v564
      %574 = vmatpush.bf16.msra.mxu0 %v563
      %575 = vmatpush.bf16.msra.mxu0 %v562
      %576 = vmatpush.bf16.msra.mxu0 %v561
      %577 = vmatpush.bf16.msra.mxu0 %v560
      %578 = vmatpush.bf16.msra.mxu0 %v559
      %579 = vmatpush.bf16.msra.mxu0 %v558
      %580 = vmatpush.bf16.msra.mxu0 %v557
      %581 = vmatmul.bf16.gmra.mxu0 %v493
      %v582 = vpop.f32.mrf.mxu0
      %v583 = vadd.f32 %v427, %v582
      %v584 = vpop.f32.mrf.mxu0
      %v585 = vadd.f32 %v427, %v584
      %586 = vmatmul.bf16.gmra.mxu0 %v494
      %v587 = vpop.f32.mrf.mxu0
      %v588 = vadd.f32 %v427, %v587
      %v589 = vpop.f32.mrf.mxu0
      %v590 = vadd.f32 %v427, %v589
      %591 = vmatmul.bf16.gmra.mxu0 %v495
      %v592 = vpop.f32.mrf.mxu0
      %v593 = vadd.f32 %v427, %v592
      %v594 = vpop.f32.mrf.mxu0
      %v595 = vadd.f32 %v427, %v594
      %596 = vmatmul.bf16.gmra.mxu0 %v496
      %v597 = vpop.f32.mrf.mxu0
      %v598 = vadd.f32 %v427, %v597
      %v599 = vpop.f32.mrf.mxu0
      %v600 = vadd.f32 %v427, %v599
      %601 = vmatmul.bf16.gmra.mxu0 %v497
      %v602 = vpop.f32.mrf.mxu0
      %v603 = vadd.f32 %v427, %v602
      %v604 = vpop.f32.mrf.mxu0
      %v605 = vadd.f32 %v427, %v604
      %606 = vmatmul.bf16.gmra.mxu0 %v498
      %v607 = vpop.f32.mrf.mxu0
      %v608 = vadd.f32 %v427, %v607
      %v609 = vpop.f32.mrf.mxu0
      %v610 = vadd.f32 %v427, %v609
      %611 = vmatmul.bf16.gmra.mxu0 %v499
      %v612 = vpop.f32.mrf.mxu0
      %v613 = vadd.f32 %v427, %v612
      %v614 = vpop.f32.mrf.mxu0
      %v615 = vadd.f32 %v427, %v614
      %616 = vmatmul.bf16.gmra.mxu0 %v500
      %v617 = vpop.f32.mrf.mxu0
      %v618 = vadd.f32 %v427, %v617
      %v619 = vpop.f32.mrf.mxu0
      %v620 = vadd.f32 %v427, %v619
      %621 = vmatmul.bf16.gmra.mxu0 %v501
      %v622 = vpop.f32.mrf.mxu0
      %v623 = vadd.f32 %v427, %v622
      %v624 = vpop.f32.mrf.mxu0
      %v625 = vadd.f32 %v427, %v624
      %626 = vmatmul.bf16.gmra.mxu0 %v502
      %v627 = vpop.f32.mrf.mxu0
      %v628 = vadd.f32 %v427, %v627
      %v629 = vpop.f32.mrf.mxu0
      %v630 = vadd.f32 %v427, %v629
      %631 = vmatmul.bf16.gmra.mxu0 %v503
      %v632 = vpop.f32.mrf.mxu0
      %v633 = vadd.f32 %v427, %v632
      %v634 = vpop.f32.mrf.mxu0
      %v635 = vadd.f32 %v427, %v634
      %636 = vmatmul.bf16.gmra.mxu0 %v504
      %v637 = vpop.f32.mrf.mxu0
      %v638 = vadd.f32 %v427, %v637
      %v639 = vpop.f32.mrf.mxu0
      %v640 = vadd.f32 %v427, %v639
      %641 = vmatmul.bf16.gmra.mxu0 %v505
      %v642 = vpop.f32.mrf.mxu0
      %v643 = vadd.f32 %v427, %v642
      %v644 = vpop.f32.mrf.mxu0
      %v645 = vadd.f32 %v427, %v644
      %646 = vmatmul.bf16.gmra.mxu0 %v506
      %v647 = vpop.f32.mrf.mxu0
      %v648 = vadd.f32 %v427, %v647
      %v649 = vpop.f32.mrf.mxu0
      %v650 = vadd.f32 %v427, %v649
      %651 = vmatmul.bf16.gmra.mxu0 %v507
      %v652 = vpop.f32.mrf.mxu0
      %v653 = vadd.f32 %v427, %v652
      %v654 = vpop.f32.mrf.mxu0
      %v655 = vadd.f32 %v427, %v654
      %656 = vmatmul.bf16.gmra.mxu0 %v508
      %v657 = vpop.f32.mrf.mxu0
      %v658 = vadd.f32 %v427, %v657
      %v659 = vpop.f32.mrf.mxu0
      %v660 = vadd.f32 %v427, %v659
      %661 = vdwg.mxu0
      %v662 = vmax.f32 %v583, 0.0
      %v663 = vmax.f32 %v585, 0.0
      %v664 = vmax.f32 %v588, 0.0
      %v665 = vmax.f32 %v590, 0.0
      %v666 = vmax.f32 %v593, 0.0
      %v667 = vmax.f32 %v595, 0.0
      %v668 = vmax.f32 %v598, 0.0
      %v669 = vmax.f32 %v600, 0.0
      %v670 = vmax.f32 %v603, 0.0
      %v671 = vmax.f32 %v605, 0.0
      %v672 = vmax.f32 %v608, 0.0
      %v673 = vmax.f32 %v610, 0.0
      %v674 = vmax.f32 %v613, 0.0
      %v675 = vmax.f32 %v615, 0.0
      %v676 = vmax.f32 %v618, 0.0
      %v677 = vmax.f32 %v620, 0.0
      %v678 = vmax.f32 %v623, 0.0
      %v679 = vmax.f32 %v625, 0.0
      %v680 = vmax.f32 %v628, 0.0
      %v681 = vmax.f32 %v630, 0.0
      %v682 = vmax.f32 %v633, 0.0
      %v683 = vmax.f32 %v635, 0.0
      %v684 = vmax.f32 %v638, 0.0
      %v685 = vmax.f32 %v640, 0.0
      %v686 = vmax.f32 %v643, 0.0
      %v687 = vmax.f32 %v645, 0.0
      %v688 = vmax.f32 %v648, 0.0
      %v689 = vmax.f32 %v650, 0.0
      %v690 = vmax.f32 %v653, 0.0
      %v691 = vmax.f32 %v655, 0.0
      %v692 = vmax.f32 %v658, 0.0
      %v693 = vmax.f32 %v660, 0.0
      %v694 = vpack.c.bf16 %v663, %v662
      %v695 = vpack.c.bf16 %v665, %v664
      %v696 = vpack.c.bf16 %v667, %v666
      %v697 = vpack.c.bf16 %v669, %v668
      %v698 = vpack.c.bf16 %v671, %v670
      %v699 = vpack.c.bf16 %v673, %v672
      %v700 = vpack.c.bf16 %v675, %v674
      %v701 = vpack.c.bf16 %v677, %v676
      %v702 = vpack.c.bf16 %v679, %v678
      %v703 = vpack.c.bf16 %v681, %v680
      %v704 = vpack.c.bf16 %v683, %v682
      %v705 = vpack.c.bf16 %v685, %v684
      %v706 = vpack.c.bf16 %v687, %v686
      %v707 = vpack.c.bf16 %v689, %v688
      %v708 = vpack.c.bf16 %v691, %v690
      %v709 = vpack.c.bf16 %v693, %v692
      %v710 = vld [vmem:[%s3] sm:$0xf]
      %v711 = vld [vmem:[%s3 + $0x4] sm:$0xf]
      %v712 = vld [vmem:[%s3 + $0x8] sm:$0xf]
      %v713 = vld [vmem:[%s3 + $0xc] sm:$0xf]
      %v714 = vld [vmem:[%s3 + $0x10] sm:$0xf]
      %v715 = vld [vmem:[%s3 + $0x14] sm:$0xf]
      %v716 = vld [vmem:[%s3 + $0x18] sm:$0xf]
      %v717 = vld [vmem:[%s3 + $0x1c] sm:$0xf]
      %v718 = vld [vmem:[%s3 + $0x20] sm:$0xf]
      %v719 = vld [vmem:[%s3 + $0x24] sm:$0xf]
      %v720 = vld [vmem:[%s3 + $0x28] sm:$0xf]
      %v721 = vld [vmem:[%s3 + $0x2c] sm:$0xf]
      %v722 = vld [vmem:[%s3 + $0x30] sm:$0xf]
      %v723 = vld [vmem:[%s3 + $0x34] sm:$0xf]
      %v724 = vld [vmem:[%s3 + $0x38] sm:$0xf]
      %v725 = vld [vmem:[%s3 + $0x3c] sm:$0xf]
      %v726 = vld [vmem:[%s4] sm:$0x1]
      %v728 = vperm.slane %v726, 0
      %v746 = vunpack.c.l.b16 %v710
      %v747 = vunpack.c.l.b16 %v711
      %v748 = vunpack.c.l.b16 %v712
      %v749 = vunpack.c.l.b16 %v713
      %v750 = vunpack.c.l.b16 %v714
      %v751 = vunpack.c.l.b16 %v715
      %v752 = vunpack.c.l.b16 %v716
      %v753 = vunpack.c.l.b16 %v717
      %v754 = vunpack.c.l.b16 %v718
      %v755 = vunpack.c.l.b16 %v719
      %v756 = vunpack.c.l.b16 %v720
      %v757 = vunpack.c.l.b16 %v721
      %v758 = vunpack.c.l.b16 %v722
      %v759 = vunpack.c.l.b16 %v723
      %v760 = vunpack.c.l.b16 %v724
      %v761 = vunpack.c.l.b16 %v725
      %v762 = vpack.c.b16 %v747, %v746
      %v763 = vpack.c.b16 %v749, %v748
      %v764 = vpack.c.b16 %v751, %v750
      %v765 = vpack.c.b16 %v753, %v752
      %v766 = vpack.c.b16 %v755, %v754
      %v767 = vpack.c.b16 %v757, %v756
      %v768 = vpack.c.b16 %v759, %v758
      %v769 = vpack.c.b16 %v761, %v760
      %778 = vmatpush.bf16.msra.mxu0 %v769
      %779 = vmatpush.bf16.msra.mxu0 %v768
      %780 = vmatpush.bf16.msra.mxu0 %v767
      %781 = vmatpush.bf16.msra.mxu0 %v766
      %782 = vmatpush.bf16.msra.mxu0 %v765
      %783 = vmatpush.bf16.msra.mxu0 %v764
      %784 = vmatpush.bf16.msra.mxu0 %v763
      %785 = vmatpush.bf16.msra.mxu0 %v762
      %786 = vmatmul.bf16.gmra.mxu0 %v694
      %v787 = vpop.f32.mrf.mxu0
      %v788 = vadd.f32 %v728, %v787
      %v789 = vpop.f32.mrf.mxu0
      %v790 = vadd.f32 %v728, %v789
      %791 = vmatmul.bf16.gmra.mxu0 %v695
      %v792 = vpop.f32.mrf.mxu0
      %v793 = vadd.f32 %v728, %v792
      %v794 = vpop.f32.mrf.mxu0
      %v795 = vadd.f32 %v728, %v794
      %796 = vmatmul.bf16.gmra.mxu0 %v696
      %v797 = vpop.f32.mrf.mxu0
      %v798 = vadd.f32 %v728, %v797
      %v799 = vpop.f32.mrf.mxu0
      %v800 = vadd.f32 %v728, %v799
      %801 = vmatmul.bf16.gmra.mxu0 %v697
      %v802 = vpop.f32.mrf.mxu0
      %v803 = vadd.f32 %v728, %v802
      %v804 = vpop.f32.mrf.mxu0
      %v805 = vadd.f32 %v728, %v804
      %806 = vmatmul.bf16.gmra.mxu0 %v698
      %v807 = vpop.f32.mrf.mxu0
      %v808 = vadd.f32 %v728, %v807
      %v809 = vpop.f32.mrf.mxu0
      %v810 = vadd.f32 %v728, %v809
      %811 = vmatmul.bf16.gmra.mxu0 %v699
      %v812 = vpop.f32.mrf.mxu0
      %v813 = vadd.f32 %v728, %v812
      %v814 = vpop.f32.mrf.mxu0
      %v815 = vadd.f32 %v728, %v814
      %816 = vmatmul.bf16.gmra.mxu0 %v700
      %v817 = vpop.f32.mrf.mxu0
      %v818 = vadd.f32 %v728, %v817
      %v819 = vpop.f32.mrf.mxu0
      %v820 = vadd.f32 %v728, %v819
      %821 = vmatmul.bf16.gmra.mxu0 %v701
      %v822 = vpop.f32.mrf.mxu0
      %v823 = vadd.f32 %v728, %v822
      %v824 = vpop.f32.mrf.mxu0
      %v825 = vadd.f32 %v728, %v824
      %826 = vmatmul.bf16.gmra.mxu0 %v702
      %v827 = vpop.f32.mrf.mxu0
      %v828 = vadd.f32 %v728, %v827
      %v829 = vpop.f32.mrf.mxu0
      %v830 = vadd.f32 %v728, %v829
      %831 = vmatmul.bf16.gmra.mxu0 %v703
      %v832 = vpop.f32.mrf.mxu0
      %v833 = vadd.f32 %v728, %v832
      %v834 = vpop.f32.mrf.mxu0
      %v835 = vadd.f32 %v728, %v834
      %836 = vmatmul.bf16.gmra.mxu0 %v704
      %v837 = vpop.f32.mrf.mxu0
      %v838 = vadd.f32 %v728, %v837
      %v839 = vpop.f32.mrf.mxu0
      %v840 = vadd.f32 %v728, %v839
      %841 = vmatmul.bf16.gmra.mxu0 %v705
      %v842 = vpop.f32.mrf.mxu0
      %v843 = vadd.f32 %v728, %v842
      %v844 = vpop.f32.mrf.mxu0
      %v845 = vadd.f32 %v728, %v844
      %846 = vmatmul.bf16.gmra.mxu0 %v706
      %v847 = vpop.f32.mrf.mxu0
      %v848 = vadd.f32 %v728, %v847
      %v849 = vpop.f32.mrf.mxu0
      %v850 = vadd.f32 %v728, %v849
      %851 = vmatmul.bf16.gmra.mxu0 %v707
      %v852 = vpop.f32.mrf.mxu0
      %v853 = vadd.f32 %v728, %v852
      %v854 = vpop.f32.mrf.mxu0
      %v855 = vadd.f32 %v728, %v854
      %856 = vmatmul.bf16.gmra.mxu0 %v708
      %v857 = vpop.f32.mrf.mxu0
      %v858 = vadd.f32 %v728, %v857
      %v859 = vpop.f32.mrf.mxu0
      %v860 = vadd.f32 %v728, %v859
      %861 = vmatmul.bf16.gmra.mxu0 %v709
      %v862 = vpop.f32.mrf.mxu0
      %v863 = vadd.f32 %v728, %v862
      %v864 = vpop.f32.mrf.mxu0
      %v865 = vadd.f32 %v728, %v864
      %866 = vdwg.mxu0
      %v867 = vld [vmem:[%s5] sm:$0xf]
      %v868 = vld [vmem:[%s5 + $0x4] sm:$0xf]
      %v869 = vld [vmem:[%s5 + $0x8] sm:$0xf]
      %v870 = vld [vmem:[%s5 + $0xc] sm:$0xf]
      %v871 = vld [vmem:[%s5 + $0x10] sm:$0xf]
      %v872 = vld [vmem:[%s5 + $0x14] sm:$0xf]
      %v873 = vld [vmem:[%s5 + $0x18] sm:$0xf]
      %v874 = vld [vmem:[%s5 + $0x1c] sm:$0xf]
      %v875 = vld [vmem:[%s5 + $0x20] sm:$0xf]
      %v876 = vld [vmem:[%s5 + $0x24] sm:$0xf]
      %v877 = vld [vmem:[%s5 + $0x28] sm:$0xf]
      %v878 = vld [vmem:[%s5 + $0x2c] sm:$0xf]
      %v879 = vld [vmem:[%s5 + $0x30] sm:$0xf]
      %v880 = vld [vmem:[%s5 + $0x34] sm:$0xf]
      %v881 = vld [vmem:[%s5 + $0x38] sm:$0xf]
      %v882 = vld [vmem:[%s5 + $0x3c] sm:$0xf]
      %v883 = vld [vmem:[%s6] sm:$0x1]
      %v885 = vperm.slane %v883, 0
      %v903 = vunpack.c.l.b16 %v867
      %v904 = vunpack.c.l.b16 %v868
      %v905 = vunpack.c.l.b16 %v869
      %v906 = vunpack.c.l.b16 %v870
      %v907 = vunpack.c.l.b16 %v871
      %v908 = vunpack.c.l.b16 %v872
      %v909 = vunpack.c.l.b16 %v873
      %v910 = vunpack.c.l.b16 %v874
      %v911 = vunpack.c.l.b16 %v875
      %v912 = vunpack.c.l.b16 %v876
      %v913 = vunpack.c.l.b16 %v877
      %v914 = vunpack.c.l.b16 %v878
      %v915 = vunpack.c.l.b16 %v879
      %v916 = vunpack.c.l.b16 %v880
      %v917 = vunpack.c.l.b16 %v881
      %v918 = vunpack.c.l.b16 %v882
      %v919 = vpack.c.b16 %v904, %v903
      %v920 = vpack.c.b16 %v906, %v905
      %v921 = vpack.c.b16 %v908, %v907
      %v922 = vpack.c.b16 %v910, %v909
      %v923 = vpack.c.b16 %v912, %v911
      %v924 = vpack.c.b16 %v914, %v913
      %v925 = vpack.c.b16 %v916, %v915
      %v926 = vpack.c.b16 %v918, %v917
      %935 = vmatpush.bf16.msra.mxu0 %v926
      %936 = vmatpush.bf16.msra.mxu0 %v925
      %937 = vmatpush.bf16.msra.mxu0 %v924
      %938 = vmatpush.bf16.msra.mxu0 %v923
      %939 = vmatpush.bf16.msra.mxu0 %v922
      %940 = vmatpush.bf16.msra.mxu0 %v921
      %941 = vmatpush.bf16.msra.mxu0 %v920
      %942 = vmatpush.bf16.msra.mxu0 %v919
      %943 = vmatmul.bf16.gmra.mxu0 %v694
      %v944 = vpop.f32.mrf.mxu0
      %v945 = vadd.f32 %v885, %v944
      %v946 = vpop.f32.mrf.mxu0
      %v947 = vadd.f32 %v885, %v946
      %948 = vmatmul.bf16.gmra.mxu0 %v695
      %v949 = vpop.f32.mrf.mxu0
      %v950 = vadd.f32 %v885, %v949
      %v951 = vpop.f32.mrf.mxu0
      %v952 = vadd.f32 %v885, %v951
      %953 = vmatmul.bf16.gmra.mxu0 %v696
      %v954 = vpop.f32.mrf.mxu0
      %v955 = vadd.f32 %v885, %v954
      %v956 = vpop.f32.mrf.mxu0
      %v957 = vadd.f32 %v885, %v956
      %958 = vmatmul.bf16.gmra.mxu0 %v697
      %v959 = vpop.f32.mrf.mxu0
      %v960 = vadd.f32 %v885, %v959
      %v961 = vpop.f32.mrf.mxu0
      %v962 = vadd.f32 %v885, %v961
      %963 = vmatmul.bf16.gmra.mxu0 %v698
      %v964 = vpop.f32.mrf.mxu0
      %v965 = vadd.f32 %v885, %v964
      %v966 = vpop.f32.mrf.mxu0
      %v967 = vadd.f32 %v885, %v966
      %968 = vmatmul.bf16.gmra.mxu0 %v699
      %v969 = vpop.f32.mrf.mxu0
      %v970 = vadd.f32 %v885, %v969
      %v971 = vpop.f32.mrf.mxu0
      %v972 = vadd.f32 %v885, %v971
      %973 = vmatmul.bf16.gmra.mxu0 %v700
      %v974 = vpop.f32.mrf.mxu0
      %v975 = vadd.f32 %v885, %v974
      %v976 = vpop.f32.mrf.mxu0
      %v977 = vadd.f32 %v885, %v976
      %978 = vmatmul.bf16.gmra.mxu0 %v701
      %v979 = vpop.f32.mrf.mxu0
      %v980 = vadd.f32 %v885, %v979
      %v981 = vpop.f32.mrf.mxu0
      %v982 = vadd.f32 %v885, %v981
      %983 = vmatmul.bf16.gmra.mxu0 %v702
      %v984 = vpop.f32.mrf.mxu0
      %v985 = vadd.f32 %v885, %v984
      %v986 = vpop.f32.mrf.mxu0
      %v987 = vadd.f32 %v885, %v986
      %988 = vmatmul.bf16.gmra.mxu0 %v703
      %v989 = vpop.f32.mrf.mxu0
      %v990 = vadd.f32 %v885, %v989
      %v991 = vpop.f32.mrf.mxu0
      %v992 = vadd.f32 %v885, %v991
      %993 = vmatmul.bf16.gmra.mxu0 %v704
      %v994 = vpop.f32.mrf.mxu0
      %v995 = vadd.f32 %v885, %v994
      %v996 = vpop.f32.mrf.mxu0
      %v997 = vadd.f32 %v885, %v996
      %998 = vmatmul.bf16.gmra.mxu0 %v705
      %v999 = vpop.f32.mrf.mxu0
      %v1000 = vadd.f32 %v885, %v999
      %v1001 = vpop.f32.mrf.mxu0
      %v1002 = vadd.f32 %v885, %v1001
      %1003 = vmatmul.bf16.gmra.mxu0 %v706
      %v1004 = vpop.f32.mrf.mxu0
      %v1005 = vadd.f32 %v885, %v1004
      %v1006 = vpop.f32.mrf.mxu0
      %v1007 = vadd.f32 %v885, %v1006
      %1008 = vmatmul.bf16.gmra.mxu0 %v707
      %v1009 = vpop.f32.mrf.mxu0
      %v1010 = vadd.f32 %v885, %v1009
      %v1011 = vpop.f32.mrf.mxu0
      %v1012 = vadd.f32 %v885, %v1011
      %1013 = vmatmul.bf16.gmra.mxu0 %v708
      %v1014 = vpop.f32.mrf.mxu0
      %v1015 = vadd.f32 %v885, %v1014
      %v1016 = vpop.f32.mrf.mxu0
      %v1017 = vadd.f32 %v885, %v1016
      %1018 = vmatmul.bf16.gmra.mxu0 %v709
      %v1019 = vpop.f32.mrf.mxu0
      %v1020 = vadd.f32 %v885, %v1019
      %v1021 = vpop.f32.mrf.mxu0
      %v1022 = vadd.f32 %v885, %v1021
      %1023 = vdwg.mxu0
      %v1024 = vmax.f32 %v945, 0.0
      %v1025 = vmax.f32 %v947, 0.0
      %v1026 = vmax.f32 %v950, 0.0
      %v1027 = vmax.f32 %v952, 0.0
      %v1028 = vmax.f32 %v955, 0.0
      %v1029 = vmax.f32 %v957, 0.0
      %v1030 = vmax.f32 %v960, 0.0
      %v1031 = vmax.f32 %v962, 0.0
      %v1032 = vmax.f32 %v965, 0.0
      %v1033 = vmax.f32 %v967, 0.0
      %v1034 = vmax.f32 %v970, 0.0
      %v1035 = vmax.f32 %v972, 0.0
      %v1036 = vmax.f32 %v975, 0.0
      %v1037 = vmax.f32 %v977, 0.0
      %v1038 = vmax.f32 %v980, 0.0
      %v1039 = vmax.f32 %v982, 0.0
      %v1040 = vmax.f32 %v985, 0.0
      %v1041 = vmax.f32 %v987, 0.0
      %v1042 = vmax.f32 %v990, 0.0
      %v1043 = vmax.f32 %v992, 0.0
      %v1044 = vmax.f32 %v995, 0.0
      %v1045 = vmax.f32 %v997, 0.0
      %v1046 = vmax.f32 %v1000, 0.0
      %v1047 = vmax.f32 %v1002, 0.0
      %v1048 = vmax.f32 %v1005, 0.0
      %v1049 = vmax.f32 %v1007, 0.0
      %v1050 = vmax.f32 %v1010, 0.0
      %v1051 = vmax.f32 %v1012, 0.0
      %v1052 = vmax.f32 %v1015, 0.0
      %v1053 = vmax.f32 %v1017, 0.0
      %v1054 = vmax.f32 %v1020, 0.0
      %v1055 = vmax.f32 %v1022, 0.0
      %v1056 = vpack.c.bf16 %v1025, %v1024
      %v1057 = vpack.c.bf16 %v1027, %v1026
      %v1058 = vpack.c.bf16 %v1029, %v1028
      %v1059 = vpack.c.bf16 %v1031, %v1030
      %v1060 = vpack.c.bf16 %v1033, %v1032
      %v1061 = vpack.c.bf16 %v1035, %v1034
      %v1062 = vpack.c.bf16 %v1037, %v1036
      %v1063 = vpack.c.bf16 %v1039, %v1038
      %v1064 = vpack.c.bf16 %v1041, %v1040
      %v1065 = vpack.c.bf16 %v1043, %v1042
      %v1066 = vpack.c.bf16 %v1045, %v1044
      %v1067 = vpack.c.bf16 %v1047, %v1046
      %v1068 = vpack.c.bf16 %v1049, %v1048
      %v1069 = vpack.c.bf16 %v1051, %v1050
      %v1070 = vpack.c.bf16 %v1053, %v1052
      %v1071 = vpack.c.bf16 %v1055, %v1054
      %v1072 = vld [vmem:[%s7] sm:$0xf]
      %v1073 = vld [vmem:[%s7 + $0x4] sm:$0xf]
      %v1074 = vld [vmem:[%s7 + $0x8] sm:$0xf]
      %v1075 = vld [vmem:[%s7 + $0xc] sm:$0xf]
      %v1076 = vld [vmem:[%s7 + $0x10] sm:$0xf]
      %v1077 = vld [vmem:[%s7 + $0x14] sm:$0xf]
      %v1078 = vld [vmem:[%s7 + $0x18] sm:$0xf]
      %v1079 = vld [vmem:[%s7 + $0x1c] sm:$0xf]
      %v1080 = vld [vmem:[%s7 + $0x20] sm:$0xf]
      %v1081 = vld [vmem:[%s7 + $0x24] sm:$0xf]
      %v1082 = vld [vmem:[%s7 + $0x28] sm:$0xf]
      %v1083 = vld [vmem:[%s7 + $0x2c] sm:$0xf]
      %v1084 = vld [vmem:[%s7 + $0x30] sm:$0xf]
      %v1085 = vld [vmem:[%s7 + $0x34] sm:$0xf]
      %v1086 = vld [vmem:[%s7 + $0x38] sm:$0xf]
      %v1087 = vld [vmem:[%s7 + $0x3c] sm:$0xf]
      %v1104 = vunpack.c.l.b16 %v1072
      %v1105 = vunpack.c.l.b16 %v1073
      %v1106 = vunpack.c.l.b16 %v1074
      %v1107 = vunpack.c.l.b16 %v1075
      %v1108 = vunpack.c.l.b16 %v1076
      %v1109 = vunpack.c.l.b16 %v1077
      %v1110 = vunpack.c.l.b16 %v1078
      %v1111 = vunpack.c.l.b16 %v1079
      %v1112 = vunpack.c.l.b16 %v1080
      %v1113 = vunpack.c.l.b16 %v1081
      %v1114 = vunpack.c.l.b16 %v1082
      %v1115 = vunpack.c.l.b16 %v1083
      %v1116 = vunpack.c.l.b16 %v1084
      %v1117 = vunpack.c.l.b16 %v1085
      %v1118 = vunpack.c.l.b16 %v1086
      %v1119 = vunpack.c.l.b16 %v1087
      %v1120 = vpack.c.b16 %v1105, %v1104
      %v1121 = vpack.c.b16 %v1107, %v1106
      %v1122 = vpack.c.b16 %v1109, %v1108
      %v1123 = vpack.c.b16 %v1111, %v1110
      %v1124 = vpack.c.b16 %v1113, %v1112
      %v1125 = vpack.c.b16 %v1115, %v1114
      %v1126 = vpack.c.b16 %v1117, %v1116
      %v1127 = vpack.c.b16 %v1119, %v1118
      %1136 = vmatpush.bf16.msra.mxu0 %v1127
      %1137 = vmatpush.bf16.msra.mxu0 %v1126
      %1138 = vmatpush.bf16.msra.mxu0 %v1125
      %1139 = vmatpush.bf16.msra.mxu0 %v1124
      %1140 = vmatpush.bf16.msra.mxu0 %v1123
      %1141 = vmatpush.bf16.msra.mxu0 %v1122
      %1142 = vmatpush.bf16.msra.mxu0 %v1121
      %1143 = vmatpush.bf16.msra.mxu0 %v1120
      %1144 = vmatmul.bf16.gmra.mxu0 %v1056
      %v1145 = vpop.f32.mrf.mxu0
      %v1146 = vadd.f32 0.0, %v1145
      %v1147 = vpop.f32.mrf.mxu0
      %v1148 = vadd.f32 0.0, %v1147
      %1149 = vmatmul.bf16.gmra.mxu0 %v1057
      %v1150 = vpop.f32.mrf.mxu0
      %v1151 = vadd.f32 0.0, %v1150
      %v1152 = vpop.f32.mrf.mxu0
      %v1153 = vadd.f32 0.0, %v1152
      %1154 = vmatmul.bf16.gmra.mxu0 %v1058
      %v1155 = vpop.f32.mrf.mxu0
      %v1156 = vadd.f32 0.0, %v1155
      %v1157 = vpop.f32.mrf.mxu0
      %v1158 = vadd.f32 0.0, %v1157
      %1159 = vmatmul.bf16.gmra.mxu0 %v1059
      %v1160 = vpop.f32.mrf.mxu0
      %v1161 = vadd.f32 0.0, %v1160
      %v1162 = vpop.f32.mrf.mxu0
      %v1163 = vadd.f32 0.0, %v1162
      %1164 = vmatmul.bf16.gmra.mxu0 %v1060
      %v1165 = vpop.f32.mrf.mxu0
      %v1166 = vadd.f32 0.0, %v1165
      %v1167 = vpop.f32.mrf.mxu0
      %v1168 = vadd.f32 0.0, %v1167
      %1169 = vmatmul.bf16.gmra.mxu0 %v1061
      %v1170 = vpop.f32.mrf.mxu0
      %v1171 = vadd.f32 0.0, %v1170
      %v1172 = vpop.f32.mrf.mxu0
      %v1173 = vadd.f32 0.0, %v1172
      %1174 = vmatmul.bf16.gmra.mxu0 %v1062
      %v1175 = vpop.f32.mrf.mxu0
      %v1176 = vadd.f32 0.0, %v1175
      %v1177 = vpop.f32.mrf.mxu0
      %v1178 = vadd.f32 0.0, %v1177
      %1179 = vmatmul.bf16.gmra.mxu0 %v1063
      %v1180 = vpop.f32.mrf.mxu0
      %v1181 = vadd.f32 0.0, %v1180
      %v1182 = vpop.f32.mrf.mxu0
      %v1183 = vadd.f32 0.0, %v1182
      %1184 = vmatmul.bf16.gmra.mxu0 %v1064
      %v1185 = vpop.f32.mrf.mxu0
      %v1186 = vadd.f32 0.0, %v1185
      %v1187 = vpop.f32.mrf.mxu0
      %v1188 = vadd.f32 0.0, %v1187
      %1189 = vmatmul.bf16.gmra.mxu0 %v1065
      %v1190 = vpop.f32.mrf.mxu0
      %v1191 = vadd.f32 0.0, %v1190
      %v1192 = vpop.f32.mrf.mxu0
      %v1193 = vadd.f32 0.0, %v1192
      %1194 = vmatmul.bf16.gmra.mxu0 %v1066
      %v1195 = vpop.f32.mrf.mxu0
      %v1196 = vadd.f32 0.0, %v1195
      %v1197 = vpop.f32.mrf.mxu0
      %v1198 = vadd.f32 0.0, %v1197
      %1199 = vmatmul.bf16.gmra.mxu0 %v1067
      %v1200 = vpop.f32.mrf.mxu0
      %v1201 = vadd.f32 0.0, %v1200
      %v1202 = vpop.f32.mrf.mxu0
      %v1203 = vadd.f32 0.0, %v1202
      %1204 = vmatmul.bf16.gmra.mxu0 %v1068
      %v1205 = vpop.f32.mrf.mxu0
      %v1206 = vadd.f32 0.0, %v1205
      %v1207 = vpop.f32.mrf.mxu0
      %v1208 = vadd.f32 0.0, %v1207
      %1209 = vmatmul.bf16.gmra.mxu0 %v1069
      %v1210 = vpop.f32.mrf.mxu0
      %v1211 = vadd.f32 0.0, %v1210
      %v1212 = vpop.f32.mrf.mxu0
      %v1213 = vadd.f32 0.0, %v1212
      %1214 = vmatmul.bf16.gmra.mxu0 %v1070
      %v1215 = vpop.f32.mrf.mxu0
      %v1216 = vadd.f32 0.0, %v1215
      %v1217 = vpop.f32.mrf.mxu0
      %v1218 = vadd.f32 0.0, %v1217
      %1219 = vmatmul.bf16.gmra.mxu0 %v1071
      %v1220 = vpop.f32.mrf.mxu0
      %v1221 = vadd.f32 0.0, %v1220
      %v1222 = vpop.f32.mrf.mxu0
      %v1223 = vadd.f32 0.0, %v1222
      %1224 = vdwg.mxu0
      %v1225 = vadd.f32 %v788, %v1146
      %v1226 = vadd.f32 %v790, %v1148
      %v1227 = vadd.f32 %v793, %v1151
      %v1228 = vadd.f32 %v795, %v1153
      %v1229 = vadd.f32 %v798, %v1156
      %v1230 = vadd.f32 %v800, %v1158
      %v1231 = vadd.f32 %v803, %v1161
      %v1232 = vadd.f32 %v805, %v1163
      %v1233 = vadd.f32 %v808, %v1166
      %v1234 = vadd.f32 %v810, %v1168
      %v1235 = vadd.f32 %v813, %v1171
      %v1236 = vadd.f32 %v815, %v1173
      %v1237 = vadd.f32 %v818, %v1176
      %v1238 = vadd.f32 %v820, %v1178
      %v1239 = vadd.f32 %v823, %v1181
      %v1240 = vadd.f32 %v825, %v1183
      %v1241 = vadd.f32 %v828, %v1186
      %v1242 = vadd.f32 %v830, %v1188
      %v1243 = vadd.f32 %v833, %v1191
      %v1244 = vadd.f32 %v835, %v1193
      %v1245 = vadd.f32 %v838, %v1196
      %v1246 = vadd.f32 %v840, %v1198
      %v1247 = vadd.f32 %v843, %v1201
      %v1248 = vadd.f32 %v845, %v1203
      %v1249 = vadd.f32 %v848, %v1206
      %v1250 = vadd.f32 %v850, %v1208
      %v1251 = vadd.f32 %v853, %v1211
      %v1252 = vadd.f32 %v855, %v1213
      %v1253 = vadd.f32 %v858, %v1216
      %v1254 = vadd.f32 %v860, %v1218
      %v1255 = vadd.f32 %v863, %v1221
      %v1256 = vadd.f32 %v865, %v1223
      %v1257 = vld [vmem:[%s8] sm:$0x1]
      %v1259 = vperm.slane %v1257, 0
      %v1261 = vadd.f32 %v1225, %v1259
      %v1262 = vadd.f32 %v1226, %v1259
      %v1263 = vadd.f32 %v1227, %v1259
      %v1264 = vadd.f32 %v1228, %v1259
      %v1265 = vadd.f32 %v1229, %v1259
      %v1266 = vadd.f32 %v1230, %v1259
      %v1267 = vadd.f32 %v1231, %v1259
      %v1268 = vadd.f32 %v1232, %v1259
      %v1269 = vadd.f32 %v1233, %v1259
      %v1270 = vadd.f32 %v1234, %v1259
      %v1271 = vadd.f32 %v1235, %v1259
      %v1272 = vadd.f32 %v1236, %v1259
      %v1273 = vadd.f32 %v1237, %v1259
      %v1274 = vadd.f32 %v1238, %v1259
      %v1275 = vadd.f32 %v1239, %v1259
      %v1276 = vadd.f32 %v1240, %v1259
      %v1277 = vadd.f32 %v1241, %v1259
      %v1278 = vadd.f32 %v1242, %v1259
      %v1279 = vadd.f32 %v1243, %v1259
      %v1280 = vadd.f32 %v1244, %v1259
      %v1281 = vadd.f32 %v1245, %v1259
      %v1282 = vadd.f32 %v1246, %v1259
      %v1283 = vadd.f32 %v1247, %v1259
      %v1284 = vadd.f32 %v1248, %v1259
      %v1285 = vadd.f32 %v1249, %v1259
      %v1286 = vadd.f32 %v1250, %v1259
      %v1287 = vadd.f32 %v1251, %v1259
      %v1288 = vadd.f32 %v1252, %v1259
      %v1289 = vadd.f32 %v1253, %v1259
      %v1290 = vadd.f32 %v1254, %v1259
      %v1291 = vadd.f32 %v1255, %v1259
      %v1292 = vadd.f32 %v1256, %v1259
      %1293 = vst [vmem:[%s369] sm:$0xff] %v1261
      %1294 = vst [vmem:[%s369 + $0x8] sm:$0xff] %v1262
      %1295 = vst [vmem:[%s369 + $0x10] sm:$0xff] %v1263
      %1296 = vst [vmem:[%s369 + $0x18] sm:$0xff] %v1264
      %1297 = vst [vmem:[%s369 + $0x20] sm:$0xff] %v1265
      %1298 = vst [vmem:[%s369 + $0x28] sm:$0xff] %v1266
      %1299 = vst [vmem:[%s369 + $0x30] sm:$0xff] %v1267
      %1300 = vst [vmem:[%s369 + $0x38] sm:$0xff] %v1268
      %1301 = vst [vmem:[%s369 + $0x40] sm:$0xff] %v1269
      %1302 = vst [vmem:[%s369 + $0x48] sm:$0xff] %v1270
      %1303 = vst [vmem:[%s369 + $0x50] sm:$0xff] %v1271
      %1304 = vst [vmem:[%s369 + $0x58] sm:$0xff] %v1272
      %1305 = vst [vmem:[%s369 + $0x60] sm:$0xff] %v1273
      %1306 = vst [vmem:[%s369 + $0x68] sm:$0xff] %v1274
      %1307 = vst [vmem:[%s369 + $0x70] sm:$0xff] %v1275
      %1308 = vst [vmem:[%s369 + $0x78] sm:$0xff] %v1276
      %1309 = vst [vmem:[%s369 + $0x80] sm:$0xff] %v1277
      %1310 = vst [vmem:[%s369 + $0x88] sm:$0xff] %v1278
      %1311 = vst [vmem:[%s369 + $0x90] sm:$0xff] %v1279
      %1312 = vst [vmem:[%s369 + $0x98] sm:$0xff] %v1280
      %1313 = vst [vmem:[%s369 + $0xa0] sm:$0xff] %v1281
      %1314 = vst [vmem:[%s369 + $0xa8] sm:$0xff] %v1282
      %1315 = vst [vmem:[%s369 + $0xb0] sm:$0xff] %v1283
      %1316 = vst [vmem:[%s369 + $0xb8] sm:$0xff] %v1284
      %1317 = vst [vmem:[%s369 + $0xc0] sm:$0xff] %v1285
      %1318 = vst [vmem:[%s369 + $0xc8] sm:$0xff] %v1286
      %1319 = vst [vmem:[%s369 + $0xd0] sm:$0xff] %v1287
      %1320 = vst [vmem:[%s369 + $0xd8] sm:$0xff] %v1288
      %1321 = vst [vmem:[%s369 + $0xe0] sm:$0xff] %v1289
      %1322 = vst [vmem:[%s369 + $0xe8] sm:$0xff] %v1290
      %1323 = vst [vmem:[%s369 + $0xf0] sm:$0xff] %v1291
      %1324 = vst [vmem:[%s369 + $0xf8] sm:$0xff] %v1292
      %v1325 = vmul.f32 %v1261, %v1261
      %v1326 = vmul.f32 %v1262, %v1262
      %v1327 = vmul.f32 %v1263, %v1263
      %v1328 = vmul.f32 %v1264, %v1264
      %v1329 = vmul.f32 %v1265, %v1265
      %v1330 = vmul.f32 %v1266, %v1266
      %v1331 = vmul.f32 %v1267, %v1267
      %v1332 = vmul.f32 %v1268, %v1268
      %v1333 = vmul.f32 %v1269, %v1269
      %v1334 = vmul.f32 %v1270, %v1270
      %v1335 = vmul.f32 %v1271, %v1271
      %v1336 = vmul.f32 %v1272, %v1272
      %v1337 = vmul.f32 %v1273, %v1273
      %v1338 = vmul.f32 %v1274, %v1274
      %v1339 = vmul.f32 %v1275, %v1275
      %v1340 = vmul.f32 %v1276, %v1276
      %v1341 = vmul.f32 %v1277, %v1277
      %v1342 = vmul.f32 %v1278, %v1278
      %v1343 = vmul.f32 %v1279, %v1279
      %v1344 = vmul.f32 %v1280, %v1280
      %v1345 = vmul.f32 %v1281, %v1281
      %v1346 = vmul.f32 %v1282, %v1282
      %v1347 = vmul.f32 %v1283, %v1283
      %v1348 = vmul.f32 %v1284, %v1284
      %v1349 = vmul.f32 %v1285, %v1285
      %v1350 = vmul.f32 %v1286, %v1286
      %v1351 = vmul.f32 %v1287, %v1287
      %v1352 = vmul.f32 %v1288, %v1288
      %v1353 = vmul.f32 %v1289, %v1289
      %v1354 = vmul.f32 %v1290, %v1290
      %v1355 = vmul.f32 %v1291, %v1291
      %v1356 = vmul.f32 %v1292, %v1292
      %1357 = vadd.xlane.f32.xlu0 %v1325
      %v1358 = vpop.xlane.xlu0 %1357
      %1359 = vadd.xlane.f32.xlu0 %v1326
      %v1360 = vpop.xlane.xlu0 %1359
      %1361 = vadd.xlane.f32.xlu0 %v1327
      %v1362 = vpop.xlane.xlu0 %1361
      %1363 = vadd.xlane.f32.xlu0 %v1328
      %v1364 = vpop.xlane.xlu0 %1363
      %1365 = vadd.xlane.f32.xlu0 %v1329
      %v1366 = vpop.xlane.xlu0 %1365
      %1367 = vadd.xlane.f32.xlu0 %v1330
      %v1368 = vpop.xlane.xlu0 %1367
      %1369 = vadd.xlane.f32.xlu0 %v1331
      %v1370 = vpop.xlane.xlu0 %1369
      %1371 = vadd.xlane.f32.xlu0 %v1332
      %v1372 = vpop.xlane.xlu0 %1371
      %1373 = vadd.xlane.f32.xlu0 %v1333
      %v1374 = vpop.xlane.xlu0 %1373
      %1375 = vadd.xlane.f32.xlu0 %v1334
      %v1376 = vpop.xlane.xlu0 %1375
      %1377 = vadd.xlane.f32.xlu0 %v1335
      %v1378 = vpop.xlane.xlu0 %1377
      %1379 = vadd.xlane.f32.xlu0 %v1336
      %v1380 = vpop.xlane.xlu0 %1379
      %1381 = vadd.xlane.f32.xlu0 %v1337
      %v1382 = vpop.xlane.xlu0 %1381
      %1383 = vadd.xlane.f32.xlu0 %v1338
      %v1384 = vpop.xlane.xlu0 %1383
      %1385 = vadd.xlane.f32.xlu0 %v1339
      %v1386 = vpop.xlane.xlu0 %1385
      %1387 = vadd.xlane.f32.xlu0 %v1340
      %v1388 = vpop.xlane.xlu0 %1387
      %1389 = vadd.xlane.f32.xlu0 %v1341
      %v1390 = vpop.xlane.xlu0 %1389
      %1391 = vadd.xlane.f32.xlu0 %v1342
      %v1392 = vpop.xlane.xlu0 %1391
      %1393 = vadd.xlane.f32.xlu0 %v1343
      %v1394 = vpop.xlane.xlu0 %1393
      %1395 = vadd.xlane.f32.xlu0 %v1344
      %v1396 = vpop.xlane.xlu0 %1395
      %1397 = vadd.xlane.f32.xlu0 %v1345
      %v1398 = vpop.xlane.xlu0 %1397
      %1399 = vadd.xlane.f32.xlu0 %v1346
      %v1400 = vpop.xlane.xlu0 %1399
      %1401 = vadd.xlane.f32.xlu0 %v1347
      %v1402 = vpop.xlane.xlu0 %1401
      %1403 = vadd.xlane.f32.xlu0 %v1348
      %v1404 = vpop.xlane.xlu0 %1403
      %1405 = vadd.xlane.f32.xlu0 %v1349
      %v1406 = vpop.xlane.xlu0 %1405
      %1407 = vadd.xlane.f32.xlu0 %v1350
      %v1408 = vpop.xlane.xlu0 %1407
      %1409 = vadd.xlane.f32.xlu0 %v1351
      %v1410 = vpop.xlane.xlu0 %1409
      %1411 = vadd.xlane.f32.xlu0 %v1352
      %v1412 = vpop.xlane.xlu0 %1411
      %1413 = vadd.xlane.f32.xlu0 %v1353
      %v1414 = vpop.xlane.xlu0 %1413
      %1415 = vadd.xlane.f32.xlu0 %v1354
      %v1416 = vpop.xlane.xlu0 %1415
      %1417 = vadd.xlane.f32.xlu0 %v1355
      %v1418 = vpop.xlane.xlu0 %1417
      %1419 = vadd.xlane.f32.xlu0 %v1356
      %v1420 = vpop.xlane.xlu0 %1419
      %v1421 = vrsqrt.pop %v1358
      %v1422 = vmul.f32 %v1421, %v1358
      %v1423 = vmul.f32 %v1422, %v1421
      %v1424 = vmul.f32 0.5, %v1423
      %v1425 = vsub.f32 1.5, %v1424
      %v1426 = vmul.f32 %v1421, %v1425
      %v1427 = vmul.f32 %v1358, %v1426
      %vm1428 = vcmp.eq.f32.partialorder %v1358, inf
      %v1429 = vsel %vm1428, %v1358, %v1427
      %vm1430 = vcmp.eq.f32.partialorder %v1358, 0.0
      %v1431 = vand.u32 %v1358, 2147483648
      %v1432 = vsel %vm1430, %v1431, %v1429
      %v1433 = vrsqrt.pop %v1360
      %v1434 = vmul.f32 %v1433, %v1360
      %v1435 = vmul.f32 %v1434, %v1433
      %v1436 = vmul.f32 0.5, %v1435
      %v1437 = vsub.f32 1.5, %v1436
      %v1438 = vmul.f32 %v1433, %v1437
      %v1439 = vmul.f32 %v1360, %v1438
      %vm1440 = vcmp.eq.f32.partialorder %v1360, inf
      %v1441 = vsel %vm1440, %v1360, %v1439
      %vm1442 = vcmp.eq.f32.partialorder %v1360, 0.0
      %v1443 = vand.u32 %v1360, 2147483648
      %v1444 = vsel %vm1442, %v1443, %v1441
      %v1445 = vrsqrt.pop %v1362
      %v1446 = vmul.f32 %v1445, %v1362
      %v1447 = vmul.f32 %v1446, %v1445
      %v1448 = vmul.f32 0.5, %v1447
      %v1449 = vsub.f32 1.5, %v1448
      %v1450 = vmul.f32 %v1445, %v1449
      %v1451 = vmul.f32 %v1362, %v1450
      %vm1452 = vcmp.eq.f32.partialorder %v1362, inf
      %v1453 = vsel %vm1452, %v1362, %v1451
      %vm1454 = vcmp.eq.f32.partialorder %v1362, 0.0
      %v1455 = vand.u32 %v1362, 2147483648
      %v1456 = vsel %vm1454, %v1455, %v1453
      %v1457 = vrsqrt.pop %v1364
      %v1458 = vmul.f32 %v1457, %v1364
      %v1459 = vmul.f32 %v1458, %v1457
      %v1460 = vmul.f32 0.5, %v1459
      %v1461 = vsub.f32 1.5, %v1460
      %v1462 = vmul.f32 %v1457, %v1461
      %v1463 = vmul.f32 %v1364, %v1462
      %vm1464 = vcmp.eq.f32.partialorder %v1364, inf
      %v1465 = vsel %vm1464, %v1364, %v1463
      %vm1466 = vcmp.eq.f32.partialorder %v1364, 0.0
      %v1467 = vand.u32 %v1364, 2147483648
      %v1468 = vsel %vm1466, %v1467, %v1465
      %v1469 = vrsqrt.pop %v1366
      %v1470 = vmul.f32 %v1469, %v1366
      %v1471 = vmul.f32 %v1470, %v1469
      %v1472 = vmul.f32 0.5, %v1471
      %v1473 = vsub.f32 1.5, %v1472
      %v1474 = vmul.f32 %v1469, %v1473
      %v1475 = vmul.f32 %v1366, %v1474
      %vm1476 = vcmp.eq.f32.partialorder %v1366, inf
      %v1477 = vsel %vm1476, %v1366, %v1475
      %vm1478 = vcmp.eq.f32.partialorder %v1366, 0.0
      %v1479 = vand.u32 %v1366, 2147483648
      %v1480 = vsel %vm1478, %v1479, %v1477
      %v1481 = vrsqrt.pop %v1368
      %v1482 = vmul.f32 %v1481, %v1368
      %v1483 = vmul.f32 %v1482, %v1481
      %v1484 = vmul.f32 0.5, %v1483
      %v1485 = vsub.f32 1.5, %v1484
      %v1486 = vmul.f32 %v1481, %v1485
      %v1487 = vmul.f32 %v1368, %v1486
      %vm1488 = vcmp.eq.f32.partialorder %v1368, inf
      %v1489 = vsel %vm1488, %v1368, %v1487
      %vm1490 = vcmp.eq.f32.partialorder %v1368, 0.0
      %v1491 = vand.u32 %v1368, 2147483648
      %v1492 = vsel %vm1490, %v1491, %v1489
      %v1493 = vrsqrt.pop %v1370
      %v1494 = vmul.f32 %v1493, %v1370
      %v1495 = vmul.f32 %v1494, %v1493
      %v1496 = vmul.f32 0.5, %v1495
      %v1497 = vsub.f32 1.5, %v1496
      %v1498 = vmul.f32 %v1493, %v1497
      %v1499 = vmul.f32 %v1370, %v1498
      %vm1500 = vcmp.eq.f32.partialorder %v1370, inf
      %v1501 = vsel %vm1500, %v1370, %v1499
      %vm1502 = vcmp.eq.f32.partialorder %v1370, 0.0
      %v1503 = vand.u32 %v1370, 2147483648
      %v1504 = vsel %vm1502, %v1503, %v1501
      %v1505 = vrsqrt.pop %v1372
      %v1506 = vmul.f32 %v1505, %v1372
      %v1507 = vmul.f32 %v1506, %v1505
      %v1508 = vmul.f32 0.5, %v1507
      %v1509 = vsub.f32 1.5, %v1508
      %v1510 = vmul.f32 %v1505, %v1509
      %v1511 = vmul.f32 %v1372, %v1510
      %vm1512 = vcmp.eq.f32.partialorder %v1372, inf
      %v1513 = vsel %vm1512, %v1372, %v1511
      %vm1514 = vcmp.eq.f32.partialorder %v1372, 0.0
      %v1515 = vand.u32 %v1372, 2147483648
      %v1516 = vsel %vm1514, %v1515, %v1513
      %v1517 = vrsqrt.pop %v1374
      %v1518 = vmul.f32 %v1517, %v1374
      %v1519 = vmul.f32 %v1518, %v1517
      %v1520 = vmul.f32 0.5, %v1519
      %v1521 = vsub.f32 1.5, %v1520
      %v1522 = vmul.f32 %v1517, %v1521
      %v1523 = vmul.f32 %v1374, %v1522
      %vm1524 = vcmp.eq.f32.partialorder %v1374, inf
      %v1525 = vsel %vm1524, %v1374, %v1523
      %vm1526 = vcmp.eq.f32.partialorder %v1374, 0.0
      %v1527 = vand.u32 %v1374, 2147483648
      %v1528 = vsel %vm1526, %v1527, %v1525
      %v1529 = vrsqrt.pop %v1376
      %v1530 = vmul.f32 %v1529, %v1376
      %v1531 = vmul.f32 %v1530, %v1529
      %v1532 = vmul.f32 0.5, %v1531
      %v1533 = vsub.f32 1.5, %v1532
      %v1534 = vmul.f32 %v1529, %v1533
      %v1535 = vmul.f32 %v1376, %v1534
      %vm1536 = vcmp.eq.f32.partialorder %v1376, inf
      %v1537 = vsel %vm1536, %v1376, %v1535
      %vm1538 = vcmp.eq.f32.partialorder %v1376, 0.0
      %v1539 = vand.u32 %v1376, 2147483648
      %v1540 = vsel %vm1538, %v1539, %v1537
      %v1541 = vrsqrt.pop %v1378
      %v1542 = vmul.f32 %v1541, %v1378
      %v1543 = vmul.f32 %v1542, %v1541
      %v1544 = vmul.f32 0.5, %v1543
      %v1545 = vsub.f32 1.5, %v1544
      %v1546 = vmul.f32 %v1541, %v1545
      %v1547 = vmul.f32 %v1378, %v1546
      %vm1548 = vcmp.eq.f32.partialorder %v1378, inf
      %v1549 = vsel %vm1548, %v1378, %v1547
      %vm1550 = vcmp.eq.f32.partialorder %v1378, 0.0
      %v1551 = vand.u32 %v1378, 2147483648
      %v1552 = vsel %vm1550, %v1551, %v1549
      %v1553 = vrsqrt.pop %v1380
      %v1554 = vmul.f32 %v1553, %v1380
      %v1555 = vmul.f32 %v1554, %v1553
      %v1556 = vmul.f32 0.5, %v1555
      %v1557 = vsub.f32 1.5, %v1556
      %v1558 = vmul.f32 %v1553, %v1557
      %v1559 = vmul.f32 %v1380, %v1558
      %vm1560 = vcmp.eq.f32.partialorder %v1380, inf
      %v1561 = vsel %vm1560, %v1380, %v1559
      %vm1562 = vcmp.eq.f32.partialorder %v1380, 0.0
      %v1563 = vand.u32 %v1380, 2147483648
      %v1564 = vsel %vm1562, %v1563, %v1561
      %v1565 = vrsqrt.pop %v1382
      %v1566 = vmul.f32 %v1565, %v1382
      %v1567 = vmul.f32 %v1566, %v1565
      %v1568 = vmul.f32 0.5, %v1567
      %v1569 = vsub.f32 1.5, %v1568
      %v1570 = vmul.f32 %v1565, %v1569
      %v1571 = vmul.f32 %v1382, %v1570
      %vm1572 = vcmp.eq.f32.partialorder %v1382, inf
      %v1573 = vsel %vm1572, %v1382, %v1571
      %vm1574 = vcmp.eq.f32.partialorder %v1382, 0.0
      %v1575 = vand.u32 %v1382, 2147483648
      %v1576 = vsel %vm1574, %v1575, %v1573
      %v1577 = vrsqrt.pop %v1384
      %v1578 = vmul.f32 %v1577, %v1384
      %v1579 = vmul.f32 %v1578, %v1577
      %v1580 = vmul.f32 0.5, %v1579
      %v1581 = vsub.f32 1.5, %v1580
      %v1582 = vmul.f32 %v1577, %v1581
      %v1583 = vmul.f32 %v1384, %v1582
      %vm1584 = vcmp.eq.f32.partialorder %v1384, inf
      %v1585 = vsel %vm1584, %v1384, %v1583
      %vm1586 = vcmp.eq.f32.partialorder %v1384, 0.0
      %v1587 = vand.u32 %v1384, 2147483648
      %v1588 = vsel %vm1586, %v1587, %v1585
      %v1589 = vrsqrt.pop %v1386
      %v1590 = vmul.f32 %v1589, %v1386
      %v1591 = vmul.f32 %v1590, %v1589
      %v1592 = vmul.f32 0.5, %v1591
      %v1593 = vsub.f32 1.5, %v1592
      %v1594 = vmul.f32 %v1589, %v1593
      %v1595 = vmul.f32 %v1386, %v1594
      %vm1596 = vcmp.eq.f32.partialorder %v1386, inf
      %v1597 = vsel %vm1596, %v1386, %v1595
      %vm1598 = vcmp.eq.f32.partialorder %v1386, 0.0
      %v1599 = vand.u32 %v1386, 2147483648
      %v1600 = vsel %vm1598, %v1599, %v1597
      %v1601 = vrsqrt.pop %v1388
      %v1602 = vmul.f32 %v1601, %v1388
      %v1603 = vmul.f32 %v1602, %v1601
      %v1604 = vmul.f32 0.5, %v1603
      %v1605 = vsub.f32 1.5, %v1604
      %v1606 = vmul.f32 %v1601, %v1605
      %v1607 = vmul.f32 %v1388, %v1606
      %vm1608 = vcmp.eq.f32.partialorder %v1388, inf
      %v1609 = vsel %vm1608, %v1388, %v1607
      %vm1610 = vcmp.eq.f32.partialorder %v1388, 0.0
      %v1611 = vand.u32 %v1388, 2147483648
      %v1612 = vsel %vm1610, %v1611, %v1609
      %v1613 = vrsqrt.pop %v1390
      %v1614 = vmul.f32 %v1613, %v1390
      %v1615 = vmul.f32 %v1614, %v1613
      %v1616 = vmul.f32 0.5, %v1615
      %v1617 = vsub.f32 1.5, %v1616
      %v1618 = vmul.f32 %v1613, %v1617
      %v1619 = vmul.f32 %v1390, %v1618
      %vm1620 = vcmp.eq.f32.partialorder %v1390, inf
      %v1621 = vsel %vm1620, %v1390, %v1619
      %vm1622 = vcmp.eq.f32.partialorder %v1390, 0.0
      %v1623 = vand.u32 %v1390, 2147483648
      %v1624 = vsel %vm1622, %v1623, %v1621
      %v1625 = vrsqrt.pop %v1392
      %v1626 = vmul.f32 %v1625, %v1392
      %v1627 = vmul.f32 %v1626, %v1625
      %v1628 = vmul.f32 0.5, %v1627
      %v1629 = vsub.f32 1.5, %v1628
      %v1630 = vmul.f32 %v1625, %v1629
      %v1631 = vmul.f32 %v1392, %v1630
      %vm1632 = vcmp.eq.f32.partialorder %v1392, inf
      %v1633 = vsel %vm1632, %v1392, %v1631
      %vm1634 = vcmp.eq.f32.partialorder %v1392, 0.0
      %v1635 = vand.u32 %v1392, 2147483648
      %v1636 = vsel %vm1634, %v1635, %v1633
      %v1637 = vrsqrt.pop %v1394
      %v1638 = vmul.f32 %v1637, %v1394
      %v1639 = vmul.f32 %v1638, %v1637
      %v1640 = vmul.f32 0.5, %v1639
      %v1641 = vsub.f32 1.5, %v1640
      %v1642 = vmul.f32 %v1637, %v1641
      %v1643 = vmul.f32 %v1394, %v1642
      %vm1644 = vcmp.eq.f32.partialorder %v1394, inf
      %v1645 = vsel %vm1644, %v1394, %v1643
      %vm1646 = vcmp.eq.f32.partialorder %v1394, 0.0
      %v1647 = vand.u32 %v1394, 2147483648
      %v1648 = vsel %vm1646, %v1647, %v1645
      %v1649 = vrsqrt.pop %v1396
      %v1650 = vmul.f32 %v1649, %v1396
      %v1651 = vmul.f32 %v1650, %v1649
      %v1652 = vmul.f32 0.5, %v1651
      %v1653 = vsub.f32 1.5, %v1652
      %v1654 = vmul.f32 %v1649, %v1653
      %v1655 = vmul.f32 %v1396, %v1654
      %vm1656 = vcmp.eq.f32.partialorder %v1396, inf
      %v1657 = vsel %vm1656, %v1396, %v1655
      %vm1658 = vcmp.eq.f32.partialorder %v1396, 0.0
      %v1659 = vand.u32 %v1396, 2147483648
      %v1660 = vsel %vm1658, %v1659, %v1657
      %v1661 = vrsqrt.pop %v1398
      %v1662 = vmul.f32 %v1661, %v1398
      %v1663 = vmul.f32 %v1662, %v1661
      %v1664 = vmul.f32 0.5, %v1663
      %v1665 = vsub.f32 1.5, %v1664
      %v1666 = vmul.f32 %v1661, %v1665
      %v1667 = vmul.f32 %v1398, %v1666
      %vm1668 = vcmp.eq.f32.partialorder %v1398, inf
      %v1669 = vsel %vm1668, %v1398, %v1667
      %vm1670 = vcmp.eq.f32.partialorder %v1398, 0.0
      %v1671 = vand.u32 %v1398, 2147483648
      %v1672 = vsel %vm1670, %v1671, %v1669
      %v1673 = vrsqrt.pop %v1400
      %v1674 = vmul.f32 %v1673, %v1400
      %v1675 = vmul.f32 %v1674, %v1673
      %v1676 = vmul.f32 0.5, %v1675
      %v1677 = vsub.f32 1.5, %v1676
      %v1678 = vmul.f32 %v1673, %v1677
      %v1679 = vmul.f32 %v1400, %v1678
      %vm1680 = vcmp.eq.f32.partialorder %v1400, inf
      %v1681 = vsel %vm1680, %v1400, %v1679
      %vm1682 = vcmp.eq.f32.partialorder %v1400, 0.0
      %v1683 = vand.u32 %v1400, 2147483648
      %v1684 = vsel %vm1682, %v1683, %v1681
      %v1685 = vrsqrt.pop %v1402
      %v1686 = vmul.f32 %v1685, %v1402
      %v1687 = vmul.f32 %v1686, %v1685
      %v1688 = vmul.f32 0.5, %v1687
      %v1689 = vsub.f32 1.5, %v1688
      %v1690 = vmul.f32 %v1685, %v1689
      %v1691 = vmul.f32 %v1402, %v1690
      %vm1692 = vcmp.eq.f32.partialorder %v1402, inf
      %v1693 = vsel %vm1692, %v1402, %v1691
      %vm1694 = vcmp.eq.f32.partialorder %v1402, 0.0
      %v1695 = vand.u32 %v1402, 2147483648
      %v1696 = vsel %vm1694, %v1695, %v1693
      %v1697 = vrsqrt.pop %v1404
      %v1698 = vmul.f32 %v1697, %v1404
      %v1699 = vmul.f32 %v1698, %v1697
      %v1700 = vmul.f32 0.5, %v1699
      %v1701 = vsub.f32 1.5, %v1700
      %v1702 = vmul.f32 %v1697, %v1701
      %v1703 = vmul.f32 %v1404, %v1702
      %vm1704 = vcmp.eq.f32.partialorder %v1404, inf
      %v1705 = vsel %vm1704, %v1404, %v1703
      %vm1706 = vcmp.eq.f32.partialorder %v1404, 0.0
      %v1707 = vand.u32 %v1404, 2147483648
      %v1708 = vsel %vm1706, %v1707, %v1705
      %v1709 = vrsqrt.pop %v1406
      %v1710 = vmul.f32 %v1709, %v1406
      %v1711 = vmul.f32 %v1710, %v1709
      %v1712 = vmul.f32 0.5, %v1711
      %v1713 = vsub.f32 1.5, %v1712
      %v1714 = vmul.f32 %v1709, %v1713
      %v1715 = vmul.f32 %v1406, %v1714
      %vm1716 = vcmp.eq.f32.partialorder %v1406, inf
      %v1717 = vsel %vm1716, %v1406, %v1715
      %vm1718 = vcmp.eq.f32.partialorder %v1406, 0.0
      %v1719 = vand.u32 %v1406, 2147483648
      %v1720 = vsel %vm1718, %v1719, %v1717
      %v1721 = vrsqrt.pop %v1408
      %v1722 = vmul.f32 %v1721, %v1408
      %v1723 = vmul.f32 %v1722, %v1721
      %v1724 = vmul.f32 0.5, %v1723
      %v1725 = vsub.f32 1.5, %v1724
      %v1726 = vmul.f32 %v1721, %v1725
      %v1727 = vmul.f32 %v1408, %v1726
      %vm1728 = vcmp.eq.f32.partialorder %v1408, inf
      %v1729 = vsel %vm1728, %v1408, %v1727
      %vm1730 = vcmp.eq.f32.partialorder %v1408, 0.0
      %v1731 = vand.u32 %v1408, 2147483648
      %v1732 = vsel %vm1730, %v1731, %v1729
      %v1733 = vrsqrt.pop %v1410
      %v1734 = vmul.f32 %v1733, %v1410
      %v1735 = vmul.f32 %v1734, %v1733
      %v1736 = vmul.f32 0.5, %v1735
      %v1737 = vsub.f32 1.5, %v1736
      %v1738 = vmul.f32 %v1733, %v1737
      %v1739 = vmul.f32 %v1410, %v1738
      %vm1740 = vcmp.eq.f32.partialorder %v1410, inf
      %v1741 = vsel %vm1740, %v1410, %v1739
      %vm1742 = vcmp.eq.f32.partialorder %v1410, 0.0
      %v1743 = vand.u32 %v1410, 2147483648
      %v1744 = vsel %vm1742, %v1743, %v1741
      %v1745 = vrsqrt.pop %v1412
      %v1746 = vmul.f32 %v1745, %v1412
      %v1747 = vmul.f32 %v1746, %v1745
      %v1748 = vmul.f32 0.5, %v1747
      %v1749 = vsub.f32 1.5, %v1748
      %v1750 = vmul.f32 %v1745, %v1749
      %v1751 = vmul.f32 %v1412, %v1750
      %vm1752 = vcmp.eq.f32.partialorder %v1412, inf
      %v1753 = vsel %vm1752, %v1412, %v1751
      %vm1754 = vcmp.eq.f32.partialorder %v1412, 0.0
      %v1755 = vand.u32 %v1412, 2147483648
      %v1756 = vsel %vm1754, %v1755, %v1753
      %v1757 = vrsqrt.pop %v1414
      %v1758 = vmul.f32 %v1757, %v1414
      %v1759 = vmul.f32 %v1758, %v1757
      %v1760 = vmul.f32 0.5, %v1759
      %v1761 = vsub.f32 1.5, %v1760
      %v1762 = vmul.f32 %v1757, %v1761
      %v1763 = vmul.f32 %v1414, %v1762
      %vm1764 = vcmp.eq.f32.partialorder %v1414, inf
      %v1765 = vsel %vm1764, %v1414, %v1763
      %vm1766 = vcmp.eq.f32.partialorder %v1414, 0.0
      %v1767 = vand.u32 %v1414, 2147483648
      %v1768 = vsel %vm1766, %v1767, %v1765
      %v1769 = vrsqrt.pop %v1416
      %v1770 = vmul.f32 %v1769, %v1416
      %v1771 = vmul.f32 %v1770, %v1769
      %v1772 = vmul.f32 0.5, %v1771
      %v1773 = vsub.f32 1.5, %v1772
      %v1774 = vmul.f32 %v1769, %v1773
      %v1775 = vmul.f32 %v1416, %v1774
      %vm1776 = vcmp.eq.f32.partialorder %v1416, inf
      %v1777 = vsel %vm1776, %v1416, %v1775
      %vm1778 = vcmp.eq.f32.partialorder %v1416, 0.0
      %v1779 = vand.u32 %v1416, 2147483648
      %v1780 = vsel %vm1778, %v1779, %v1777
      %v1781 = vrsqrt.pop %v1418
      %v1782 = vmul.f32 %v1781, %v1418
      %v1783 = vmul.f32 %v1782, %v1781
      %v1784 = vmul.f32 0.5, %v1783
      %v1785 = vsub.f32 1.5, %v1784
      %v1786 = vmul.f32 %v1781, %v1785
      %v1787 = vmul.f32 %v1418, %v1786
      %vm1788 = vcmp.eq.f32.partialorder %v1418, inf
      %v1789 = vsel %vm1788, %v1418, %v1787
      %vm1790 = vcmp.eq.f32.partialorder %v1418, 0.0
      %v1791 = vand.u32 %v1418, 2147483648
      %v1792 = vsel %vm1790, %v1791, %v1789
      %v1793 = vrsqrt.pop %v1420
      %v1794 = vmul.f32 %v1793, %v1420
      %v1795 = vmul.f32 %v1794, %v1793
      %v1796 = vmul.f32 0.5, %v1795
      %v1797 = vsub.f32 1.5, %v1796
      %v1798 = vmul.f32 %v1793, %v1797
      %v1799 = vmul.f32 %v1420, %v1798
      %vm1800 = vcmp.eq.f32.partialorder %v1420, inf
      %v1801 = vsel %vm1800, %v1420, %v1799
      %vm1802 = vcmp.eq.f32.partialorder %v1420, 0.0
      %v1803 = vand.u32 %v1420, 2147483648
      %v1804 = vsel %vm1802, %v1803, %v1801
      %v1805 = vadd.f32 %v1432, 1e-08
      %v1806 = vadd.f32 %v1444, 1e-08
      %v1807 = vadd.f32 %v1456, 1e-08
      %v1808 = vadd.f32 %v1468, 1e-08
      %v1809 = vadd.f32 %v1480, 1e-08
      %v1810 = vadd.f32 %v1492, 1e-08
      %v1811 = vadd.f32 %v1504, 1e-08
      %v1812 = vadd.f32 %v1516, 1e-08
      %v1813 = vadd.f32 %v1528, 1e-08
      %v1814 = vadd.f32 %v1540, 1e-08
      %v1815 = vadd.f32 %v1552, 1e-08
      %v1816 = vadd.f32 %v1564, 1e-08
      %v1817 = vadd.f32 %v1576, 1e-08
      %v1818 = vadd.f32 %v1588, 1e-08
      %v1819 = vadd.f32 %v1600, 1e-08
      %v1820 = vadd.f32 %v1612, 1e-08
      %v1821 = vadd.f32 %v1624, 1e-08
      %v1822 = vadd.f32 %v1636, 1e-08
      %v1823 = vadd.f32 %v1648, 1e-08
      %v1824 = vadd.f32 %v1660, 1e-08
      %v1825 = vadd.f32 %v1672, 1e-08
      %v1826 = vadd.f32 %v1684, 1e-08
      %v1827 = vadd.f32 %v1696, 1e-08
      %v1828 = vadd.f32 %v1708, 1e-08
      %v1829 = vadd.f32 %v1720, 1e-08
      %v1830 = vadd.f32 %v1732, 1e-08
      %v1831 = vadd.f32 %v1744, 1e-08
      %v1832 = vadd.f32 %v1756, 1e-08
      %v1833 = vadd.f32 %v1768, 1e-08
      %v1834 = vadd.f32 %v1780, 1e-08
      %v1835 = vadd.f32 %v1792, 1e-08
      %v1836 = vadd.f32 %v1804, 1e-08
      %v1837 = vrcp.pop %v1805
      %v1838 = vrcp.pop %v1806
      %v1839 = vrcp.pop %v1807
      %v1840 = vrcp.pop %v1808
      %v1841 = vrcp.pop %v1809
      %v1842 = vrcp.pop %v1810
      %v1843 = vrcp.pop %v1811
      %v1844 = vrcp.pop %v1812
      %v1845 = vrcp.pop %v1813
      %v1846 = vrcp.pop %v1814
      %v1847 = vrcp.pop %v1815
      %v1848 = vrcp.pop %v1816
      %v1849 = vrcp.pop %v1817
      %v1850 = vrcp.pop %v1818
      %v1851 = vrcp.pop %v1819
      %v1852 = vrcp.pop %v1820
      %v1853 = vrcp.pop %v1821
      %v1854 = vrcp.pop %v1822
      %v1855 = vrcp.pop %v1823
      %v1856 = vrcp.pop %v1824
      %v1857 = vrcp.pop %v1825
      %v1858 = vrcp.pop %v1826
      %v1859 = vrcp.pop %v1827
      %v1860 = vrcp.pop %v1828
      %v1861 = vrcp.pop %v1829
      %v1862 = vrcp.pop %v1830
      %v1863 = vrcp.pop %v1831
      %v1864 = vrcp.pop %v1832
      %v1865 = vrcp.pop %v1833
      %v1866 = vrcp.pop %v1834
      %v1867 = vrcp.pop %v1835
      %v1868 = vrcp.pop %v1836
      %v1869 = vmul.f32 %v1261, %v1837
      %v1870 = vmul.f32 %v1262, %v1838
      %v1871 = vmul.f32 %v1263, %v1839
      %v1872 = vmul.f32 %v1264, %v1840
      %v1873 = vmul.f32 %v1265, %v1841
      %v1874 = vmul.f32 %v1266, %v1842
      %v1875 = vmul.f32 %v1267, %v1843
      %v1876 = vmul.f32 %v1268, %v1844
      %v1877 = vmul.f32 %v1269, %v1845
      %v1878 = vmul.f32 %v1270, %v1846
      %v1879 = vmul.f32 %v1271, %v1847
      %v1880 = vmul.f32 %v1272, %v1848
      %v1881 = vmul.f32 %v1273, %v1849
      %v1882 = vmul.f32 %v1274, %v1850
      %v1883 = vmul.f32 %v1275, %v1851
      %v1884 = vmul.f32 %v1276, %v1852
      %v1885 = vmul.f32 %v1277, %v1853
      %v1886 = vmul.f32 %v1278, %v1854
      %v1887 = vmul.f32 %v1279, %v1855
      %v1888 = vmul.f32 %v1280, %v1856
      %v1889 = vmul.f32 %v1281, %v1857
      %v1890 = vmul.f32 %v1282, %v1858
      %v1891 = vmul.f32 %v1283, %v1859
      %v1892 = vmul.f32 %v1284, %v1860
      %v1893 = vmul.f32 %v1285, %v1861
      %v1894 = vmul.f32 %v1286, %v1862
      %v1895 = vmul.f32 %v1287, %v1863
      %v1896 = vmul.f32 %v1288, %v1864
      %v1897 = vmul.f32 %v1289, %v1865
      %v1898 = vmul.f32 %v1290, %v1866
      %v1899 = vmul.f32 %v1291, %v1867
      %v1900 = vmul.f32 %v1292, %v1868
      %1901 = vst [vmem:[%s375] sm:$0xff] %v1869
      %1902 = vst [vmem:[%s375 + $0x8] sm:$0xff] %v1870
      %1903 = vst [vmem:[%s375 + $0x10] sm:$0xff] %v1871
      %1904 = vst [vmem:[%s375 + $0x18] sm:$0xff] %v1872
      %1905 = vst [vmem:[%s375 + $0x20] sm:$0xff] %v1873
      %1906 = vst [vmem:[%s375 + $0x28] sm:$0xff] %v1874
      %1907 = vst [vmem:[%s375 + $0x30] sm:$0xff] %v1875
      %1908 = vst [vmem:[%s375 + $0x38] sm:$0xff] %v1876
      %1909 = vst [vmem:[%s375 + $0x40] sm:$0xff] %v1877
      %1910 = vst [vmem:[%s375 + $0x48] sm:$0xff] %v1878
      %1911 = vst [vmem:[%s375 + $0x50] sm:$0xff] %v1879
      %1912 = vst [vmem:[%s375 + $0x58] sm:$0xff] %v1880
      %1913 = vst [vmem:[%s375 + $0x60] sm:$0xff] %v1881
      %1914 = vst [vmem:[%s375 + $0x68] sm:$0xff] %v1882
      %1915 = vst [vmem:[%s375 + $0x70] sm:$0xff] %v1883
      %1916 = vst [vmem:[%s375 + $0x78] sm:$0xff] %v1884
      %1917 = vst [vmem:[%s375 + $0x80] sm:$0xff] %v1885
      %1918 = vst [vmem:[%s375 + $0x88] sm:$0xff] %v1886
      %1919 = vst [vmem:[%s375 + $0x90] sm:$0xff] %v1887
      %1920 = vst [vmem:[%s375 + $0x98] sm:$0xff] %v1888
      %1921 = vst [vmem:[%s375 + $0xa0] sm:$0xff] %v1889
      %1922 = vst [vmem:[%s375 + $0xa8] sm:$0xff] %v1890
      %1923 = vst [vmem:[%s375 + $0xb0] sm:$0xff] %v1891
      %1924 = vst [vmem:[%s375 + $0xb8] sm:$0xff] %v1892
      %1925 = vst [vmem:[%s375 + $0xc0] sm:$0xff] %v1893
      %1926 = vst [vmem:[%s375 + $0xc8] sm:$0xff] %v1894
      %1927 = vst [vmem:[%s375 + $0xd0] sm:$0xff] %v1895
      %1928 = vst [vmem:[%s375 + $0xd8] sm:$0xff] %v1896
      %1929 = vst [vmem:[%s375 + $0xe0] sm:$0xff] %v1897
      %1930 = vst [vmem:[%s375 + $0xe8] sm:$0xff] %v1898
      %1931 = vst [vmem:[%s375 + $0xf0] sm:$0xff] %v1899
      %1932 = vst [vmem:[%s375 + $0xf8] sm:$0xff] %v1900
      %s1933 = smul.u32 32, %s22
      %p1934 = scmp.lt.s32.totalorder %s1933, 63
      %s1935 = scalar_select %p1934, %s1933, 63
      %s1936 = smul.addr %s1935, 8
      %s1937 = scalar_lea.vmem %s9, %s1936
      %s1938 = smul.u32 32, %s22
      %p1939 = scmp.lt.s32.totalorder %s1938, 63
      %s1940 = scalar_select %p1939, %s1938, 63
      %s1941 = smul.addr %s1940, 8
      %s1942 = scalar_lea.vmem %s10, %s1941
      // Predicated region
      $region57: #{encoder_image_full_forward.2} parent=55 // pred_check
        %p1943 = pneg %p234
      $region58: #{encoder_image_full_forward.2} parent=55 // pred_check_branch
        %1945 = sbr.rel (%p1943) target = $region60
      $region59: #{encoder_image_full_forward.2} parent=55 // pred_region
        %s1946 = smul.u32 32, %s22
      $region60: #{encoder_image_full_forward.2} parent=55 // pred_fallthru
        _
      // Predicated region
      $region61: #{encoder_image_full_forward.2} parent=55 // pred_check
        %p1947 = pneg %p260
      $region62: #{encoder_image_full_forward.2} parent=55 // pred_check_branch
        %1949 = sbr.rel (%p1947) target = $region64
      $region63: #{encoder_image_full_forward.2} parent=55 // pred_region
        %s1950 = smul.u32 32, %s22
      $region64: #{encoder_image_full_forward.2} parent=55 // pred_fallthru
        _
    $region56: #{encoder_image_full_forward.2} parent=5 // pred_fallthru
      _
    %p1951 = scmp.le.s32.totalorder 2, %s17
    // Predicated region
    $region65: #{encoder_image_full_forward.2} parent=5 // pred_check
      %p1952 = pneg %p1951
    $region66: #{encoder_image_full_forward.2} parent=5 // pred_check_branch
      %1954 = sbr.rel (%p1952) target = $region68
    $region67: #{encoder_image_full_forward.2} parent=5 // pred_region
      %s1955 = ssub.s32 %s17, 2
      // Predicated region
      $region69: #{encoder_image_full_forward.2} parent=67 // pred_check
        %p1956 = pneg %p240
      $region70: #{encoder_image_full_forward.2} parent=67 // pred_check_branch
        %1958 = sbr.rel (%p1956) target = $region72
      $region71: #{encoder_image_full_forward.2} parent=67 // pred_region
        %s1959 = smul.u32 32, %s23
        %p1960 = scmp.lt.s32.totalorder %s1959, 63
        %s1961 = scalar_select %p1960, %s1959, 63
        %s1962 = smul.addr %s1961, 8
        %s1963 = scalar_lea.vmem %s9, %s1962
      $region72: #{encoder_image_full_forward.2} parent=67 // pred_fallthru
        _
      // Predicated region
      $region73: #{encoder_image_full_forward.2} parent=67 // pred_check
        %p1964 = pneg %p266
      $region74: #{encoder_image_full_forward.2} parent=67 // pred_check_branch
        %1966 = sbr.rel (%p1964) target = $region76
      $region75: #{encoder_image_full_forward.2} parent=67 // pred_region
        %s1967 = smul.u32 32, %s23
        %p1968 = scmp.lt.s32.totalorder %s1967, 63
        %s1969 = scalar_select %p1968, %s1967, 63
        %s1970 = smul.addr %s1969, 8
        %s1971 = scalar_lea.vmem %s10, %s1970
      $region76: #{encoder_image_full_forward.2} parent=67 // pred_fallthru
        _
    $region68: #{encoder_image_full_forward.2} parent=5 // pred_fallthru
      _
  $region6: #{encoder_image_full_forward.2} parent=0 // loop_footer
    %s21 = sadd.s32 1, %s17
  $region7: #{encoder_image_full_forward.2} parent=0 // loop_footer_branch
    %16 = sbr.rel target = $region3
  $region8: #{encoder_image_full_forward.2} parent=0 // loop_exit
    _

</llo_original>
